<compile_context>
chip_gen: v6e
topology: v6e:2x2x1
jax: 0.10.0
libtpu: 0.0.40
codegen_flags: <defaults>
</compile_context>

<pallas_src>
import functools

import jax
import jax.numpy as jnp
from jax import lax
from jax.experimental import pallas as pl
from jax.experimental.pallas import tpu as pltpu


def _round_up(x, m):
    return -(-x // m) * m


# ----------------------------------------------------------------------------
# Fused bottleneck kernel (one grid step == one batch item)
# ----------------------------------------------------------------------------
def _make_bottleneck_kernel(*, stride, Ho, Wo, Hps, Wps, has_proj):
    k = 3
    s = stride
    nph = s * s

    def kernel(*refs):
        if has_proj:
            (x_ref, w1_ref, b1_ref, w2_ref, b2_ref, w3_ref, b3_ref,
             ws_ref, bs_ref, o_ref, pad_ref) = refs
        else:
            (x_ref, w1_ref, b1_ref, w2_ref, b2_ref, w3_ref, b3_ref,
             o_ref, pad_ref) = refs
            ws_ref = bs_ref = None

        cin = x_ref.shape[-1]
        planes = w1_ref.shape[-1]
        wk = pad_ref.shape[2]          # sublane-aligned working width

        # ---- conv1 (1x1) + bn1 + relu : one MXU dot over all pixels/phases --
        x_all = x_ref[...]                                   # (nph,Hps,Wps,Cin) bf16
        xm = x_all.reshape(nph * Hps * Wps, cin)
        t1 = jnp.dot(xm, w1_ref[...], preferred_element_type=jnp.float32)
        t1 = jnp.maximum(t1 + b1_ref[...], 0.0).astype(jnp.bfloat16)
        t1 = t1.reshape(nph, Hps, Wps, planes)

        # ---- assemble conv2's zero-padded, phase-decomposed input in VMEM ---
        # Buffer `dst` = (padded-row-phase)*s + (original-col-phase).  Rows are
        # stored in padded coordinates (top pad = the +row offset, a major-dim
        # store); columns at offset 0 with zero columns on the right — the
        # *left* pad column is provided by the circular roll wrapping a zero
        # column, so every scratch store stays sublane-aligned.
        pad_ref[...] = jnp.zeros_like(pad_ref)
        for p in range(s):
            for q in range(s):
                dst = ((p + 1) % s) * s + q
                ro = (p + 1) // s
                pad_ref[dst, ro:ro + Hps, 0:Wps, :] = t1[p * s + q]

        # ---- conv2 (3x3, stride s) + bn2 + relu : 9 MXU taps ----------------
        # Column shift c in {-1, 0, 1//s}; shifted planes are built once per
        # (phase, shift) and reused across kh (rolls hoisted out of the loop).
        base_bf, base_f32, shifted = {}, {}, {}

        def tap_plane(ph, c):
            # returns plane with plane[:, w, :] == padded_buffer[ph][:, w+c, :]
            if ph not in base_bf:
                base_bf[ph] = pad_ref[ph]                    # (Hpp, Wk, P) bf16
            if c == 0:
                return base_bf[ph]
            if (ph, c) not in shifted:
                if ph not in base_f32:
                    base_f32[ph] = base_bf[ph].astype(jnp.float32)
                rolled = pltpu.roll(base_f32[ph], shift=(-c) % wk, axis=1)
                shifted[(ph, c)] = rolled.astype(jnp.bfloat16)
            return shifted[(ph, c)]

        acc2 = jnp.zeros((Ho * wk, planes), jnp.float32) + b2_ref[...]
        for kh in range(k):
            for kw in range(k):
                ph = (kh % s) * s + (kw - 1) % s
                rh = kh // s
                c = (kw - 1) // s                            # floor division
                xt = tap_plane(ph, c)[rh:rh + Ho]            # (Ho, Wk, P) bf16
                # Wk % 8 == 0 -> this reshape is layout-preserving (no relayout)
                acc2 = acc2 + jnp.dot(xt.reshape(Ho * wk, planes),
                                      w2_ref[kh * k + kw],
                                      preferred_element_type=jnp.float32)
        t2 = jnp.maximum(acc2, 0.0).astype(jnp.bfloat16)
        # drop the padded-width garbage columns once (only narrow relayout left)
        t2 = t2.reshape(Ho, wk, planes)[:, :Wo, :].reshape(Ho * Wo, planes)

        # ---- conv3 (1x1) + bn3 ----------------------------------------------
        acc3 = jnp.dot(t2, w3_ref[...], preferred_element_type=jnp.float32)
        acc3 = acc3 + b3_ref[...]

        # ---- shortcut + residual add + relu, lane-dense (4*planes) store ----
        x0 = x_all[0].reshape(Ho * Wo, cin)   # phase (0,0) == x[:, ::s, ::s, :]
        if has_proj:
            sc = jnp.dot(x0, ws_ref[...], preferred_element_type=jnp.float32)
            sc = sc + bs_ref[...]
        else:
            sc = x0.astype(jnp.float32)
        o_ref[0] = jnp.maximum(acc3 + sc, 0.0).astype(o_ref.dtype)

    return kernel


# ----------------------------------------------------------------------------
# Wrapper: one fused pallas_call for the whole bottleneck block
# ----------------------------------------------------------------------------
def bottleneck_forward(params, x_nchw, *, stride):
    """Bottleneck forward (inference-mode BN), NCHW f32 in / NCHW f32 out."""
    s = stride
    x = jnp.transpose(x_nchw, (0, 2, 3, 1)).astype(jnp.bfloat16)   # NHWC bf16
    B, H, W, cin = x.shape
    assert H % s == 0 and W % s == 0, "spatial dims must be divisible by stride"

    planes = params["w1"].shape[-1]
    c3 = params["w3"].shape[-1]
    has_proj = "ws" in params

    nph = s * s
    Ho, Wo = H // s, W // s                    # 3x3 / pad=1 output size
    Hps, Wps = H // s, W // s                  # per-phase input size
    Hpp = -(-(H + 2) // s)                     # padded rows per phase buffer
    Wk = _round_up(Wo + 1, 8)                  # sublane-aligned working width
    # roll-wrap safety (left pad comes from a wrapped zero column; left-shift
    # garbage must land beyond column Wo)
    assert Wk >= Wps + 1 and Wk - (1 // s) >= Wo
    assert Hpp >= (3 - 1) // s + Ho

    if s == 1:
        xph = x                                # pure reshape view, zero copies
    else:
        # one phase split serves both the conv path and the strided shortcut
        phases = [x[:, p::s, q::s, :] for p in range(s) for q in range(s)]
        xph = jnp.stack(phases, axis=1).reshape(B * nph, Hps, Wps, cin)

    kernel = _make_bottleneck_kernel(stride=s, Ho=Ho, Wo=Wo, Hps=Hps, Wps=Wps,
                                     has_proj=has_proj)

    in_specs = [
        pl.BlockSpec((nph, Hps, Wps, cin), lambda b: (b, 0, 0, 0)),
        pl.BlockSpec((cin, planes), lambda b: (0, 0)),
        pl.BlockSpec((1, planes), lambda b: (0, 0)),
        pl.BlockSpec((9, planes, planes), lambda b: (0, 0, 0)),
        pl.BlockSpec((1, planes), lambda b: (0, 0)),
        pl.BlockSpec((planes, c3), lambda b: (0, 0)),
        pl.BlockSpec((1, c3), lambda b: (0, 0)),
    ]
    args = [xph, params["w1"], params["b1"], params["w2"], params["b2"],
            params["w3"], params["b3"]]
    if has_proj:
        in_specs += [pl.BlockSpec((cin, c3), lambda b: (0, 0)),
                     pl.BlockSpec((1, c3), lambda b: (0, 0))]
        args += [params["ws"], params["bs"]]

    out = pl.pallas_call(
        kernel,
        out_shape=jax.ShapeDtypeStruct((B, Ho * Wo, c3), jnp.float32),
        grid=(B,),
        in_specs=in_specs,
        out_specs=pl.BlockSpec((1, Ho * Wo, c3), lambda b: (b, 0, 0)),
        scratch_shapes=[pltpu.VMEM((nph, Hpp, Wk, planes), jnp.bfloat16)],
        compiler_params=pltpu.CompilerParams(
            dimension_semantics=("parallel",)),
    )(*args)

    out = out.reshape(B, Ho, Wo, c3)
    return jnp.transpose(out, (0, 3, 1, 2))    # NHWC -> NCHW, f32


# ----------------------------------------------------------------------------
# Parameter init (PyTorch-shaped) + one-time BN folding / weight prep
# ----------------------------------------------------------------------------
def _init_conv(key, cout, cin, k):
    fan_in = cin * k * k
    return (jax.random.normal(key, (cout, cin, k, k)) *
            (2.0 / fan_in) ** 0.5).astype(jnp.float32)


def _init_bn(key, c):
    k1, k2, k3, k4 = jax.random.split(key, 4)
    gamma = jax.random.uniform(k1, (c,), minval=0.5, maxval=1.5)
    beta = jax.random.normal(k2, (c,)) * 0.1
    mean = jax.random.normal(k3, (c,)) * 0.1
    var = jax.random.uniform(k4, (c,), minval=0.5, maxval=1.5)
    return (gamma.astype(jnp.float32), beta.astype(jnp.float32),
            mean.astype(jnp.float32), var.astype(jnp.float32))


def init_bottleneck_params(key, in_planes, planes, stride):
    expansion = 4
    ks = iter(jax.random.split(key, 8))
    p = {
        "conv1": _init_conv(next(ks), planes, in_planes, 1),
        "bn1": _init_bn(next(ks), planes),
        "conv2": _init_conv(next(ks), planes, planes, 3),
        "bn2": _init_bn(next(ks), planes),
        "conv3": _init_conv(next(ks), expansion * planes, planes, 1),
        "bn3": _init_bn(next(ks), expansion * planes),
    }
    if stride != 1 or in_planes != expansion * planes:
        p["conv_sc"] = _init_conv(next(ks), expansion * planes, in_planes, 1)
        p["bn_sc"] = _init_bn(next(ks), expansion * planes)
    return p


def _fold_bn(gamma, beta, mean, var, eps=1e-5):
    scale = gamma / jnp.sqrt(var + eps)
    return scale, beta - mean * scale


def prepare_params(raw):
    """Fold inference-mode BN into conv weights, pre-transpose to the kernel
    layouts and cast weights to bf16 — done once, outside the forward."""
    out = {}

    s1, b1 = _fold_bn(*raw["bn1"])
    out["w1"] = (jnp.transpose(raw["conv1"][:, :, 0, 0]) *
                 s1[None, :]).astype(jnp.bfloat16)             # (Cin, P)
    out["b1"] = b1.reshape(1, -1).astype(jnp.float32)

    s2, b2 = _fold_bn(*raw["bn2"])
    w2 = raw["conv2"]
    cout2, cin2, k, _ = w2.shape
    out["w2"] = (jnp.transpose(w2, (2, 3, 1, 0)).reshape(k * k, cin2, cout2) *
                 s2[None, None, :]).astype(jnp.bfloat16)       # (9, P, P)
    out["b2"] = b2.reshape(1, -1).astype(jnp.float32)

    s3, b3 = _fold_bn(*raw["bn3"])
    out["w3"] = (jnp.transpose(raw["conv3"][:, :, 0, 0]) *
                 s3[None, :]).astype(jnp.bfloat16)             # (P, 4P)
    out["b3"] = b3.reshape(1, -1).astype(jnp.float32)

    if "conv_sc" in raw:
        ss, bs = _fold_bn(*raw["bn_sc"])
        out["ws"] = (jnp.transpose(raw["conv_sc"][:, :, 0, 0]) *
                     ss[None, :]).astype(jnp.bfloat16)         # (Cin, 4P)
        out["bs"] = bs.reshape(1, -1).astype(jnp.float32)
    return out


# ----------------------------------------------------------------------------
# Pure-JAX f32 reference (PyTorch module semantics, eval-mode BN)
# ----------------------------------------------------------------------------
def reference_forward(raw, x_nchw, *, stride, eps=1e-5):
    x = jnp.transpose(x_nchw, (0, 2, 3, 1))

    def bn(y, prm):
        gamma, beta, mean, var = prm
        return (y - mean) * (gamma / jnp.sqrt(var + eps)) + beta

    def conv(y, w_oihw, s):
        w = jnp.transpose(w_oihw, (2, 3, 1, 0))                # HWIO
        pad = w.shape[0] // 2
        return lax.conv_general_dilated(
            y, w, window_strides=(s, s), padding=[(pad, pad), (pad, pad)],
            dimension_numbers=("NHWC", "HWIO", "NHWC"),
            precision=lax.Precision.HIGHEST)

    out = jax.nn.relu(bn(conv(x, raw["conv1"], 1), raw["bn1"]))
    out = jax.nn.relu(bn(conv(out, raw["conv2"], stride), raw["bn2"]))
    out = bn(conv(out, raw["conv3"], 1), raw["bn3"])
    sc = (bn(conv(x, raw["conv_sc"], stride), raw["bn_sc"])
          if "conv_sc" in raw else x)
    out = jax.nn.relu(out + sc)
    return jnp.transpose(out, (0, 3, 1, 2))


# ----------------------------------------------------------------------------
if __name__ == "__main__":
    key = jax.random.PRNGKey(0)
    B = 2
    configs = [
        # (in_planes, planes, stride, H, W)
        (64, 32, 1, 16, 16),    # projection shortcut (in_planes != 4*planes)
        (64, 32, 2, 16, 16),    # strided projection shortcut
        (128, 32, 1, 16, 16),   # identity shortcut
    ]
    for cin, planes, stride, H, W in configs:
        key, kp, kx = jax.random.split(key, 3)
        raw = init_bottleneck_params(kp, cin, planes, stride)
        prepared = prepare_params(raw)
        x = jax.random.normal(kx, (B, cin, H, W), dtype=jnp.float32)

        fwd = jax.jit(functools.partial(bottleneck_forward, stride=stride))
        out = jax.block_until_ready(fwd(prepared, x))
        assert out.shape == (B, 4 * planes, H // stride, W // stride), out.shape
        assert out.dtype == jnp.float32

        # loose tolerance: kernel uses bf16 weights/activations, ref is f32
        ref = reference_forward(raw, x, stride=stride)
        err = float(jnp.max(jnp.abs(out - ref)))
        scale = float(jnp.max(jnp.abs(ref)))
        assert err <= 0.1 * scale + 0.1, (cin, planes, stride, err, scale)

    print("KERNEL_OK")
</pallas_src>

<mosaic_0001>
module attributes {stable_mosaic.version = 11 : i64} {
  func.func @kernel(%arg0: i32, %arg1: memref<1x16x16x64xbf16, #tpu.memory_space<vmem>>, %arg2: memref<64x32xbf16, #tpu.memory_space<vmem>>, %arg3: memref<1x32xf32, #tpu.memory_space<vmem>>, %arg4: memref<9x32x32xbf16, #tpu.memory_space<vmem>>, %arg5: memref<1x32xf32, #tpu.memory_space<vmem>>, %arg6: memref<32x128xbf16, #tpu.memory_space<vmem>>, %arg7: memref<1x128xf32, #tpu.memory_space<vmem>>, %arg8: memref<64x128xbf16, #tpu.memory_space<vmem>>, %arg9: memref<1x128xf32, #tpu.memory_space<vmem>>, %arg10: memref<1x256x128xf32, #tpu.memory_space<vmem>>, %arg11: memref<1x18x24x32xbf16, #tpu.memory_space<vmem>>) attributes {dimension_semantics = [#tpu.dimension_semantics<parallel>], iteration_bounds = array<i64: 2>, scalar_prefetch = 0 : i64, scratch_operands = 1 : i64, tpu.core_type = #tpu.core_type<tc>, window_params = [{transform_indices = @transform_0, window_bounds = array<i64: 1, 16, 16, 64>}, {pipeline_mode = #tpu.pipeline_mode<synchronous>, transform_indices = @transform_1, window_bounds = array<i64: 64, 32>}, {pipeline_mode = #tpu.pipeline_mode<synchronous>, transform_indices = @transform_2, window_bounds = array<i64: 1, 32>}, {pipeline_mode = #tpu.pipeline_mode<synchronous>, transform_indices = @transform_3, window_bounds = array<i64: 9, 32, 32>}, {pipeline_mode = #tpu.pipeline_mode<synchronous>, transform_indices = @transform_4, window_bounds = array<i64: 1, 32>}, {pipeline_mode = #tpu.pipeline_mode<synchronous>, transform_indices = @transform_5, window_bounds = array<i64: 32, 128>}, {pipeline_mode = #tpu.pipeline_mode<synchronous>, transform_indices = @transform_6, window_bounds = array<i64: 1, 128>}, {pipeline_mode = #tpu.pipeline_mode<synchronous>, transform_indices = @transform_7, window_bounds = array<i64: 64, 128>}, {pipeline_mode = #tpu.pipeline_mode<synchronous>, transform_indices = @transform_8, window_bounds = array<i64: 1, 128>}, {transform_indices = @transform_9, window_bounds = array<i64: 1, 256, 128>}]} {
    %c0 = arith.constant 0 : index
    %c0_0 = arith.constant 0 : index
    %c0_1 = arith.constant 0 : index
    %c0_2 = arith.constant 0 : index
    %0 = vector.load %arg1[%c0, %c0_0, %c0_1, %c0_2] : memref<1x16x16x64xbf16, #tpu.memory_space<vmem>>, vector<1x16x16x64xbf16>
    %1 = vector.shape_cast %0 : vector<1x16x16x64xbf16> to vector<256x64xbf16>
    %c0_3 = arith.constant 0 : index
    %c0_4 = arith.constant 0 : index
    %2 = vector.load %arg2[%c0_3, %c0_4] : memref<64x32xbf16, #tpu.memory_space<vmem>>, vector<64x32xbf16>
    %cst = arith.constant dense<0.000000e+00> : vector<256x32xf32>
    %3 = tpu.matmul %1, %2, %cst {dimension_numbers = #tpu.dot_dimension_numbers<[1], [0], [0], [1], [0, 0, 1, 1], [], []>} : vector<256x64xbf16>, vector<64x32xbf16>, vector<256x32xf32> -> vector<256x32xf32>
    %c0_5 = arith.constant 0 : index
    %c0_6 = arith.constant 0 : index
    %4 = vector.load %arg3[%c0_5, %c0_6] : memref<1x32xf32, #tpu.memory_space<vmem>>, vector<1x32xf32>
    %5 = vector.broadcast %4 : vector<1x32xf32> to vector<256x32xf32>
    %6 = arith.addf %3, %5 : vector<256x32xf32>
    %cst_7 = arith.constant 0.000000e+00 : f32
    %7 = vector.broadcast %cst_7 : f32 to vector<256x32xf32>
    %8 = arith.maximumf %6, %7 : vector<256x32xf32>
    %9 = arith.truncf %8 : vector<256x32xf32> to vector<256x32xbf16>
    %10 = vector.shape_cast %9 : vector<256x32xbf16> to vector<1x16x16x32xbf16>
    %cst_8 = arith.constant 0.000000e+00 : bf16
    %11 = vector.broadcast %cst_8 : bf16 to vector<1x18x24x32xbf16>
    %c0_9 = arith.constant 0 : index
    %c0_10 = arith.constant 0 : index
    %c0_11 = arith.constant 0 : index
    %c0_12 = arith.constant 0 : index
    %12 = vector.load %arg11[%c0_9, %c0_10, %c0_11, %c0_12] : memref<1x18x24x32xbf16, #tpu.memory_space<vmem>>, vector<1x18x24x32xbf16>
    tpu.vector_store %arg11[%c0_9, %c0_10, %c0_11, %c0_12], %11 {strides = array<i32>} : memref<1x18x24x32xbf16, #tpu.memory_space<vmem>>, vector<1x18x24x32xbf16>,
    %13 = vector.shape_cast %10 : vector<1x16x16x32xbf16> to vector<16x16x32xbf16>
    %c0_13 = arith.constant 0 : index
    %c1 = arith.constant 1 : index
    %c0_14 = arith.constant 0 : index
    %c0_15 = arith.constant 0 : index
    %14 = vector.load %arg11[%c0_13, %c1, %c0_14, %c0_15] : memref<1x18x24x32xbf16, #tpu.memory_space<vmem>>, vector<1x16x16x32xbf16>
    %15 = vector.shape_cast %14 : vector<1x16x16x32xbf16> to vector<16x16x32xbf16>
    %16 = vector.shape_cast %13 : vector<16x16x32xbf16> to vector<1x16x16x32xbf16>
    tpu.vector_store %arg11[%c0_13, %c1, %c0_14, %c0_15], %16 {strides = array<i32>} : memref<1x18x24x32xbf16, #tpu.memory_space<vmem>>, vector<1x16x16x32xbf16>,
    %cst_16 = arith.constant 0.000000e+00 : f32
    %17 = vector.broadcast %cst_16 : f32 to vector<384x32xf32>
    %c0_17 = arith.constant 0 : index
    %c0_18 = arith.constant 0 : index
    %18 = vector.load %arg5[%c0_17, %c0_18] : memref<1x32xf32, #tpu.memory_space<vmem>>, vector<1x32xf32>
    %19 = vector.broadcast %18 : vector<1x32xf32> to vector<384x32xf32>
    %20 = arith.addf %17, %19 : vector<384x32xf32>
    %c0_19 = arith.constant 0 : index
    %c0_20 = arith.constant 0 : index
    %c0_21 = arith.constant 0 : index
    %c0_22 = arith.constant 0 : index
    %21 = vector.load %arg11[%c0_19, %c0_20, %c0_21, %c0_22] : memref<1x18x24x32xbf16, #tpu.memory_space<vmem>>, vector<1x18x24x32xbf16>
    %22 = vector.shape_cast %21 : vector<1x18x24x32xbf16> to vector<18x24x32xbf16>
    %23 = arith.extf %22 : vector<18x24x32xbf16> to vector<18x24x32xf32>
    %c1_i32 = arith.constant 1 : i32
    %24 = tpu.dynamic_rotate %23 by %c1_i32 dim 1 : vector<18x24x32xf32>, i32 -> vector<18x24x32xf32>
    %25 = arith.truncf %24 : vector<18x24x32xf32> to vector<18x24x32xbf16>
    %26 = vector.extract_strided_slice %25 {offsets = [0, 0, 0], sizes = [16, 24, 32], strides = [1, 1, 1]} : vector<18x24x32xbf16> to vector<16x24x32xbf16>
    %27 = vector.shape_cast %26 : vector<16x24x32xbf16> to vector<384x32xbf16>
    %c0_23 = arith.constant 0 : index
    %c0_24 = arith.constant 0 : index
    %c0_25 = arith.constant 0 : index
    %28 = vector.load %arg4[%c0_23, %c0_24, %c0_25] : memref<9x32x32xbf16, #tpu.memory_space<vmem>>, vector<1x32x32xbf16>
    %29 = vector.shape_cast %28 : vector<1x32x32xbf16> to vector<32x32xbf16>
    %cst_26 = arith.constant dense<0.000000e+00> : vector<384x32xf32>
    %30 = tpu.matmul %27, %29, %cst_26 {dimension_numbers = #tpu.dot_dimension_numbers<[1], [0], [0], [1], [0, 0, 1, 1], [], []>} : vector<384x32xbf16>, vector<32x32xbf16>, vector<384x32xf32> -> vector<384x32xf32>
    %31 = arith.addf %20, %30 : vector<384x32xf32>
    %32 = vector.extract_strided_slice %22 {offsets = [0, 0, 0], sizes = [16, 24, 32], strides = [1, 1, 1]} : vector<18x24x32xbf16> to vector<16x24x32xbf16>
    %33 = vector.shape_cast %32 : vector<16x24x32xbf16> to vector<384x32xbf16>
    %c1_27 = arith.constant 1 : index
    %c0_28 = arith.constant 0 : index
    %c0_29 = arith.constant 0 : index
    %34 = vector.load %arg4[%c1_27, %c0_28, %c0_29] : memref<9x32x32xbf16, #tpu.memory_space<vmem>>, vector<1x32x32xbf16>
    %35 = vector.shape_cast %34 : vector<1x32x32xbf16> to vector<32x32xbf16>
    %cst_30 = arith.constant dense<0.000000e+00> : vector<384x32xf32>
    %36 = tpu.matmul %33, %35, %cst_30 {dimension_numbers = #tpu.dot_dimension_numbers<[1], [0], [0], [1], [0, 0, 1, 1], [], []>} : vector<384x32xbf16>, vector<32x32xbf16>, vector<384x32xf32> -> vector<384x32xf32>
    %37 = arith.addf %31, %36 : vector<384x32xf32>
    %c23_i32 = arith.constant 23 : i32
    %38 = tpu.dynamic_rotate %23 by %c23_i32 dim 1 : vector<18x24x32xf32>, i32 -> vector<18x24x32xf32>
    %39 = arith.truncf %38 : vector<18x24x32xf32> to vector<18x24x32xbf16>
    %40 = vector.extract_strided_slice %39 {offsets = [0, 0, 0], sizes = [16, 24, 32], strides = [1, 1, 1]} : vector<18x24x32xbf16> to vector<16x24x32xbf16>
    %41 = vector.shape_cast %40 : vector<16x24x32xbf16> to vector<384x32xbf16>
    %c2 = arith.constant 2 : index
    %c0_31 = arith.constant 0 : index
    %c0_32 = arith.constant 0 : index
    %42 = vector.load %arg4[%c2, %c0_31, %c0_32] : memref<9x32x32xbf16, #tpu.memory_space<vmem>>, vector<1x32x32xbf16>
    %43 = vector.shape_cast %42 : vector<1x32x32xbf16> to vector<32x32xbf16>
    %cst_33 = arith.constant dense<0.000000e+00> : vector<384x32xf32>
    %44 = tpu.matmul %41, %43, %cst_33 {dimension_numbers = #tpu.dot_dimension_numbers<[1], [0], [0], [1], [0, 0, 1, 1], [], []>} : vector<384x32xbf16>, vector<32x32xbf16>, vector<384x32xf32> -> vector<384x32xf32>
    %45 = arith.addf %37, %44 : vector<384x32xf32>
    %46 = vector.extract_strided_slice %25 {offsets = [1, 0, 0], sizes = [16, 24, 32], strides = [1, 1, 1]} : vector<18x24x32xbf16> to vector<16x24x32xbf16>
    %47 = vector.shape_cast %46 : vector<16x24x32xbf16> to vector<384x32xbf16>
    %c3 = arith.constant 3 : index
    %c0_34 = arith.constant 0 : index
    %c0_35 = arith.constant 0 : index
    %48 = vector.load %arg4[%c3, %c0_34, %c0_35] : memref<9x32x32xbf16, #tpu.memory_space<vmem>>, vector<1x32x32xbf16>
    %49 = vector.shape_cast %48 : vector<1x32x32xbf16> to vector<32x32xbf16>
    %cst_36 = arith.constant dense<0.000000e+00> : vector<384x32xf32>
    %50 = tpu.matmul %47, %49, %cst_36 {dimension_numbers = #tpu.dot_dimension_numbers<[1], [0], [0], [1], [0, 0, 1, 1], [], []>} : vector<384x32xbf16>, vector<32x32xbf16>, vector<384x32xf32> -> vector<384x32xf32>
    %51 = arith.addf %45, %50 : vector<384x32xf32>
    %52 = vector.extract_strided_slice %22 {offsets = [1, 0, 0], sizes = [16, 24, 32], strides = [1, 1, 1]} : vector<18x24x32xbf16> to vector<16x24x32xbf16>
    %53 = vector.shape_cast %52 : vector<16x24x32xbf16> to vector<384x32xbf16>
    %c4 = arith.constant 4 : index
    %c0_37 = arith.constant 0 : index
    %c0_38 = arith.constant 0 : index
    %54 = vector.load %arg4[%c4, %c0_37, %c0_38] : memref<9x32x32xbf16, #tpu.memory_space<vmem>>, vector<1x32x32xbf16>
    %55 = vector.shape_cast %54 : vector<1x32x32xbf16> to vector<32x32xbf16>
    %cst_39 = arith.constant dense<0.000000e+00> : vector<384x32xf32>
    %56 = tpu.matmul %53, %55, %cst_39 {dimension_numbers = #tpu.dot_dimension_numbers<[1], [0], [0], [1], [0, 0, 1, 1], [], []>} : vector<384x32xbf16>, vector<32x32xbf16>, vector<384x32xf32> -> vector<384x32xf32>
    %57 = arith.addf %51, %56 : vector<384x32xf32>
    %58 = vector.extract_strided_slice %39 {offsets = [1, 0, 0], sizes = [16, 24, 32], strides = [1, 1, 1]} : vector<18x24x32xbf16> to vector<16x24x32xbf16>
    %59 = vector.shape_cast %58 : vector<16x24x32xbf16> to vector<384x32xbf16>
    %c5 = arith.constant 5 : index
    %c0_40 = arith.constant 0 : index
    %c0_41 = arith.constant 0 : index
    %60 = vector.load %arg4[%c5, %c0_40, %c0_41] : memref<9x32x32xbf16, #tpu.memory_space<vmem>>, vector<1x32x32xbf16>
    %61 = vector.shape_cast %60 : vector<1x32x32xbf16> to vector<32x32xbf16>
    %cst_42 = arith.constant dense<0.000000e+00> : vector<384x32xf32>
    %62 = tpu.matmul %59, %61, %cst_42 {dimension_numbers = #tpu.dot_dimension_numbers<[1], [0], [0], [1], [0, 0, 1, 1], [], []>} : vector<384x32xbf16>, vector<32x32xbf16>, vector<384x32xf32> -> vector<384x32xf32>
    %63 = arith.addf %57, %62 : vector<384x32xf32>
    %64 = vector.extract_strided_slice %25 {offsets = [2, 0, 0], sizes = [16, 24, 32], strides = [1, 1, 1]} : vector<18x24x32xbf16> to vector<16x24x32xbf16>
    %65 = vector.shape_cast %64 : vector<16x24x32xbf16> to vector<384x32xbf16>
    %c6 = arith.constant 6 : index
    %c0_43 = arith.constant 0 : index
    %c0_44 = arith.constant 0 : index
    %66 = vector.load %arg4[%c6, %c0_43, %c0_44] : memref<9x32x32xbf16, #tpu.memory_space<vmem>>, vector<1x32x32xbf16>
    %67 = vector.shape_cast %66 : vector<1x32x32xbf16> to vector<32x32xbf16>
    %cst_45 = arith.constant dense<0.000000e+00> : vector<384x32xf32>
    %68 = tpu.matmul %65, %67, %cst_45 {dimension_numbers = #tpu.dot_dimension_numbers<[1], [0], [0], [1], [0, 0, 1, 1], [], []>} : vector<384x32xbf16>, vector<32x32xbf16>, vector<384x32xf32> -> vector<384x32xf32>
    %69 = arith.addf %63, %68 : vector<384x32xf32>
    %70 = vector.extract_strided_slice %22 {offsets = [2, 0, 0], sizes = [16, 24, 32], strides = [1, 1, 1]} : vector<18x24x32xbf16> to vector<16x24x32xbf16>
    %71 = vector.shape_cast %70 : vector<16x24x32xbf16> to vector<384x32xbf16>
    %c7 = arith.constant 7 : index
    %c0_46 = arith.constant 0 : index
    %c0_47 = arith.constant 0 : index
    %72 = vector.load %arg4[%c7, %c0_46, %c0_47] : memref<9x32x32xbf16, #tpu.memory_space<vmem>>, vector<1x32x32xbf16>
    %73 = vector.shape_cast %72 : vector<1x32x32xbf16> to vector<32x32xbf16>
    %cst_48 = arith.constant dense<0.000000e+00> : vector<384x32xf32>
    %74 = tpu.matmul %71, %73, %cst_48 {dimension_numbers = #tpu.dot_dimension_numbers<[1], [0], [0], [1], [0, 0, 1, 1], [], []>} : vector<384x32xbf16>, vector<32x32xbf16>, vector<384x32xf32> -> vector<384x32xf32>
    %75 = arith.addf %69, %74 : vector<384x32xf32>
    %76 = vector.extract_strided_slice %39 {offsets = [2, 0, 0], sizes = [16, 24, 32], strides = [1, 1, 1]} : vector<18x24x32xbf16> to vector<16x24x32xbf16>
    %77 = vector.shape_cast %76 : vector<16x24x32xbf16> to vector<384x32xbf16>
    %c8 = arith.constant 8 : index
    %c0_49 = arith.constant 0 : index
    %c0_50 = arith.constant 0 : index
    %78 = vector.load %arg4[%c8, %c0_49, %c0_50] : memref<9x32x32xbf16, #tpu.memory_space<vmem>>, vector<1x32x32xbf16>
    %79 = vector.shape_cast %78 : vector<1x32x32xbf16> to vector<32x32xbf16>
    %cst_51 = arith.constant dense<0.000000e+00> : vector<384x32xf32>
    %80 = tpu.matmul %77, %79, %cst_51 {dimension_numbers = #tpu.dot_dimension_numbers<[1], [0], [0], [1], [0, 0, 1, 1], [], []>} : vector<384x32xbf16>, vector<32x32xbf16>, vector<384x32xf32> -> vector<384x32xf32>
    %81 = arith.addf %75, %80 : vector<384x32xf32>
    %cst_52 = arith.constant 0.000000e+00 : f32
    %82 = vector.broadcast %cst_52 : f32 to vector<384x32xf32>
    %83 = arith.maximumf %81, %82 : vector<384x32xf32>
    %84 = arith.truncf %83 : vector<384x32xf32> to vector<384x32xbf16>
    %85 = vector.shape_cast %84 : vector<384x32xbf16> to vector<16x24x32xbf16>
    %86 = vector.extract_strided_slice %85 {offsets = [0, 0, 0], sizes = [16, 16, 32], strides = [1, 1, 1]} : vector<16x24x32xbf16> to vector<16x16x32xbf16>
    %87 = vector.shape_cast %86 : vector<16x16x32xbf16> to vector<256x32xbf16>
    %c0_53 = arith.constant 0 : index
    %c0_54 = arith.constant 0 : index
    %88 = vector.load %arg6[%c0_53, %c0_54] : memref<32x128xbf16, #tpu.memory_space<vmem>>, vector<32x128xbf16>
    %cst_55 = arith.constant dense<0.000000e+00> : vector<256x128xf32>
    %89 = tpu.matmul %87, %88, %cst_55 {dimension_numbers = #tpu.dot_dimension_numbers<[1], [0], [0], [1], [0, 0, 1, 1], [], []>} : vector<256x32xbf16>, vector<32x128xbf16>, vector<256x128xf32> -> vector<256x128xf32>
    %c0_56 = arith.constant 0 : index
    %c0_57 = arith.constant 0 : index
    %90 = vector.load %arg7[%c0_56, %c0_57] : memref<1x128xf32, #tpu.memory_space<vmem>>, vector<1x128xf32>
    %91 = vector.broadcast %90 : vector<1x128xf32> to vector<256x128xf32>
    %92 = arith.addf %89, %91 : vector<256x128xf32>
    %93 = vector.shape_cast %0 : vector<1x16x16x64xbf16> to vector<16x16x64xbf16>
    %94 = vector.shape_cast %93 : vector<16x16x64xbf16> to vector<256x64xbf16>
    %c0_58 = arith.constant 0 : index
    %c0_59 = arith.constant 0 : index
    %95 = vector.load %arg8[%c0_58, %c0_59] : memref<64x128xbf16, #tpu.memory_space<vmem>>, vector<64x128xbf16>
    %cst_60 = arith.constant dense<0.000000e+00> : vector<256x128xf32>
    %96 = tpu.matmul %94, %95, %cst_60 {dimension_numbers = #tpu.dot_dimension_numbers<[1], [0], [0], [1], [0, 0, 1, 1], [], []>} : vector<256x64xbf16>, vector<64x128xbf16>, vector<256x128xf32> -> vector<256x128xf32>
    %c0_61 = arith.constant 0 : index
    %c0_62 = arith.constant 0 : index
    %97 = vector.load %arg9[%c0_61, %c0_62] : memref<1x128xf32, #tpu.memory_space<vmem>>, vector<1x128xf32>
    %98 = vector.broadcast %97 : vector<1x128xf32> to vector<256x128xf32>
    %99 = arith.addf %96, %98 : vector<256x128xf32>
    %100 = arith.addf %92, %99 : vector<256x128xf32>
    %cst_63 = arith.constant 0.000000e+00 : f32
    %101 = vector.broadcast %cst_63 : f32 to vector<256x128xf32>
    %102 = arith.maximumf %100, %101 : vector<256x128xf32>
    %c0_64 = arith.constant 0 : index
    %c0_65 = arith.constant 0 : index
    %c0_66 = arith.constant 0 : index
    %103 = vector.load %arg10[%c0_64, %c0_65, %c0_66] : memref<1x256x128xf32, #tpu.memory_space<vmem>>, vector<1x256x128xf32>
    %104 = vector.shape_cast %103 : vector<1x256x128xf32> to vector<256x128xf32>
    %105 = vector.shape_cast %102 : vector<256x128xf32> to vector<1x256x128xf32>
    tpu.vector_store %arg10[%c0_64, %c0_65, %c0_66], %105 {strides = array<i32>} : memref<1x256x128xf32, #tpu.memory_space<vmem>>, vector<1x256x128xf32>,
    return
  }
  func.func @transform_0(%arg0: i32) -> (i32, i32, i32, i32) {
    %c0_i32 = arith.constant 0 : i32
    %c0_i32_0 = arith.constant 0 : i32
    %c0_i32_1 = arith.constant 0 : i32
    %c0_i32_2 = arith.constant 0 : i32
    return %arg0, %c0_i32, %c0_i32_0, %c0_i32_1 : i32, i32, i32, i32
  }
  func.func @transform_1(%arg0: i32) -> (i32, i32) {
    %c0_i32 = arith.constant 0 : i32
    %c0_i32_0 = arith.constant 0 : i32
    %c0_i32_1 = arith.constant 0 : i32
    return %c0_i32, %c0_i32_0 : i32, i32
  }
  func.func @transform_2(%arg0: i32) -> (i32, i32) {
    %c0_i32 = arith.constant 0 : i32
    %c0_i32_0 = arith.constant 0 : i32
    %c0_i32_1 = arith.constant 0 : i32
    return %c0_i32, %c0_i32_0 : i32, i32
  }
  func.func @transform_3(%arg0: i32) -> (i32, i32, i32) {
    %c0_i32 = arith.constant 0 : i32
    %c0_i32_0 = arith.constant 0 : i32
    %c0_i32_1 = arith.constant 0 : i32
    %c0_i32_2 = arith.constant 0 : i32
    return %c0_i32, %c0_i32_0, %c0_i32_1 : i32, i32, i32
  }
  func.func @transform_4(%arg0: i32) -> (i32, i32) {
    %c0_i32 = arith.constant 0 : i32
    %c0_i32_0 = arith.constant 0 : i32
    %c0_i32_1 = arith.constant 0 : i32
    return %c0_i32, %c0_i32_0 : i32, i32
  }
  func.func @transform_5(%arg0: i32) -> (i32, i32) {
    %c0_i32 = arith.constant 0 : i32
    %c0_i32_0 = arith.constant 0 : i32
    %c0_i32_1 = arith.constant 0 : i32
    return %c0_i32, %c0_i32_0 : i32, i32
  }
  func.func @transform_6(%arg0: i32) -> (i32, i32) {
    %c0_i32 = arith.constant 0 : i32
    %c0_i32_0 = arith.constant 0 : i32
    %c0_i32_1 = arith.constant 0 : i32
    return %c0_i32, %c0_i32_0 : i32, i32
  }
  func.func @transform_7(%arg0: i32) -> (i32, i32) {
    %c0_i32 = arith.constant 0 : i32
    %c0_i32_0 = arith.constant 0 : i32
    %c0_i32_1 = arith.constant 0 : i32
    return %c0_i32, %c0_i32_0 : i32, i32
  }
  func.func @transform_8(%arg0: i32) -> (i32, i32) {
    %c0_i32 = arith.constant 0 : i32
    %c0_i32_0 = arith.constant 0 : i32
    %c0_i32_1 = arith.constant 0 : i32
    return %c0_i32, %c0_i32_0 : i32, i32
  }
  func.func @transform_9(%arg0: i32) -> (i32, i32, i32) {
    %c0_i32 = arith.constant 0 : i32
    %c0_i32_0 = arith.constant 0 : i32
    %c0_i32_1 = arith.constant 0 : i32
    return %arg0, %c0_i32, %c0_i32_0 : i32, i32, i32
  }
}

</mosaic_0001>

<llo_original>
// kernel: bottleneck_forward.1
$region0: #{bottleneck_forward.1}
  #allocation0 [shape = 'u32[]', space=smem, size = 0x4, offset = 0x4, fixed_abs, tag = 'smem constant byte address 0x4 - core index']
  #allocation1 [shape = 'u32[144,128]{1,0:T(1,128)}', space=vmem, size = 0x12000, scoped, tag = 'internal scratch']
  #allocation2 [shape = 'bf16[1,18,24,32]{3,2,1,0:T(8,128)(2,1)}', space=vmem, size = 0x1b000, scoped, tag = 'scratch operand']
  %s0 = inlined_call_operand.vmem [shape: bf16[2,16,16,64], index: 0, kind: input, shape index: {}]
  %s1 = inlined_call_operand.vmem [shape: bf16[64,32], index: 1, kind: input, shape index: {}]
  %s2 = inlined_call_operand.vmem [shape: f32[1,32], index: 2, kind: input, shape index: {}]
  %s3 = inlined_call_operand.vmem [shape: bf16[9,32,32], index: 3, kind: input, shape index: {}]
  %s4 = inlined_call_operand.vmem [shape: f32[1,32], index: 4, kind: input, shape index: {}]
  %s5 = inlined_call_operand.vmem [shape: bf16[32,128], index: 5, kind: input, shape index: {}]
  %s6 = inlined_call_operand.vmem [shape: f32[1,128], index: 6, kind: input, shape index: {}]
  %s7 = inlined_call_operand.vmem [shape: bf16[64,128], index: 7, kind: input, shape index: {}]
  %s8 = inlined_call_operand.vmem [shape: f32[1,128], index: 8, kind: input, shape index: {}]
  %s9 = inlined_call_operand.hbm [shape: f32[2,256,128], index: 9, kind: output, shape index: {}]
  %s10 = sld [smem:[#allocation0]]
  $region69: #{bottleneck_forward.1} parent=0
    _
  %s12 = ssub.s32 1, %s10
  %s13 = scalar_select 0, %s12, %s10
  $region1: #{bottleneck_forward.1} parent=0
    #allocation3 [shape = 'u8[262144]{0}', space=vmem, size = 0x40000, scoped, tag = 'output window, operand 0']
    #allocation4 [shape = 's32[2]{0}', space=sflag, size = 0x8, scoped, tag = 'scoped memory for bottleneck_forward.1']
    %14 = vsyncpa [#allocation4], 0
    %s15 = scalar_lea.sflag [#allocation4], 1
    %16 = vsyncpa %s15, 0
    loop: start=0, step=1, limit=4
    $region2: #{bottleneck_forward.1} parent=1 // loop_pre_header
      _
    $region3: #{bottleneck_forward.1} parent=1 // loop_header
      %s18 = sphi 0, %s22
      %p19 = scmp.ge.s32.totalorder %s18, 4
      %s28 = sphi 0, %s30
      %s31 = sphi 0, %s28
      %s32 = sphi 0, %s31
      %s48 = sphi 0, %s32
      %s52 = sphi 0, %s52
      %s54 = sphi 0, %s52
      %s55 = sphi 0, %s54
      %s69 = sphi 0, %s55
      %s73 = sphi 0, %s73
      %s75 = sphi 0, %s73
      %s76 = sphi 0, %s75
      %s90 = sphi 0, %s76
      %s94 = sphi 0, %s94
      %s96 = sphi 0, %s94
      %s97 = sphi 0, %s96
      %s111 = sphi 0, %s97
      %s115 = sphi 0, %s115
      %s117 = sphi 0, %s115
      %s118 = sphi 0, %s117
      %s132 = sphi 0, %s118
      %s136 = sphi 0, %s136
      %s138 = sphi 0, %s136
      %s139 = sphi 0, %s138
      %s153 = sphi 0, %s139
      %s157 = sphi 0, %s157
      %s159 = sphi 0, %s157
      %s160 = sphi 0, %s159
      %s174 = sphi 0, %s160
      %s178 = sphi 0, %s178
      %s180 = sphi 0, %s178
      %s181 = sphi 0, %s180
      %s195 = sphi 0, %s181
      %s199 = sphi 0, %s199
      %s201 = sphi 0, %s199
      %s202 = sphi 0, %s201
      %s216 = sphi 0, %s202
      %s222 = sphi 0, %s224
      %s225 = sphi 0, %s222
      %s226 = sphi 0, %s225
      %s242 = sphi 0, %s226
    $region4: #{bottleneck_forward.1} parent=1 // loop_header_branch
      %21 = sbr.rel (%p19) target = $region8
    $region5: #{bottleneck_forward.1} parent=1 // loop_body
      %s23 = ssub.s32 %s18, 1
      %s24 = ssub.s32 %s18, 2
      %s25 = sadd.s32 %s18, 1
      %s26 = ssub.s32 %s18, %s25
      %p27 = scmp.eq.s32.totalorder %s26, 0
      %s29 = sadd.s32 %s28, 1
      %s30 = scalar_select %p27, %s28, %s29
      %p33 = pneg %p27
      %p34 = scmp.eq.s32.totalorder %s18, 1
      %p35 = por %p33, %p34
      %p36 = scmp.ne.s32.totalorder %s28, %s31
      %p37 = scmp.eq.s32.totalorder %s18, 0
      %p38 = por %p36, %p37
      %p39 = scmp.ne.s32.totalorder %s28, %s31
      %p40 = scmp.eq.s32.totalorder %s23, 1
      %p41 = por %p39, %p40
      %p42 = scmp.ne.s32.totalorder %s31, %s32
      %p43 = scmp.eq.s32.totalorder %s23, 0
      %p44 = por %p42, %p43
      %p45 = scmp.ne.s32.totalorder %s31, %s32
      %p46 = scmp.eq.s32.totalorder %s24, 1
      %p47 = por %p45, %p46
      %p49 = scmp.ne.s32.totalorder %s32, %s48
      %p50 = scmp.eq.s32.totalorder %s24, 0
      %p51 = por %p49, %p50
      %s53 = sadd.s32 %s52, 1
      %p56 = scmp.eq.s32.totalorder %s18, 1
      %p57 = scmp.ne.s32.totalorder %s52, %s54
      %p58 = scmp.eq.s32.totalorder %s18, 0
      %p59 = por %p57, %p58
      %p60 = scmp.ne.s32.totalorder %s52, %s54
      %p61 = scmp.eq.s32.totalorder %s23, 1
      %p62 = por %p60, %p61
      %p63 = scmp.ne.s32.totalorder %s54, %s55
      %p64 = scmp.eq.s32.totalorder %s23, 0
      %p65 = por %p63, %p64
      %p66 = scmp.ne.s32.totalorder %s54, %s55
      %p67 = scmp.eq.s32.totalorder %s24, 1
      %p68 = por %p66, %p67
      %p70 = scmp.ne.s32.totalorder %s55, %s69
      %p71 = scmp.eq.s32.totalorder %s24, 0
      %p72 = por %p70, %p71
      %s74 = sadd.s32 %s73, 1
      %p77 = scmp.eq.s32.totalorder %s18, 1
      %p78 = scmp.ne.s32.totalorder %s73, %s75
      %p79 = scmp.eq.s32.totalorder %s18, 0
      %p80 = por %p78, %p79
      %p81 = scmp.ne.s32.totalorder %s73, %s75
      %p82 = scmp.eq.s32.totalorder %s23, 1
      %p83 = por %p81, %p82
      %p84 = scmp.ne.s32.totalorder %s75, %s76
      %p85 = scmp.eq.s32.totalorder %s23, 0
      %p86 = por %p84, %p85
      %p87 = scmp.ne.s32.totalorder %s75, %s76
      %p88 = scmp.eq.s32.totalorder %s24, 1
      %p89 = por %p87, %p88
      %p91 = scmp.ne.s32.totalorder %s76, %s90
      %p92 = scmp.eq.s32.totalorder %s24, 0
      %p93 = por %p91, %p92
      %s95 = sadd.s32 %s94, 1
      %p98 = scmp.eq.s32.totalorder %s18, 1
      %p99 = scmp.ne.s32.totalorder %s94, %s96
      %p100 = scmp.eq.s32.totalorder %s18, 0
      %p101 = por %p99, %p100
      %p102 = scmp.ne.s32.totalorder %s94, %s96
      %p103 = scmp.eq.s32.totalorder %s23, 1
      %p104 = por %p102, %p103
      %p105 = scmp.ne.s32.totalorder %s96, %s97
      %p106 = scmp.eq.s32.totalorder %s23, 0
      %p107 = por %p105, %p106
      %p108 = scmp.ne.s32.totalorder %s96, %s97
      %p109 = scmp.eq.s32.totalorder %s24, 1
      %p110 = por %p108, %p109
      %p112 = scmp.ne.s32.totalorder %s97, %s111
      %p113 = scmp.eq.s32.totalorder %s24, 0
      %p114 = por %p112, %p113
      %s116 = sadd.s32 %s115, 1
      %p119 = scmp.eq.s32.totalorder %s18, 1
      %p120 = scmp.ne.s32.totalorder %s115, %s117
      %p121 = scmp.eq.s32.totalorder %s18, 0
      %p122 = por %p120, %p121
      %p123 = scmp.ne.s32.totalorder %s115, %s117
      %p124 = scmp.eq.s32.totalorder %s23, 1
      %p125 = por %p123, %p124
      %p126 = scmp.ne.s32.totalorder %s117, %s118
      %p127 = scmp.eq.s32.totalorder %s23, 0
      %p128 = por %p126, %p127
      %p129 = scmp.ne.s32.totalorder %s117, %s118
      %p130 = scmp.eq.s32.totalorder %s24, 1
      %p131 = por %p129, %p130
      %p133 = scmp.ne.s32.totalorder %s118, %s132
      %p134 = scmp.eq.s32.totalorder %s24, 0
      %p135 = por %p133, %p134
      %s137 = sadd.s32 %s136, 1
      %p140 = scmp.eq.s32.totalorder %s18, 1
      %p141 = scmp.ne.s32.totalorder %s136, %s138
      %p142 = scmp.eq.s32.totalorder %s18, 0
      %p143 = por %p141, %p142
      %p144 = scmp.ne.s32.totalorder %s136, %s138
      %p145 = scmp.eq.s32.totalorder %s23, 1
      %p146 = por %p144, %p145
      %p147 = scmp.ne.s32.totalorder %s138, %s139
      %p148 = scmp.eq.s32.totalorder %s23, 0
      %p149 = por %p147, %p148
      %p150 = scmp.ne.s32.totalorder %s138, %s139
      %p151 = scmp.eq.s32.totalorder %s24, 1
      %p152 = por %p150, %p151
      %p154 = scmp.ne.s32.totalorder %s139, %s153
      %p155 = scmp.eq.s32.totalorder %s24, 0
      %p156 = por %p154, %p155
      %s158 = sadd.s32 %s157, 1
      %p161 = scmp.eq.s32.totalorder %s18, 1
      %p162 = scmp.ne.s32.totalorder %s157, %s159
      %p163 = scmp.eq.s32.totalorder %s18, 0
      %p164 = por %p162, %p163
      %p165 = scmp.ne.s32.totalorder %s157, %s159
      %p166 = scmp.eq.s32.totalorder %s23, 1
      %p167 = por %p165, %p166
      %p168 = scmp.ne.s32.totalorder %s159, %s160
      %p169 = scmp.eq.s32.totalorder %s23, 0
      %p170 = por %p168, %p169
      %p171 = scmp.ne.s32.totalorder %s159, %s160
      %p172 = scmp.eq.s32.totalorder %s24, 1
      %p173 = por %p171, %p172
      %p175 = scmp.ne.s32.totalorder %s160, %s174
      %p176 = scmp.eq.s32.totalorder %s24, 0
      %p177 = por %p175, %p176
      %s179 = sadd.s32 %s178, 1
      %p182 = scmp.eq.s32.totalorder %s18, 1
      %p183 = scmp.ne.s32.totalorder %s178, %s180
      %p184 = scmp.eq.s32.totalorder %s18, 0
      %p185 = por %p183, %p184
      %p186 = scmp.ne.s32.totalorder %s178, %s180
      %p187 = scmp.eq.s32.totalorder %s23, 1
      %p188 = por %p186, %p187
      %p189 = scmp.ne.s32.totalorder %s180, %s181
      %p190 = scmp.eq.s32.totalorder %s23, 0
      %p191 = por %p189, %p190
      %p192 = scmp.ne.s32.totalorder %s180, %s181
      %p193 = scmp.eq.s32.totalorder %s24, 1
      %p194 = por %p192, %p193
      %p196 = scmp.ne.s32.totalorder %s181, %s195
      %p197 = scmp.eq.s32.totalorder %s24, 0
      %p198 = por %p196, %p197
      %s200 = sadd.s32 %s199, 1
      %p203 = scmp.eq.s32.totalorder %s18, 1
      %p204 = scmp.ne.s32.totalorder %s199, %s201
      %p205 = scmp.eq.s32.totalorder %s18, 0
      %p206 = por %p204, %p205
      %p207 = scmp.ne.s32.totalorder %s199, %s201
      %p208 = scmp.eq.s32.totalorder %s23, 1
      %p209 = por %p207, %p208
      %p210 = scmp.ne.s32.totalorder %s201, %s202
      %p211 = scmp.eq.s32.totalorder %s23, 0
      %p212 = por %p210, %p211
      %p213 = scmp.ne.s32.totalorder %s201, %s202
      %p214 = scmp.eq.s32.totalorder %s24, 1
      %p215 = por %p213, %p214
      %p217 = scmp.ne.s32.totalorder %s202, %s216
      %p218 = scmp.eq.s32.totalorder %s24, 0
      %p219 = por %p217, %p218
      %s220 = ssub.s32 %s18, %s25
      %p221 = scmp.eq.s32.totalorder %s220, 0
      %s223 = sadd.s32 %s222, 1
      %s224 = scalar_select %p221, %s222, %s223
      %p227 = pneg %p221
      %p228 = scmp.eq.s32.totalorder %s18, 1
      %p229 = por %p227, %p228
      %p230 = scmp.ne.s32.totalorder %s222, %s225
      %p231 = scmp.eq.s32.totalorder %s18, 0
      %p232 = por %p230, %p231
      %p233 = scmp.ne.s32.totalorder %s222, %s225
      %p234 = scmp.eq.s32.totalorder %s23, 1
      %p235 = por %p233, %p234
      %p236 = scmp.ne.s32.totalorder %s225, %s226
      %p237 = scmp.eq.s32.totalorder %s23, 0
      %p238 = por %p236, %p237
      %p239 = scmp.ne.s32.totalorder %s225, %s226
      %p240 = scmp.eq.s32.totalorder %s24, 1
      %p241 = por %p239, %p240
      %p243 = scmp.ne.s32.totalorder %s226, %s242
      %p244 = scmp.eq.s32.totalorder %s24, 0
      %p245 = por %p243, %p244
      %p246 = scmp.le.s32.totalorder 1, %s18
      %p247 = scmp.lt.s32.totalorder %s18, 3
      %p248 = pnand %p246, %p247
      %p249 = pneg %p248
      // Predicated region
      $region9: #{bottleneck_forward.1} parent=5 // pred_check
        _
      $region10: #{bottleneck_forward.1} parent=5 // pred_check_branch
        %251 = sbr.rel (%p248) target = $region12
      $region11: #{bottleneck_forward.1} parent=5 // pred_region
        %s252 = ssub.s32 %s18, 1
        // Predicated region
        $region13: #{bottleneck_forward.1} parent=11 // pred_check
          %p253 = pneg %p65
        $region14: #{bottleneck_forward.1} parent=11 // pred_check_branch
          %255 = sbr.rel (%p253) target = $region16
        $region15: #{bottleneck_forward.1} parent=11 // pred_region
          _
        $region16: #{bottleneck_forward.1} parent=11 // pred_fallthru
          _
        // Predicated region
        $region17: #{bottleneck_forward.1} parent=11 // pred_check
          %p256 = pneg %p86
        $region18: #{bottleneck_forward.1} parent=11 // pred_check_branch
          %258 = sbr.rel (%p256) target = $region20
        $region19: #{bottleneck_forward.1} parent=11 // pred_region
          _
        $region20: #{bottleneck_forward.1} parent=11 // pred_fallthru
          _
        // Predicated region
        $region21: #{bottleneck_forward.1} parent=11 // pred_check
          %p259 = pneg %p107
        $region22: #{bottleneck_forward.1} parent=11 // pred_check_branch
          %261 = sbr.rel (%p259) target = $region24
        $region23: #{bottleneck_forward.1} parent=11 // pred_region
          _
        $region24: #{bottleneck_forward.1} parent=11 // pred_fallthru
          _
        // Predicated region
        $region25: #{bottleneck_forward.1} parent=11 // pred_check
          %p262 = pneg %p128
        $region26: #{bottleneck_forward.1} parent=11 // pred_check_branch
          %264 = sbr.rel (%p262) target = $region28
        $region27: #{bottleneck_forward.1} parent=11 // pred_region
          _
        $region28: #{bottleneck_forward.1} parent=11 // pred_fallthru
          _
        // Predicated region
        $region29: #{bottleneck_forward.1} parent=11 // pred_check
          %p265 = pneg %p149
        $region30: #{bottleneck_forward.1} parent=11 // pred_check_branch
          %267 = sbr.rel (%p265) target = $region32
        $region31: #{bottleneck_forward.1} parent=11 // pred_region
          _
        $region32: #{bottleneck_forward.1} parent=11 // pred_fallthru
          _
        // Predicated region
        $region33: #{bottleneck_forward.1} parent=11 // pred_check
          %p268 = pneg %p170
        $region34: #{bottleneck_forward.1} parent=11 // pred_check_branch
          %270 = sbr.rel (%p268) target = $region36
        $region35: #{bottleneck_forward.1} parent=11 // pred_region
          _
        $region36: #{bottleneck_forward.1} parent=11 // pred_fallthru
          _
        // Predicated region
        $region37: #{bottleneck_forward.1} parent=11 // pred_check
          %p271 = pneg %p191
        $region38: #{bottleneck_forward.1} parent=11 // pred_check_branch
          %273 = sbr.rel (%p271) target = $region40
        $region39: #{bottleneck_forward.1} parent=11 // pred_region
          _
        $region40: #{bottleneck_forward.1} parent=11 // pred_fallthru
          _
        // Predicated region
        $region41: #{bottleneck_forward.1} parent=11 // pred_check
          %p274 = pneg %p212
        $region42: #{bottleneck_forward.1} parent=11 // pred_check_branch
          %276 = sbr.rel (%p274) target = $region44
        $region43: #{bottleneck_forward.1} parent=11 // pred_region
          _
        $region44: #{bottleneck_forward.1} parent=11 // pred_fallthru
          _
      $region12: #{bottleneck_forward.1} parent=5 // pred_fallthru
        _
      %p277 = scmp.lt.s32.totalorder %s18, 2
      // Predicated region
      $region45: #{bottleneck_forward.1} parent=5 // pred_check
        %p278 = pneg %p277
      $region46: #{bottleneck_forward.1} parent=5 // pred_check_branch
        %280 = sbr.rel (%p278) target = $region48
      $region47: #{bottleneck_forward.1} parent=5 // pred_region
        // Predicated region
        $region49: #{bottleneck_forward.1} parent=47 // pred_check
          %p281 = pneg %p38
        $region50: #{bottleneck_forward.1} parent=47 // pred_check_branch
          %283 = sbr.rel (%p281) target = $region52
        $region51: #{bottleneck_forward.1} parent=47 // pred_region
          %p284 = scmp.lt.s32.totalorder %s18, 1
          %s285 = scalar_select %p284, %s18, 1
          %s286 = smul.addr %s285, 32
          %s287 = smul.addr %s286, 4
          %s288 = scalar_lea.vmem %s0, %s287
        $region52: #{bottleneck_forward.1} parent=47 // pred_fallthru
          _
      $region48: #{bottleneck_forward.1} parent=5 // pred_fallthru
        _
      %p289 = scmp.le.s32.totalorder 1, %s18
      %p290 = scmp.lt.s32.totalorder %s18, 3
      %p291 = pnand %p289, %p290
      %p292 = pneg %p291
      // Predicated region
      $region53: #{bottleneck_forward.1} parent=5 // pred_check
        _
      $region54: #{bottleneck_forward.1} parent=5 // pred_check_branch
        %294 = sbr.rel (%p291) target = $region56
      $region55: #{bottleneck_forward.1} parent=5 // pred_region
        %s295 = ssub.s32 %s18, 1
        %p296 = scmp.lt.s32.totalorder %s23, 1
        %s297 = scalar_select %p296, %s23, 1
        %s298 = smul.addr %s297, 32
        %s299 = smul.addr %s298, 4
        %s300 = scalar_lea.vmem %s0, %s299
        %p301 = pneg %p44
        %p302 = pneg %p41
        %p303 = pneg %p65
        %p304 = pneg %p62
        %p305 = pneg %p86
        %p306 = pneg %p83
        %p307 = pneg %p107
        %p308 = pneg %p104
        %p309 = pneg %p128
        %p310 = pneg %p125
        %p311 = pneg %p149
        %p312 = pneg %p146
        %p313 = pneg %p170
        %p314 = pneg %p167
        %p315 = pneg %p191
        %p316 = pneg %p188
        %p317 = pneg %p212
        %p318 = pneg %p209
        %p319 = pneg %p238
        %p320 = pneg %p235
        %s321 = sand.u32 %s225, 1
        %s322 = scalar_lea.sflag [#allocation4], %s321
        %s323 = sand.u32 %s225, 1
        %s324 = smul.addr %s323, 256
        %s325 = scalar_lea.vmem [#allocation3], %s324
        %p326 = scmp.lt.s32.totalorder %s23, 1
        %s327 = scalar_select %p326, %s23, 1
        %s328 = smul.addr %s327, 32
        %s329 = smul.addr %s328, 4
        %s330 = scalar_lea.vmem %s0, %s329
        %v332 = vld [vmem:[%s330] sm:$0xf]
        %v333 = vld [vmem:[%s330 + $0x4] sm:$0xf]
        %v334 = vld [vmem:[%s330 + $0x8] sm:$0xf]
        %v335 = vld [vmem:[%s330 + $0xc] sm:$0xf]
        %v336 = vld [vmem:[%s330 + $0x10] sm:$0xf]
        %v337 = vld [vmem:[%s330 + $0x14] sm:$0xf]
        %v338 = vld [vmem:[%s330 + $0x18] sm:$0xf]
        %v339 = vld [vmem:[%s330 + $0x1c] sm:$0xf]
        %v340 = vld [vmem:[%s330 + $0x20] sm:$0xf]
        %v341 = vld [vmem:[%s330 + $0x24] sm:$0xf]
        %v342 = vld [vmem:[%s330 + $0x28] sm:$0xf]
        %v343 = vld [vmem:[%s330 + $0x2c] sm:$0xf]
        %v344 = vld [vmem:[%s330 + $0x30] sm:$0xf]
        %v345 = vld [vmem:[%s330 + $0x34] sm:$0xf]
        %v346 = vld [vmem:[%s330 + $0x38] sm:$0xf]
        %v347 = vld [vmem:[%s330 + $0x3c] sm:$0xf]
        %v348 = vld [vmem:[%s330 + $0x40] sm:$0xf]
        %v349 = vld [vmem:[%s330 + $0x44] sm:$0xf]
        %v350 = vld [vmem:[%s330 + $0x48] sm:$0xf]
        %v351 = vld [vmem:[%s330 + $0x4c] sm:$0xf]
        %v352 = vld [vmem:[%s330 + $0x50] sm:$0xf]
        %v353 = vld [vmem:[%s330 + $0x54] sm:$0xf]
        %v354 = vld [vmem:[%s330 + $0x58] sm:$0xf]
        %v355 = vld [vmem:[%s330 + $0x5c] sm:$0xf]
        %v356 = vld [vmem:[%s330 + $0x60] sm:$0xf]
        %v357 = vld [vmem:[%s330 + $0x64] sm:$0xf]
        %v358 = vld [vmem:[%s330 + $0x68] sm:$0xf]
        %v359 = vld [vmem:[%s330 + $0x6c] sm:$0xf]
        %v360 = vld [vmem:[%s330 + $0x70] sm:$0xf]
        %v361 = vld [vmem:[%s330 + $0x74] sm:$0xf]
        %v362 = vld [vmem:[%s330 + $0x78] sm:$0xf]
        %v363 = vld [vmem:[%s330 + $0x7c] sm:$0xf]
        %v364 = vld [vmem:[%s1] sm:$0xf]
        %v365 = vld [vmem:[%s1 + $0x4] sm:$0xf]
        %v366 = vld [vmem:[%s1 + $0x8] sm:$0xf]
        %v367 = vld [vmem:[%s1 + $0xc] sm:$0xf]
        %v368 = vld [vmem:[%s1 + $0x10] sm:$0xf]
        %v369 = vld [vmem:[%s1 + $0x14] sm:$0xf]
        %v370 = vld [vmem:[%s1 + $0x18] sm:$0xf]
        %v371 = vld [vmem:[%s1 + $0x1c] sm:$0xf]
        %v372 = vld [vmem:[%s2] sm:$0x1]
        %v374 = vlaneseq
        %v375 = vshrl.u32 %v374, 7
        %v376 = vsub.s32 0, %v375
        %v377 = vrot.slane %v372, %v376
        %v411 = vunpack.c.l.b16 %v332
        %v412 = vunpack.c.l.b16 %v333
        %v413 = vunpack.c.l.b16 %v334
        %v414 = vunpack.c.l.b16 %v335
        %v415 = vunpack.c.l.b16 %v336
        %v416 = vunpack.c.l.b16 %v337
        %v417 = vunpack.c.l.b16 %v338
        %v418 = vunpack.c.l.b16 %v339
        %v419 = vunpack.c.l.b16 %v340
        %v420 = vunpack.c.l.b16 %v341
        %v421 = vunpack.c.l.b16 %v342
        %v422 = vunpack.c.l.b16 %v343
        %v423 = vunpack.c.l.b16 %v344
        %v424 = vunpack.c.l.b16 %v345
        %v425 = vunpack.c.l.b16 %v346
        %v426 = vunpack.c.l.b16 %v347
        %v427 = vunpack.c.l.b16 %v348
        %v428 = vunpack.c.l.b16 %v349
        %v429 = vunpack.c.l.b16 %v350
        %v430 = vunpack.c.l.b16 %v351
        %v431 = vunpack.c.l.b16 %v352
        %v432 = vunpack.c.l.b16 %v353
        %v433 = vunpack.c.l.b16 %v354
        %v434 = vunpack.c.l.b16 %v355
        %v435 = vunpack.c.l.b16 %v356
        %v436 = vunpack.c.l.b16 %v357
        %v437 = vunpack.c.l.b16 %v358
        %v438 = vunpack.c.l.b16 %v359
        %v439 = vunpack.c.l.b16 %v360
        %v440 = vunpack.c.l.b16 %v361
        %v441 = vunpack.c.l.b16 %v362
        %v442 = vunpack.c.l.b16 %v363
        %v443 = vpack.c.b16 %v412, %v411
        %v444 = vpack.c.b16 %v414, %v413
        %v445 = vpack.c.b16 %v416, %v415
        %v446 = vpack.c.b16 %v418, %v417
        %v447 = vpack.c.b16 %v420, %v419
        %v448 = vpack.c.b16 %v422, %v421
        %v449 = vpack.c.b16 %v424, %v423
        %v450 = vpack.c.b16 %v426, %v425
        %v451 = vpack.c.b16 %v428, %v427
        %v452 = vpack.c.b16 %v430, %v429
        %v453 = vpack.c.b16 %v432, %v431
        %v454 = vpack.c.b16 %v434, %v433
        %v455 = vpack.c.b16 %v436, %v435
        %v456 = vpack.c.b16 %v438, %v437
        %v457 = vpack.c.b16 %v440, %v439
        %v458 = vpack.c.b16 %v442, %v441
        %v467 = vunpack.c.l.b16 %v364
        %v468 = vunpack.c.l.b16 %v365
        %v469 = vunpack.c.l.b16 %v366
        %v470 = vunpack.c.l.b16 %v367
        %v471 = vunpack.c.l.b16 %v368
        %v472 = vunpack.c.l.b16 %v369
        %v473 = vunpack.c.l.b16 %v370
        %v474 = vunpack.c.l.b16 %v371
        %v475 = vpack.c.b16 %v468, %v467
        %v476 = vpack.c.b16 %v470, %v469
        %v477 = vpack.c.b16 %v472, %v471
        %v478 = vpack.c.b16 %v474, %v473
        %vm483 = vcmask 523264
        %v485 = vsel %vm483, %v443, 0
        %v488 = vsel %vm483, %v444, 0
        %v491 = vsel %vm483, %v445, 0
        %v494 = vsel %vm483, %v446, 0
        %v497 = vsel %vm483, %v447, 0
        %v500 = vsel %vm483, %v448, 0
        %v503 = vsel %vm483, %v449, 0
        %v506 = vsel %vm483, %v450, 0
        %v509 = vsel %vm483, %v451, 0
        %v512 = vsel %vm483, %v452, 0
        %v515 = vsel %vm483, %v453, 0
        %v518 = vsel %vm483, %v454, 0
        %v521 = vsel %vm483, %v455, 0
        %v524 = vsel %vm483, %v456, 0
        %v527 = vsel %vm483, %v457, 0
        %v530 = vsel %vm483, %v458, 0
        %532 = vmatprep.subr.bf16.mxu0 0
        %533 = vmatpush1.bf16.msra.mxu0 0
        %534 = vmatprep.subr.bf16.mxu0 0
        %535 = vmatpush1.bf16.msra.mxu0 0
        %536 = vmatprep.subr.bf16.mxu0 0
        %537 = vmatpush1.bf16.msra.mxu0 0
        %538 = vmatprep.subr.bf16.mxu0 0
        %539 = vmatpush1.bf16.msra.mxu0 0
        %540 = vmatprep.subr.bf16.mxu0 0
        %541 = vmatpush1.bf16.msra.mxu0 %v478
        %542 = vmatprep.subr.bf16.mxu0 0
        %543 = vmatpush1.bf16.msra.mxu0 %v477
        %544 = vmatprep.subr.bf16.mxu0 0
        %545 = vmatpush1.bf16.msra.mxu0 %v476
        %546 = vmatprep.subr.bf16.mxu0 0
        %547 = vmatpush1.bf16.msra.mxu0 %v475
        %548 = vmatprep.subr.bf16.mxu0 0
        %549 = vmatpush2.bf16.msra.mxu0 0
        %550 = vmatprep.subr.bf16.mxu0 0
        %551 = vmatpush2.bf16.msra.mxu0 0
        %552 = vmatprep.subr.bf16.mxu0 0
        %553 = vmatpush2.bf16.msra.mxu0 0
        %554 = vmatprep.subr.bf16.mxu0 0
        %555 = vmatpush2.bf16.msra.mxu0 0
        %556 = vmatprep.subr.bf16.mxu0 0
        %557 = vmatpush2.bf16.msra.mxu0 0
        %558 = vmatprep.subr.bf16.mxu0 0
        %559 = vmatpush2.bf16.msra.mxu0 0
        %560 = vmatprep.subr.bf16.mxu0 0
        %561 = vmatpush2.bf16.msra.mxu0 0
        %562 = vmatprep.subr.bf16.mxu0 0
        %563 = vmatpush2.bf16.msra.mxu0 0
        %564 = vmatprep.mubr.bf16.mxu0 0
        %565 = vmatmul.mubr.bf16.gmra.mxu0 %v485
        %v566 = vpop.f32.mrf.mxu0
        %v567 = vadd.f32 %v377, %v566
        %v568 = vpop.f32.mrf.mxu0
        %v569 = vpop.f32.mrf.mxu0
        %v570 = vadd.f32 %v377, %v569
        %v571 = vpop.f32.mrf.mxu0
        %572 = vmatprep.mubr.bf16.mxu0 0
        %573 = vmatmul.mubr.bf16.gmra.mxu0 %v488
        %v574 = vpop.f32.mrf.mxu0
        %v575 = vadd.f32 %v377, %v574
        %v576 = vpop.f32.mrf.mxu0
        %v577 = vpop.f32.mrf.mxu0
        %v578 = vadd.f32 %v377, %v577
        %v579 = vpop.f32.mrf.mxu0
        %580 = vmatprep.mubr.bf16.mxu0 0
        %581 = vmatmul.mubr.bf16.gmra.mxu0 %v491
        %v582 = vpop.f32.mrf.mxu0
        %v583 = vadd.f32 %v377, %v582
        %v584 = vpop.f32.mrf.mxu0
        %v585 = vpop.f32.mrf.mxu0
        %v586 = vadd.f32 %v377, %v585
        %v587 = vpop.f32.mrf.mxu0
        %588 = vmatprep.mubr.bf16.mxu0 0
        %589 = vmatmul.mubr.bf16.gmra.mxu0 %v494
        %v590 = vpop.f32.mrf.mxu0
        %v591 = vadd.f32 %v377, %v590
        %v592 = vpop.f32.mrf.mxu0
        %v593 = vpop.f32.mrf.mxu0
        %v594 = vadd.f32 %v377, %v593
        %v595 = vpop.f32.mrf.mxu0
        %596 = vmatprep.mubr.bf16.mxu0 0
        %597 = vmatmul.mubr.bf16.gmra.mxu0 %v497
        %v598 = vpop.f32.mrf.mxu0
        %v599 = vadd.f32 %v377, %v598
        %v600 = vpop.f32.mrf.mxu0
        %v601 = vpop.f32.mrf.mxu0
        %v602 = vadd.f32 %v377, %v601
        %v603 = vpop.f32.mrf.mxu0
        %604 = vmatprep.mubr.bf16.mxu0 0
        %605 = vmatmul.mubr.bf16.gmra.mxu0 %v500
        %v606 = vpop.f32.mrf.mxu0
        %v607 = vadd.f32 %v377, %v606
        %v608 = vpop.f32.mrf.mxu0
        %v609 = vpop.f32.mrf.mxu0
        %v610 = vadd.f32 %v377, %v609
        %v611 = vpop.f32.mrf.mxu0
        %612 = vmatprep.mubr.bf16.mxu0 0
        %613 = vmatmul.mubr.bf16.gmra.mxu0 %v503
        %v614 = vpop.f32.mrf.mxu0
        %v615 = vadd.f32 %v377, %v614
        %v616 = vpop.f32.mrf.mxu0
        %v617 = vpop.f32.mrf.mxu0
        %v618 = vadd.f32 %v377, %v617
        %v619 = vpop.f32.mrf.mxu0
        %620 = vmatprep.mubr.bf16.mxu0 0
        %621 = vmatmul.mubr.bf16.gmra.mxu0 %v506
        %v622 = vpop.f32.mrf.mxu0
        %v623 = vadd.f32 %v377, %v622
        %v624 = vpop.f32.mrf.mxu0
        %v625 = vpop.f32.mrf.mxu0
        %v626 = vadd.f32 %v377, %v625
        %v627 = vpop.f32.mrf.mxu0
        %628 = vmatprep.mubr.bf16.mxu0 0
        %629 = vmatmul.mubr.bf16.gmra.mxu0 %v509
        %v630 = vpop.f32.mrf.mxu0
        %v631 = vadd.f32 %v377, %v630
        %v632 = vpop.f32.mrf.mxu0
        %v633 = vpop.f32.mrf.mxu0
        %v634 = vadd.f32 %v377, %v633
        %v635 = vpop.f32.mrf.mxu0
        %636 = vmatprep.mubr.bf16.mxu0 0
        %637 = vmatmul.mubr.bf16.gmra.mxu0 %v512
        %v638 = vpop.f32.mrf.mxu0
        %v639 = vadd.f32 %v377, %v638
        %v640 = vpop.f32.mrf.mxu0
        %v641 = vpop.f32.mrf.mxu0
        %v642 = vadd.f32 %v377, %v641
        %v643 = vpop.f32.mrf.mxu0
        %644 = vmatprep.mubr.bf16.mxu0 0
        %645 = vmatmul.mubr.bf16.gmra.mxu0 %v515
        %v646 = vpop.f32.mrf.mxu0
        %v647 = vadd.f32 %v377, %v646
        %v648 = vpop.f32.mrf.mxu0
        %v649 = vpop.f32.mrf.mxu0
        %v650 = vadd.f32 %v377, %v649
        %v651 = vpop.f32.mrf.mxu0
        %652 = vmatprep.mubr.bf16.mxu0 0
        %653 = vmatmul.mubr.bf16.gmra.mxu0 %v518
        %v654 = vpop.f32.mrf.mxu0
        %v655 = vadd.f32 %v377, %v654
        %v656 = vpop.f32.mrf.mxu0
        %v657 = vpop.f32.mrf.mxu0
        %v658 = vadd.f32 %v377, %v657
        %v659 = vpop.f32.mrf.mxu0
        %660 = vmatprep.mubr.bf16.mxu0 0
        %661 = vmatmul.mubr.bf16.gmra.mxu0 %v521
        %v662 = vpop.f32.mrf.mxu0
        %v663 = vadd.f32 %v377, %v662
        %v664 = vpop.f32.mrf.mxu0
        %v665 = vpop.f32.mrf.mxu0
        %v666 = vadd.f32 %v377, %v665
        %v667 = vpop.f32.mrf.mxu0
        %668 = vmatprep.mubr.bf16.mxu0 0
        %669 = vmatmul.mubr.bf16.gmra.mxu0 %v524
        %v670 = vpop.f32.mrf.mxu0
        %v671 = vadd.f32 %v377, %v670
        %v672 = vpop.f32.mrf.mxu0
        %v673 = vpop.f32.mrf.mxu0
        %v674 = vadd.f32 %v377, %v673
        %v675 = vpop.f32.mrf.mxu0
        %676 = vmatprep.mubr.bf16.mxu0 0
        %677 = vmatmul.mubr.bf16.gmra.mxu0 %v527
        %v678 = vpop.f32.mrf.mxu0
        %v679 = vadd.f32 %v377, %v678
        %v680 = vpop.f32.mrf.mxu0
        %v681 = vpop.f32.mrf.mxu0
        %v682 = vadd.f32 %v377, %v681
        %v683 = vpop.f32.mrf.mxu0
        %684 = vmatprep.mubr.bf16.mxu0 0
        %685 = vmatmul.mubr.bf16.gmra.mxu0 %v530
        %v686 = vpop.f32.mrf.mxu0
        %v687 = vadd.f32 %v377, %v686
        %v688 = vpop.f32.mrf.mxu0
        %v689 = vpop.f32.mrf.mxu0
        %v690 = vadd.f32 %v377, %v689
        %v691 = vpop.f32.mrf.mxu0
        %692 = vdwg.mxu0
        %v693 = vmax.f32 %v567, 0.0
        %v694 = vmax.f32 %v570, 0.0
        %v695 = vmax.f32 %v575, 0.0
        %v696 = vmax.f32 %v578, 0.0
        %v697 = vmax.f32 %v583, 0.0
        %v698 = vmax.f32 %v586, 0.0
        %v699 = vmax.f32 %v591, 0.0
        %v700 = vmax.f32 %v594, 0.0
        %v701 = vmax.f32 %v599, 0.0
        %v702 = vmax.f32 %v602, 0.0
        %v703 = vmax.f32 %v607, 0.0
        %v704 = vmax.f32 %v610, 0.0
        %v705 = vmax.f32 %v615, 0.0
        %v706 = vmax.f32 %v618, 0.0
        %v707 = vmax.f32 %v623, 0.0
        %v708 = vmax.f32 %v626, 0.0
        %v709 = vmax.f32 %v631, 0.0
        %v710 = vmax.f32 %v634, 0.0
        %v711 = vmax.f32 %v639, 0.0
        %v712 = vmax.f32 %v642, 0.0
        %v713 = vmax.f32 %v647, 0.0
        %v714 = vmax.f32 %v650, 0.0
        %v715 = vmax.f32 %v655, 0.0
        %v716 = vmax.f32 %v658, 0.0
        %v717 = vmax.f32 %v663, 0.0
        %v718 = vmax.f32 %v666, 0.0
        %v719 = vmax.f32 %v671, 0.0
        %v720 = vmax.f32 %v674, 0.0
        %v721 = vmax.f32 %v679, 0.0
        %v722 = vmax.f32 %v682, 0.0
        %v723 = vmax.f32 %v687, 0.0
        %v724 = vmax.f32 %v690, 0.0
        %v725 = vpack.c.bf16 %v694, %v693
        %v726 = vpack.c.bf16 %v696, %v695
        %v727 = vpack.c.bf16 %v698, %v697
        %v728 = vpack.c.bf16 %v700, %v699
        %v729 = vpack.c.bf16 %v702, %v701
        %v730 = vpack.c.bf16 %v704, %v703
        %v731 = vpack.c.bf16 %v706, %v705
        %v732 = vpack.c.bf16 %v708, %v707
        %v733 = vpack.c.bf16 %v710, %v709
        %v734 = vpack.c.bf16 %v712, %v711
        %v735 = vpack.c.bf16 %v714, %v713
        %v736 = vpack.c.bf16 %v716, %v715
        %v737 = vpack.c.bf16 %v718, %v717
        %v738 = vpack.c.bf16 %v720, %v719
        %v739 = vpack.c.bf16 %v722, %v721
        %v740 = vpack.c.bf16 %v724, %v723
        %vm741 = vcmask 257024
        %742 = vst.msk [vmem:[#allocation2] sm:$0xf] %vm741, 0
        %743 = vst.msk [vmem:[#allocation2 + $0x4] sm:$0xf] %vm741, 0
        %744 = vst.msk [vmem:[#allocation2 + $0x8] sm:$0xf] %vm741, 0
        %745 = vst.msk [vmem:[#allocation2 + $0xc] sm:$0xf] %vm741, 0
        %746 = vst.msk [vmem:[#allocation2 + $0x10] sm:$0xf] %vm741, 0
        %747 = vst.msk [vmem:[#allocation2 + $0x14] sm:$0xf] %vm741, 0
        %748 = vst.msk [vmem:[#allocation2 + $0x18] sm:$0xf] %vm741, 0
        %749 = vst.msk [vmem:[#allocation2 + $0x1c] sm:$0xf] %vm741, 0
        %750 = vst.msk [vmem:[#allocation2 + $0x20] sm:$0xf] %vm741, 0
        %751 = vst.msk [vmem:[#allocation2 + $0x24] sm:$0xf] %vm741, 0
        %752 = vst.msk [vmem:[#allocation2 + $0x28] sm:$0xf] %vm741, 0
        %753 = vst.msk [vmem:[#allocation2 + $0x2c] sm:$0xf] %vm741, 0
        %754 = vst.msk [vmem:[#allocation2 + $0x30] sm:$0xf] %vm741, 0
        %755 = vst.msk [vmem:[#allocation2 + $0x34] sm:$0xf] %vm741, 0
        %756 = vst.msk [vmem:[#allocation2 + $0x38] sm:$0xf] %vm741, 0
        %757 = vst.msk [vmem:[#allocation2 + $0x3c] sm:$0xf] %vm741, 0
        %758 = vst.msk [vmem:[#allocation2 + $0x40] sm:$0xf] %vm741, 0
        %759 = vst.msk [vmem:[#allocation2 + $0x44] sm:$0xf] %vm741, 0
        %760 = vst.msk [vmem:[#allocation2 + $0x48] sm:$0xf] %vm741, 0
        %761 = vst.msk [vmem:[#allocation2 + $0x4c] sm:$0xf] %vm741, 0
        %762 = vst.msk [vmem:[#allocation2 + $0x50] sm:$0xf] %vm741, 0
        %763 = vst.msk [vmem:[#allocation2 + $0x54] sm:$0xf] %vm741, 0
        %764 = vst.msk [vmem:[#allocation2 + $0x58] sm:$0xf] %vm741, 0
        %765 = vst.msk [vmem:[#allocation2 + $0x5c] sm:$0xf] %vm741, 0
        %766 = vst.msk [vmem:[#allocation2 + $0x60] sm:$0xf] %vm741, 0
        %767 = vst.msk [vmem:[#allocation2 + $0x64] sm:$0xf] %vm741, 0
        %768 = vst.msk [vmem:[#allocation2 + $0x68] sm:$0xf] %vm741, 0
        %769 = vst.msk [vmem:[#allocation2 + $0x6c] sm:$0xf] %vm741, 0
        %770 = vst.msk [vmem:[#allocation2 + $0x70] sm:$0xf] %vm741, 0
        %771 = vst.msk [vmem:[#allocation2 + $0x74] sm:$0xf] %vm741, 0
        %772 = vst.msk [vmem:[#allocation2 + $0x78] sm:$0xf] %vm741, 0
        %773 = vst.msk [vmem:[#allocation2 + $0x7c] sm:$0xf] %vm741, 0
        %774 = vst.msk [vmem:[#allocation2 + $0x80] sm:$0xf] %vm741, 0
        %775 = vst.msk [vmem:[#allocation2 + $0x84] sm:$0xf] %vm741, 0
        %776 = vst.msk [vmem:[#allocation2 + $0x88] sm:$0xf] %vm741, 0
        %777 = vst.msk [vmem:[#allocation2 + $0x8c] sm:$0xf] %vm741, 0
        %778 = vst.msk [vmem:[#allocation2 + $0x90] sm:$0xf] %vm741, 0
        %779 = vst.msk [vmem:[#allocation2 + $0x94] sm:$0xf] %vm741, 0
        %780 = vst.msk [vmem:[#allocation2 + $0x98] sm:$0xf] %vm741, 0
        %781 = vst.msk [vmem:[#allocation2 + $0x9c] sm:$0xf] %vm741, 0
        %782 = vst.msk [vmem:[#allocation2 + $0xa0] sm:$0xf] %vm741, 0
        %783 = vst.msk [vmem:[#allocation2 + $0xa4] sm:$0xf] %vm741, 0
        %784 = vst.msk [vmem:[#allocation2 + $0xa8] sm:$0xf] %vm741, 0
        %785 = vst.msk [vmem:[#allocation2 + $0xac] sm:$0xf] %vm741, 0
        %786 = vst.msk [vmem:[#allocation2 + $0xb0] sm:$0xf] %vm741, 0
        %787 = vst.msk [vmem:[#allocation2 + $0xb4] sm:$0xf] %vm741, 0
        %788 = vst.msk [vmem:[#allocation2 + $0xb8] sm:$0xf] %vm741, 0
        %789 = vst.msk [vmem:[#allocation2 + $0xbc] sm:$0xf] %vm741, 0
        %790 = vst.msk [vmem:[#allocation2 + $0xc0] sm:$0xf] %vm741, 0
        %791 = vst.msk [vmem:[#allocation2 + $0xc4] sm:$0xf] %vm741, 0
        %792 = vst.msk [vmem:[#allocation2 + $0xc8] sm:$0xf] %vm741, 0
        %793 = vst.msk [vmem:[#allocation2 + $0xcc] sm:$0xf] %vm741, 0
        %794 = vst.msk [vmem:[#allocation2 + $0xd0] sm:$0xf] %vm741, 0
        %795 = vst.msk [vmem:[#allocation2 + $0xd4] sm:$0xf] %vm741, 0
        %v812 = vunpack.c.l.b16 %v725
        %v813 = vunpack.c.h.b16 %v725
        %v814 = vunpack.c.l.b16 %v726
        %v815 = vunpack.c.h.b16 %v726
        %v816 = vunpack.c.l.b16 %v727
        %v817 = vunpack.c.h.b16 %v727
        %v818 = vunpack.c.l.b16 %v728
        %v819 = vunpack.c.h.b16 %v728
        %v820 = vunpack.c.l.b16 %v729
        %v821 = vunpack.c.h.b16 %v729
        %v822 = vunpack.c.l.b16 %v730
        %v823 = vunpack.c.h.b16 %v730
        %v824 = vunpack.c.l.b16 %v731
        %v825 = vunpack.c.h.b16 %v731
        %v826 = vunpack.c.l.b16 %v732
        %v827 = vunpack.c.h.b16 %v732
        %v828 = vunpack.c.l.b16 %v733
        %v829 = vunpack.c.h.b16 %v733
        %v830 = vunpack.c.l.b16 %v734
        %v831 = vunpack.c.h.b16 %v734
        %v832 = vunpack.c.l.b16 %v735
        %v833 = vunpack.c.h.b16 %v735
        %v834 = vunpack.c.l.b16 %v736
        %v835 = vunpack.c.h.b16 %v736
        %v836 = vunpack.c.l.b16 %v737
        %v837 = vunpack.c.h.b16 %v737
        %v838 = vunpack.c.l.b16 %v738
        %v839 = vunpack.c.h.b16 %v738
        %v840 = vunpack.c.l.b16 %v739
        %v841 = vunpack.c.h.b16 %v739
        %v842 = vunpack.c.l.b16 %v740
        %v843 = vunpack.c.h.b16 %v740
        %v844 = vpack.c.b16 %v812, %v812
        %v845 = vpack.c.b16 %v813, %v813
        %v846 = vpack.c.b16 %v814, %v814
        %v847 = vpack.c.b16 %v815, %v815
        %v848 = vpack.c.b16 %v816, %v816
        %v849 = vpack.c.b16 %v817, %v817
        %v850 = vpack.c.b16 %v818, %v818
        %v851 = vpack.c.b16 %v819, %v819
        %v852 = vpack.c.b16 %v820, %v820
        %v853 = vpack.c.b16 %v821, %v821
        %v854 = vpack.c.b16 %v822, %v822
        %v855 = vpack.c.b16 %v823, %v823
        %v856 = vpack.c.b16 %v824, %v824
        %v857 = vpack.c.b16 %v825, %v825
        %v858 = vpack.c.b16 %v826, %v826
        %v859 = vpack.c.b16 %v827, %v827
        %v860 = vpack.c.b16 %v828, %v828
        %v861 = vpack.c.b16 %v829, %v829
        %v862 = vpack.c.b16 %v830, %v830
        %v863 = vpack.c.b16 %v831, %v831
        %v864 = vpack.c.b16 %v832, %v832
        %v865 = vpack.c.b16 %v833, %v833
        %v866 = vpack.c.b16 %v834, %v834
        %v867 = vpack.c.b16 %v835, %v835
        %v868 = vpack.c.b16 %v836, %v836
        %v869 = vpack.c.b16 %v837, %v837
        %v870 = vpack.c.b16 %v838, %v838
        %v871 = vpack.c.b16 %v839, %v839
        %v872 = vpack.c.b16 %v840, %v840
        %v873 = vpack.c.b16 %v841, %v841
        %v874 = vpack.c.b16 %v842, %v842
        %v875 = vpack.c.b16 %v843, %v843
        %s908 = scalar_lea.vmem [#allocation2], 12
        %909 = vst.msk [vmem:[%s908] sm:$0xf] %vm741, %v844
        %910 = vst.msk [vmem:[%s908 + $0x4] sm:$0xf] %vm741, %v845
        %911 = vst.msk [vmem:[%s908 + $0xc] sm:$0xf] %vm741, %v846
        %912 = vst.msk [vmem:[%s908 + $0x10] sm:$0xf] %vm741, %v847
        %913 = vst.msk [vmem:[%s908 + $0x18] sm:$0xf] %vm741, %v848
        %914 = vst.msk [vmem:[%s908 + $0x1c] sm:$0xf] %vm741, %v849
        %915 = vst.msk [vmem:[%s908 + $0x24] sm:$0xf] %vm741, %v850
        %916 = vst.msk [vmem:[%s908 + $0x28] sm:$0xf] %vm741, %v851
        %917 = vst.msk [vmem:[%s908 + $0x30] sm:$0xf] %vm741, %v852
        %918 = vst.msk [vmem:[%s908 + $0x34] sm:$0xf] %vm741, %v853
        %919 = vst.msk [vmem:[%s908 + $0x3c] sm:$0xf] %vm741, %v854
        %920 = vst.msk [vmem:[%s908 + $0x40] sm:$0xf] %vm741, %v855
        %921 = vst.msk [vmem:[%s908 + $0x48] sm:$0xf] %vm741, %v856
        %922 = vst.msk [vmem:[%s908 + $0x4c] sm:$0xf] %vm741, %v857
        %923 = vst.msk [vmem:[%s908 + $0x54] sm:$0xf] %vm741, %v858
        %924 = vst.msk [vmem:[%s908 + $0x58] sm:$0xf] %vm741, %v859
        %925 = vst.msk [vmem:[%s908 + $0x60] sm:$0xf] %vm741, %v860
        %926 = vst.msk [vmem:[%s908 + $0x64] sm:$0xf] %vm741, %v861
        %927 = vst.msk [vmem:[%s908 + $0x6c] sm:$0xf] %vm741, %v862
        %928 = vst.msk [vmem:[%s908 + $0x70] sm:$0xf] %vm741, %v863
        %929 = vst.msk [vmem:[%s908 + $0x78] sm:$0xf] %vm741, %v864
        %930 = vst.msk [vmem:[%s908 + $0x7c] sm:$0xf] %vm741, %v865
        %931 = vst.msk [vmem:[%s908 + $0x84] sm:$0xf] %vm741, %v866
        %932 = vst.msk [vmem:[%s908 + $0x88] sm:$0xf] %vm741, %v867
        %933 = vst.msk [vmem:[%s908 + $0x90] sm:$0xf] %vm741, %v868
        %934 = vst.msk [vmem:[%s908 + $0x94] sm:$0xf] %vm741, %v869
        %935 = vst.msk [vmem:[%s908 + $0x9c] sm:$0xf] %vm741, %v870
        %936 = vst.msk [vmem:[%s908 + $0xa0] sm:$0xf] %vm741, %v871
        %937 = vst.msk [vmem:[%s908 + $0xa8] sm:$0xf] %vm741, %v872
        %938 = vst.msk [vmem:[%s908 + $0xac] sm:$0xf] %vm741, %v873
        %939 = vst.msk [vmem:[%s908 + $0xb4] sm:$0xf] %vm741, %v874
        %940 = vst.msk [vmem:[%s908 + $0xb8] sm:$0xf] %vm741, %v875
        %v941 = vld [vmem:[%s4] sm:$0x1]
        %v943 = vlaneseq
        %v944 = vshrl.u32 %v943, 7
        %v945 = vsub.s32 0, %v944
        %v946 = vrot.slane %v941, %v945
        %v948 = vadd.f32 %v946, 0.0
        %v949 = vld [vmem:[#allocation2] sm:$0xf]
        %v950 = vld [vmem:[#allocation2 + $0x4] sm:$0xf]
        %v951 = vld [vmem:[#allocation2 + $0x8] sm:$0xf]
        %v952 = vld [vmem:[#allocation2 + $0xc] sm:$0xf]
        %v953 = vld [vmem:[#allocation2 + $0x10] sm:$0xf]
        %v954 = vld [vmem:[#allocation2 + $0x14] sm:$0xf]
        %v955 = vld [vmem:[#allocation2 + $0x18] sm:$0xf]
        %v956 = vld [vmem:[#allocation2 + $0x1c] sm:$0xf]
        %v957 = vld [vmem:[#allocation2 + $0x20] sm:$0xf]
        %v958 = vld [vmem:[#allocation2 + $0x24] sm:$0xf]
        %v959 = vld [vmem:[#allocation2 + $0x28] sm:$0xf]
        %v960 = vld [vmem:[#allocation2 + $0x2c] sm:$0xf]
        %v961 = vld [vmem:[#allocation2 + $0x30] sm:$0xf]
        %v962 = vld [vmem:[#allocation2 + $0x34] sm:$0xf]
        %v963 = vld [vmem:[#allocation2 + $0x38] sm:$0xf]
        %v964 = vld [vmem:[#allocation2 + $0x3c] sm:$0xf]
        %v965 = vld [vmem:[#allocation2 + $0x40] sm:$0xf]
        %v966 = vld [vmem:[#allocation2 + $0x44] sm:$0xf]
        %v967 = vld [vmem:[#allocation2 + $0x48] sm:$0xf]
        %v968 = vld [vmem:[#allocation2 + $0x4c] sm:$0xf]
        %v969 = vld [vmem:[#allocation2 + $0x50] sm:$0xf]
        %v970 = vld [vmem:[#allocation2 + $0x54] sm:$0xf]
        %v971 = vld [vmem:[#allocation2 + $0x58] sm:$0xf]
        %v972 = vld [vmem:[#allocation2 + $0x5c] sm:$0xf]
        %v973 = vld [vmem:[#allocation2 + $0x60] sm:$0xf]
        %v974 = vld [vmem:[#allocation2 + $0x64] sm:$0xf]
        %v975 = vld [vmem:[#allocation2 + $0x68] sm:$0xf]
        %v976 = vld [vmem:[#allocation2 + $0x6c] sm:$0xf]
        %v977 = vld [vmem:[#allocation2 + $0x70] sm:$0xf]
        %v978 = vld [vmem:[#allocation2 + $0x74] sm:$0xf]
        %v979 = vld [vmem:[#allocation2 + $0x78] sm:$0xf]
        %v980 = vld [vmem:[#allocation2 + $0x7c] sm:$0xf]
        %v981 = vld [vmem:[#allocation2 + $0x80] sm:$0xf]
        %v982 = vld [vmem:[#allocation2 + $0x84] sm:$0xf]
        %v983 = vld [vmem:[#allocation2 + $0x88] sm:$0xf]
        %v984 = vld [vmem:[#allocation2 + $0x8c] sm:$0xf]
        %v985 = vld [vmem:[#allocation2 + $0x90] sm:$0xf]
        %v986 = vld [vmem:[#allocation2 + $0x94] sm:$0xf]
        %v987 = vld [vmem:[#allocation2 + $0x98] sm:$0xf]
        %v988 = vld [vmem:[#allocation2 + $0x9c] sm:$0xf]
        %v989 = vld [vmem:[#allocation2 + $0xa0] sm:$0xf]
        %v990 = vld [vmem:[#allocation2 + $0xa4] sm:$0xf]
        %v991 = vld [vmem:[#allocation2 + $0xa8] sm:$0xf]
        %v992 = vld [vmem:[#allocation2 + $0xac] sm:$0xf]
        %v993 = vld [vmem:[#allocation2 + $0xb0] sm:$0xf]
        %v994 = vld [vmem:[#allocation2 + $0xb4] sm:$0xf]
        %v995 = vld [vmem:[#allocation2 + $0xb8] sm:$0xf]
        %v996 = vld [vmem:[#allocation2 + $0xbc] sm:$0xf]
        %v997 = vld [vmem:[#allocation2 + $0xc0] sm:$0xf]
        %v998 = vld [vmem:[#allocation2 + $0xc4] sm:$0xf]
        %v999 = vld [vmem:[#allocation2 + $0xc8] sm:$0xf]
        %v1000 = vld [vmem:[#allocation2 + $0xcc] sm:$0xf]
        %v1001 = vld [vmem:[#allocation2 + $0xd0] sm:$0xf]
        %v1002 = vld [vmem:[#allocation2 + $0xd4] sm:$0xf]
        %v1003 = vunpack.c.l.bf16 %v949
        %v1004 = vunpack.c.l.bf16 %v950
        %v1005 = vunpack.c.l.bf16 %v951
        %v1006 = vunpack.c.l.bf16 %v952
        %v1007 = vunpack.c.l.bf16 %v953
        %v1008 = vunpack.c.l.bf16 %v954
        %v1009 = vunpack.c.l.bf16 %v955
        %v1010 = vunpack.c.l.bf16 %v956
        %v1011 = vunpack.c.l.bf16 %v957
        %v1012 = vunpack.c.l.bf16 %v958
        %v1013 = vunpack.c.l.bf16 %v959
        %v1014 = vunpack.c.l.bf16 %v960
        %v1015 = vunpack.c.l.bf16 %v961
        %v1016 = vunpack.c.l.bf16 %v962
        %v1017 = vunpack.c.l.bf16 %v963
        %v1018 = vunpack.c.l.bf16 %v964
        %v1019 = vunpack.c.l.bf16 %v965
        %v1020 = vunpack.c.l.bf16 %v966
        %v1021 = vunpack.c.l.bf16 %v967
        %v1022 = vunpack.c.l.bf16 %v968
        %v1023 = vunpack.c.l.bf16 %v969
        %v1024 = vunpack.c.l.bf16 %v970
        %v1025 = vunpack.c.l.bf16 %v971
        %v1026 = vunpack.c.l.bf16 %v972
        %v1027 = vunpack.c.l.bf16 %v973
        %v1028 = vunpack.c.l.bf16 %v974
        %v1029 = vunpack.c.l.bf16 %v975
        %v1030 = vunpack.c.l.bf16 %v976
        %v1031 = vunpack.c.l.bf16 %v977
        %v1032 = vunpack.c.l.bf16 %v978
        %v1033 = vunpack.c.l.bf16 %v979
        %v1034 = vunpack.c.l.bf16 %v980
        %v1035 = vunpack.c.l.bf16 %v981
        %v1036 = vunpack.c.l.bf16 %v982
        %v1037 = vunpack.c.l.bf16 %v983
        %v1038 = vunpack.c.l.bf16 %v984
        %v1039 = vunpack.c.l.bf16 %v985
        %v1040 = vunpack.c.l.bf16 %v986
        %v1041 = vunpack.c.l.bf16 %v987
        %v1042 = vunpack.c.l.bf16 %v988
        %v1043 = vunpack.c.l.bf16 %v989
        %v1044 = vunpack.c.l.bf16 %v990
        %v1045 = vunpack.c.l.bf16 %v991
        %v1046 = vunpack.c.l.bf16 %v992
        %v1047 = vunpack.c.l.bf16 %v993
        %v1048 = vunpack.c.l.bf16 %v994
        %v1049 = vunpack.c.l.bf16 %v995
        %v1050 = vunpack.c.l.bf16 %v996
        %v1051 = vunpack.c.l.bf16 %v997
        %v1052 = vunpack.c.l.bf16 %v998
        %v1053 = vunpack.c.l.bf16 %v999
        %v1054 = vunpack.c.l.bf16 %v1000
        %v1055 = vunpack.c.l.bf16 %v1001
        %v1056 = vunpack.c.l.bf16 %v1002
        %v1057 = vrot.slane %v1003, 7
        %v1058 = vrot.slane %v1006, 7
        %v1059 = vrot.slane %v1009, 7
        %v1060 = vrot.slane %v1012, 7
        %v1061 = vrot.slane %v1015, 7
        %v1062 = vrot.slane %v1018, 7
        %v1063 = vrot.slane %v1021, 7
        %v1064 = vrot.slane %v1024, 7
        %v1065 = vrot.slane %v1027, 7
        %v1066 = vrot.slane %v1030, 7
        %v1067 = vrot.slane %v1033, 7
        %v1068 = vrot.slane %v1036, 7
        %v1069 = vrot.slane %v1039, 7
        %v1070 = vrot.slane %v1042, 7
        %v1071 = vrot.slane %v1045, 7
        %v1072 = vrot.slane %v1048, 7
        %v1073 = vrot.slane %v1051, 7
        %v1074 = vrot.slane %v1054, 7
        %v1075 = vrot.slane %v1004, 7
        %v1076 = vrot.slane %v1007, 7
        %v1077 = vrot.slane %v1010, 7
        %v1078 = vrot.slane %v1013, 7
        %v1079 = vrot.slane %v1016, 7
        %v1080 = vrot.slane %v1019, 7
        %v1081 = vrot.slane %v1022, 7
        %v1082 = vrot.slane %v1025, 7
        %v1083 = vrot.slane %v1028, 7
        %v1084 = vrot.slane %v1031, 7
        %v1085 = vrot.slane %v1034, 7
        %v1086 = vrot.slane %v1037, 7
        %v1087 = vrot.slane %v1040, 7
        %v1088 = vrot.slane %v1043, 7
        %v1089 = vrot.slane %v1046, 7
        %v1090 = vrot.slane %v1049, 7
        %v1091 = vrot.slane %v1052, 7
        %v1092 = vrot.slane %v1055, 7
        %v1093 = vrot.slane %v1005, 7
        %v1094 = vrot.slane %v1008, 7
        %v1095 = vrot.slane %v1011, 7
        %v1096 = vrot.slane %v1014, 7
        %v1097 = vrot.slane %v1017, 7
        %v1098 = vrot.slane %v1020, 7
        %v1099 = vrot.slane %v1023, 7
        %v1100 = vrot.slane %v1026, 7
        %v1101 = vrot.slane %v1029, 7
        %v1102 = vrot.slane %v1032, 7
        %v1103 = vrot.slane %v1035, 7
        %v1104 = vrot.slane %v1038, 7
        %v1105 = vrot.slane %v1041, 7
        %v1106 = vrot.slane %v1044, 7
        %v1107 = vrot.slane %v1047, 7
        %v1108 = vrot.slane %v1050, 7
        %v1109 = vrot.slane %v1053, 7
        %v1110 = vrot.slane %v1056, 7
        %v1111 = vlaneseq
        %v1112 = vshrl.u32 %v1111, 7
        %vm1113 = vcmp.lt.s32.totalorder %v1112, 1
        %v1114 = vsel %vm1113, %v1075, %v1093
        %v1115 = vsel %vm1113, %v1076, %v1094
        %v1116 = vsel %vm1113, %v1077, %v1095
        %v1117 = vsel %vm1113, %v1078, %v1096
        %v1118 = vsel %vm1113, %v1079, %v1097
        %v1119 = vsel %vm1113, %v1080, %v1098
        %v1120 = vsel %vm1113, %v1081, %v1099
        %v1121 = vsel %vm1113, %v1082, %v1100
        %v1122 = vsel %vm1113, %v1083, %v1101
        %v1123 = vsel %vm1113, %v1084, %v1102
        %v1124 = vsel %vm1113, %v1085, %v1103
        %v1125 = vsel %vm1113, %v1086, %v1104
        %v1126 = vsel %vm1113, %v1087, %v1105
        %v1127 = vsel %vm1113, %v1088, %v1106
        %v1128 = vsel %vm1113, %v1089, %v1107
        %v1129 = vsel %vm1113, %v1090, %v1108
        %v1130 = vsel %vm1113, %v1091, %v1109
        %v1131 = vsel %vm1113, %v1092, %v1110
        %v1132 = vsel %vm1113, %v1057, %v1075
        %v1133 = vsel %vm1113, %v1058, %v1076
        %v1134 = vsel %vm1113, %v1059, %v1077
        %v1135 = vsel %vm1113, %v1060, %v1078
        %v1136 = vsel %vm1113, %v1061, %v1079
        %v1137 = vsel %vm1113, %v1062, %v1080
        %v1138 = vsel %vm1113, %v1063, %v1081
        %v1139 = vsel %vm1113, %v1064, %v1082
        %v1140 = vsel %vm1113, %v1065, %v1083
        %v1141 = vsel %vm1113, %v1066, %v1084
        %v1142 = vsel %vm1113, %v1067, %v1085
        %v1143 = vsel %vm1113, %v1068, %v1086
        %v1144 = vsel %vm1113, %v1069, %v1087
        %v1145 = vsel %vm1113, %v1070, %v1088
        %v1146 = vsel %vm1113, %v1071, %v1089
        %v1147 = vsel %vm1113, %v1072, %v1090
        %v1148 = vsel %vm1113, %v1073, %v1091
        %v1149 = vsel %vm1113, %v1074, %v1092
        %v1150 = vsel %vm1113, %v1093, %v1057
        %v1151 = vsel %vm1113, %v1094, %v1058
        %v1152 = vsel %vm1113, %v1095, %v1059
        %v1153 = vsel %vm1113, %v1096, %v1060
        %v1154 = vsel %vm1113, %v1097, %v1061
        %v1155 = vsel %vm1113, %v1098, %v1062
        %v1156 = vsel %vm1113, %v1099, %v1063
        %v1157 = vsel %vm1113, %v1100, %v1064
        %v1158 = vsel %vm1113, %v1101, %v1065
        %v1159 = vsel %vm1113, %v1102, %v1066
        %v1160 = vsel %vm1113, %v1103, %v1067
        %v1161 = vsel %vm1113, %v1104, %v1068
        %v1162 = vsel %vm1113, %v1105, %v1069
        %v1163 = vsel %vm1113, %v1106, %v1070
        %v1164 = vsel %vm1113, %v1107, %v1071
        %v1165 = vsel %vm1113, %v1108, %v1072
        %v1166 = vsel %vm1113, %v1109, %v1073
        %v1167 = vsel %vm1113, %v1110, %v1074
        %v1168 = vpack.c.bf16 %v1132, %v1150
        %v1169 = vpack.c.bf16 %v1114, %v1114
        %v1170 = vpack.c.bf16 %v1133, %v1151
        %v1171 = vpack.c.bf16 %v1115, %v1115
        %v1172 = vpack.c.bf16 %v1134, %v1152
        %v1173 = vpack.c.bf16 %v1116, %v1116
        %v1174 = vpack.c.bf16 %v1135, %v1153
        %v1175 = vpack.c.bf16 %v1117, %v1117
        %v1176 = vpack.c.bf16 %v1136, %v1154
        %v1177 = vpack.c.bf16 %v1118, %v1118
        %v1178 = vpack.c.bf16 %v1137, %v1155
        %v1179 = vpack.c.bf16 %v1119, %v1119
        %v1180 = vpack.c.bf16 %v1138, %v1156
        %v1181 = vpack.c.bf16 %v1120, %v1120
        %v1182 = vpack.c.bf16 %v1139, %v1157
        %v1183 = vpack.c.bf16 %v1121, %v1121
        %v1184 = vpack.c.bf16 %v1140, %v1158
        %v1185 = vpack.c.bf16 %v1122, %v1122
        %v1186 = vpack.c.bf16 %v1141, %v1159
        %v1187 = vpack.c.bf16 %v1123, %v1123
        %v1188 = vpack.c.bf16 %v1142, %v1160
        %v1189 = vpack.c.bf16 %v1124, %v1124
        %v1190 = vpack.c.bf16 %v1143, %v1161
        %v1191 = vpack.c.bf16 %v1125, %v1125
        %v1192 = vpack.c.bf16 %v1144, %v1162
        %v1193 = vpack.c.bf16 %v1126, %v1126
        %v1194 = vpack.c.bf16 %v1145, %v1163
        %v1195 = vpack.c.bf16 %v1127, %v1127
        %v1196 = vpack.c.bf16 %v1146, %v1164
        %v1197 = vpack.c.bf16 %v1128, %v1128
        %v1198 = vpack.c.bf16 %v1147, %v1165
        %v1199 = vpack.c.bf16 %v1129, %v1129
        %v1200 = vpack.c.bf16 %v1148, %v1166
        %v1201 = vpack.c.bf16 %v1130, %v1130
        %v1202 = vpack.c.bf16 %v1149, %v1167
        %v1203 = vpack.c.bf16 %v1131, %v1131
        %v1236 = vunpack.c.l.b16 %v1168
        %v1237 = vunpack.c.h.b16 %v1168
        %v1238 = vunpack.c.l.b16 %v1169
        %v1239 = vunpack.c.l.b16 %v1170
        %v1240 = vunpack.c.h.b16 %v1170
        %v1241 = vunpack.c.l.b16 %v1171
        %v1242 = vunpack.c.l.b16 %v1172
        %v1243 = vunpack.c.h.b16 %v1172
        %v1244 = vunpack.c.l.b16 %v1173
        %v1245 = vunpack.c.l.b16 %v1174
        %v1246 = vunpack.c.h.b16 %v1174
        %v1247 = vunpack.c.l.b16 %v1175
        %v1248 = vunpack.c.l.b16 %v1176
        %v1249 = vunpack.c.h.b16 %v1176
        %v1250 = vunpack.c.l.b16 %v1177
        %v1251 = vunpack.c.l.b16 %v1178
        %v1252 = vunpack.c.h.b16 %v1178
        %v1253 = vunpack.c.l.b16 %v1179
        %v1254 = vunpack.c.l.b16 %v1180
        %v1255 = vunpack.c.h.b16 %v1180
        %v1256 = vunpack.c.l.b16 %v1181
        %v1257 = vunpack.c.l.b16 %v1182
        %v1258 = vunpack.c.h.b16 %v1182
        %v1259 = vunpack.c.l.b16 %v1183
        %v1260 = vunpack.c.l.b16 %v1184
        %v1261 = vunpack.c.h.b16 %v1184
        %v1262 = vunpack.c.l.b16 %v1185
        %v1263 = vunpack.c.l.b16 %v1186
        %v1264 = vunpack.c.h.b16 %v1186
        %v1265 = vunpack.c.l.b16 %v1187
        %v1266 = vunpack.c.l.b16 %v1188
        %v1267 = vunpack.c.h.b16 %v1188
        %v1268 = vunpack.c.l.b16 %v1189
        %v1269 = vunpack.c.l.b16 %v1190
        %v1270 = vunpack.c.h.b16 %v1190
        %v1271 = vunpack.c.l.b16 %v1191
        %v1272 = vunpack.c.l.b16 %v1192
        %v1273 = vunpack.c.h.b16 %v1192
        %v1274 = vunpack.c.l.b16 %v1193
        %v1275 = vunpack.c.l.b16 %v1194
        %v1276 = vunpack.c.h.b16 %v1194
        %v1277 = vunpack.c.l.b16 %v1195
        %v1278 = vunpack.c.l.b16 %v1196
        %v1279 = vunpack.c.h.b16 %v1196
        %v1280 = vunpack.c.l.b16 %v1197
        %v1281 = vunpack.c.l.b16 %v1198
        %v1282 = vunpack.c.h.b16 %v1198
        %v1283 = vunpack.c.l.b16 %v1199
        %v1284 = vld [vmem:[%s3] sm:$0xf]
        %v1285 = vld [vmem:[%s3 + $0x4] sm:$0xf]
        %v1286 = vld [vmem:[%s3 + $0x8] sm:$0xf]
        %v1287 = vld [vmem:[%s3 + $0xc] sm:$0xf]
        %v1288 = vpack.c.b16 %v1237, %v1236
        %v1289 = vpack.c.b16 %v1239, %v1238
        %v1290 = vpack.c.b16 %v1241, %v1240
        %v1291 = vpack.c.b16 %v1243, %v1242
        %v1292 = vpack.c.b16 %v1245, %v1244
        %v1293 = vpack.c.b16 %v1247, %v1246
        %v1294 = vpack.c.b16 %v1249, %v1248
        %v1295 = vpack.c.b16 %v1251, %v1250
        %v1296 = vpack.c.b16 %v1253, %v1252
        %v1297 = vpack.c.b16 %v1255, %v1254
        %v1298 = vpack.c.b16 %v1257, %v1256
        %v1299 = vpack.c.b16 %v1259, %v1258
        %v1300 = vpack.c.b16 %v1261, %v1260
        %v1301 = vpack.c.b16 %v1263, %v1262
        %v1302 = vpack.c.b16 %v1265, %v1264
        %v1303 = vpack.c.b16 %v1267, %v1266
        %v1304 = vpack.c.b16 %v1269, %v1268
        %v1305 = vpack.c.b16 %v1271, %v1270
        %v1306 = vpack.c.b16 %v1273, %v1272
        %v1307 = vpack.c.b16 %v1275, %v1274
        %v1308 = vpack.c.b16 %v1277, %v1276
        %v1309 = vpack.c.b16 %v1279, %v1278
        %v1310 = vpack.c.b16 %v1281, %v1280
        %v1311 = vpack.c.b16 %v1283, %v1282
        %v1316 = vunpack.c.l.b16 %v1284
        %v1317 = vunpack.c.l.b16 %v1285
        %v1318 = vunpack.c.l.b16 %v1286
        %v1319 = vunpack.c.l.b16 %v1287
        %v1320 = vpack.c.b16 %v1317, %v1316
        %v1321 = vpack.c.b16 %v1319, %v1318
        %vm1324 = vcmask 261120
        %v1326 = vsel %vm1324, %v1288, 0
        %v1329 = vsel %vm1324, %v1289, 0
        %v1332 = vsel %vm1324, %v1290, 0
        %v1335 = vsel %vm1324, %v1291, 0
        %v1338 = vsel %vm1324, %v1292, 0
        %v1341 = vsel %vm1324, %v1293, 0
        %v1344 = vsel %vm1324, %v1294, 0
        %v1347 = vsel %vm1324, %v1295, 0
        %v1350 = vsel %vm1324, %v1296, 0
        %v1353 = vsel %vm1324, %v1297, 0
        %v1356 = vsel %vm1324, %v1298, 0
        %v1359 = vsel %vm1324, %v1299, 0
        %v1362 = vsel %vm1324, %v1300, 0
        %v1365 = vsel %vm1324, %v1301, 0
        %v1368 = vsel %vm1324, %v1302, 0
        %v1371 = vsel %vm1324, %v1303, 0
        %v1374 = vsel %vm1324, %v1304, 0
        %v1377 = vsel %vm1324, %v1305, 0
        %v1380 = vsel %vm1324, %v1306, 0
        %v1383 = vsel %vm1324, %v1307, 0
        %v1386 = vsel %vm1324, %v1308, 0
        %v1389 = vsel %vm1324, %v1309, 0
        %v1392 = vsel %vm1324, %v1310, 0
        %v1395 = vsel %vm1324, %v1311, 0
        %1397 = vmatprep.subr.bf16.mxu0 0
        %1398 = vmatpush1.bf16.msra.mxu0 0
        %1399 = vmatprep.subr.bf16.mxu0 0
        %1400 = vmatpush1.bf16.msra.mxu0 0
        %1401 = vmatprep.subr.bf16.mxu0 0
        %1402 = vmatpush1.bf16.msra.mxu0 0
        %1403 = vmatprep.subr.bf16.mxu0 0
        %1404 = vmatpush1.bf16.msra.mxu0 0
        %1405 = vmatprep.subr.bf16.mxu0 0
        %1406 = vmatpush1.bf16.msra.mxu0 0
        %1407 = vmatprep.subr.bf16.mxu0 0
        %1408 = vmatpush1.bf16.msra.mxu0 0
        %1409 = vmatprep.subr.bf16.mxu0 0
        %1410 = vmatpush1.bf16.msra.mxu0 %v1321
        %1411 = vmatprep.subr.bf16.mxu0 0
        %1412 = vmatpush1.bf16.msra.mxu0 %v1320
        %1413 = vmatprep.subr.bf16.mxu0 0
        %1414 = vmatpush2.bf16.msra.mxu0 0
        %1415 = vmatprep.subr.bf16.mxu0 0
        %1416 = vmatpush2.bf16.msra.mxu0 0
        %1417 = vmatprep.subr.bf16.mxu0 0
        %1418 = vmatpush2.bf16.msra.mxu0 0
        %1419 = vmatprep.subr.bf16.mxu0 0
        %1420 = vmatpush2.bf16.msra.mxu0 0
        %1421 = vmatprep.subr.bf16.mxu0 0
        %1422 = vmatpush2.bf16.msra.mxu0 0
        %1423 = vmatprep.subr.bf16.mxu0 0
        %1424 = vmatpush2.bf16.msra.mxu0 0
        %1425 = vmatprep.subr.bf16.mxu0 0
        %1426 = vmatpush2.bf16.msra.mxu0 0
        %1427 = vmatprep.subr.bf16.mxu0 0
        %1428 = vmatpush2.bf16.msra.mxu0 0
        %1429 = vmatprep.mubr.bf16.mxu0 0
        %1430 = vmatmul.mubr.bf16.gmra.mxu0 %v1326
        %v1431 = vpop.f32.mrf.mxu0
        %v1432 = vadd.f32 0.0, %v1431
        %v1433 = vpop.f32.mrf.mxu0
        %v1434 = vpop.f32.mrf.mxu0
        %v1435 = vadd.f32 0.0, %v1434
        %v1436 = vpop.f32.mrf.mxu0
        %1437 = vmatprep.mubr.bf16.mxu0 0
        %1438 = vmatmul.mubr.bf16.gmra.mxu0 %v1329
        %v1439 = vpop.f32.mrf.mxu0
        %v1440 = vadd.f32 0.0, %v1439
        %v1441 = vpop.f32.mrf.mxu0
        %v1442 = vpop.f32.mrf.mxu0
        %v1443 = vadd.f32 0.0, %v1442
        %v1444 = vpop.f32.mrf.mxu0
        %1445 = vmatprep.mubr.bf16.mxu0 0
        %1446 = vmatmul.mubr.bf16.gmra.mxu0 %v1332
        %v1447 = vpop.f32.mrf.mxu0
        %v1448 = vadd.f32 0.0, %v1447
        %v1449 = vpop.f32.mrf.mxu0
        %v1450 = vpop.f32.mrf.mxu0
        %v1451 = vadd.f32 0.0, %v1450
        %v1452 = vpop.f32.mrf.mxu0
        %1453 = vmatprep.mubr.bf16.mxu0 0
        %1454 = vmatmul.mubr.bf16.gmra.mxu0 %v1335
        %v1455 = vpop.f32.mrf.mxu0
        %v1456 = vadd.f32 0.0, %v1455
        %v1457 = vpop.f32.mrf.mxu0
        %v1458 = vpop.f32.mrf.mxu0
        %v1459 = vadd.f32 0.0, %v1458
        %v1460 = vpop.f32.mrf.mxu0
        %1461 = vmatprep.mubr.bf16.mxu0 0
        %1462 = vmatmul.mubr.bf16.gmra.mxu0 %v1338
        %v1463 = vpop.f32.mrf.mxu0
        %v1464 = vadd.f32 0.0, %v1463
        %v1465 = vpop.f32.mrf.mxu0
        %v1466 = vpop.f32.mrf.mxu0
        %v1467 = vadd.f32 0.0, %v1466
        %v1468 = vpop.f32.mrf.mxu0
        %1469 = vmatprep.mubr.bf16.mxu0 0
        %1470 = vmatmul.mubr.bf16.gmra.mxu0 %v1341
        %v1471 = vpop.f32.mrf.mxu0
        %v1472 = vadd.f32 0.0, %v1471
        %v1473 = vpop.f32.mrf.mxu0
        %v1474 = vpop.f32.mrf.mxu0
        %v1475 = vadd.f32 0.0, %v1474
        %v1476 = vpop.f32.mrf.mxu0
        %1477 = vmatprep.mubr.bf16.mxu0 0
        %1478 = vmatmul.mubr.bf16.gmra.mxu0 %v1344
        %v1479 = vpop.f32.mrf.mxu0
        %v1480 = vadd.f32 0.0, %v1479
        %v1481 = vpop.f32.mrf.mxu0
        %v1482 = vpop.f32.mrf.mxu0
        %v1483 = vadd.f32 0.0, %v1482
        %v1484 = vpop.f32.mrf.mxu0
        %1485 = vmatprep.mubr.bf16.mxu0 0
        %1486 = vmatmul.mubr.bf16.gmra.mxu0 %v1347
        %v1487 = vpop.f32.mrf.mxu0
        %v1488 = vadd.f32 0.0, %v1487
        %v1489 = vpop.f32.mrf.mxu0
        %v1490 = vpop.f32.mrf.mxu0
        %v1491 = vadd.f32 0.0, %v1490
        %v1492 = vpop.f32.mrf.mxu0
        %1493 = vmatprep.mubr.bf16.mxu0 0
        %1494 = vmatmul.mubr.bf16.gmra.mxu0 %v1350
        %v1495 = vpop.f32.mrf.mxu0
        %v1496 = vadd.f32 0.0, %v1495
        %v1497 = vpop.f32.mrf.mxu0
        %v1498 = vpop.f32.mrf.mxu0
        %v1499 = vadd.f32 0.0, %v1498
        %v1500 = vpop.f32.mrf.mxu0
        %1501 = vmatprep.mubr.bf16.mxu0 0
        %1502 = vmatmul.mubr.bf16.gmra.mxu0 %v1353
        %v1503 = vpop.f32.mrf.mxu0
        %v1504 = vadd.f32 0.0, %v1503
        %v1505 = vpop.f32.mrf.mxu0
        %v1506 = vpop.f32.mrf.mxu0
        %v1507 = vadd.f32 0.0, %v1506
        %v1508 = vpop.f32.mrf.mxu0
        %1509 = vmatprep.mubr.bf16.mxu0 0
        %1510 = vmatmul.mubr.bf16.gmra.mxu0 %v1356
        %v1511 = vpop.f32.mrf.mxu0
        %v1512 = vadd.f32 0.0, %v1511
        %v1513 = vpop.f32.mrf.mxu0
        %v1514 = vpop.f32.mrf.mxu0
        %v1515 = vadd.f32 0.0, %v1514
        %v1516 = vpop.f32.mrf.mxu0
        %1517 = vmatprep.mubr.bf16.mxu0 0
        %1518 = vmatmul.mubr.bf16.gmra.mxu0 %v1359
        %v1519 = vpop.f32.mrf.mxu0
        %v1520 = vadd.f32 0.0, %v1519
        %v1521 = vpop.f32.mrf.mxu0
        %v1522 = vpop.f32.mrf.mxu0
        %v1523 = vadd.f32 0.0, %v1522
        %v1524 = vpop.f32.mrf.mxu0
        %1525 = vmatprep.mubr.bf16.mxu0 0
        %1526 = vmatmul.mubr.bf16.gmra.mxu0 %v1362
        %v1527 = vpop.f32.mrf.mxu0
        %v1528 = vadd.f32 0.0, %v1527
        %v1529 = vpop.f32.mrf.mxu0
        %v1530 = vpop.f32.mrf.mxu0
        %v1531 = vadd.f32 0.0, %v1530
        %v1532 = vpop.f32.mrf.mxu0
        %1533 = vmatprep.mubr.bf16.mxu0 0
        %1534 = vmatmul.mubr.bf16.gmra.mxu0 %v1365
        %v1535 = vpop.f32.mrf.mxu0
        %v1536 = vadd.f32 0.0, %v1535
        %v1537 = vpop.f32.mrf.mxu0
        %v1538 = vpop.f32.mrf.mxu0
        %v1539 = vadd.f32 0.0, %v1538
        %v1540 = vpop.f32.mrf.mxu0
        %1541 = vmatprep.mubr.bf16.mxu0 0
        %1542 = vmatmul.mubr.bf16.gmra.mxu0 %v1368
        %v1543 = vpop.f32.mrf.mxu0
        %v1544 = vadd.f32 0.0, %v1543
        %v1545 = vpop.f32.mrf.mxu0
        %v1546 = vpop.f32.mrf.mxu0
        %v1547 = vadd.f32 0.0, %v1546
        %v1548 = vpop.f32.mrf.mxu0
        %1549 = vmatprep.mubr.bf16.mxu0 0
        %1550 = vmatmul.mubr.bf16.gmra.mxu0 %v1371
        %v1551 = vpop.f32.mrf.mxu0
        %v1552 = vadd.f32 0.0, %v1551
        %v1553 = vpop.f32.mrf.mxu0
        %v1554 = vpop.f32.mrf.mxu0
        %v1555 = vadd.f32 0.0, %v1554
        %v1556 = vpop.f32.mrf.mxu0
        %1557 = vmatprep.mubr.bf16.mxu0 0
        %1558 = vmatmul.mubr.bf16.gmra.mxu0 %v1374
        %v1559 = vpop.f32.mrf.mxu0
        %v1560 = vadd.f32 0.0, %v1559
        %v1561 = vpop.f32.mrf.mxu0
        %v1562 = vpop.f32.mrf.mxu0
        %v1563 = vadd.f32 0.0, %v1562
        %v1564 = vpop.f32.mrf.mxu0
        %1565 = vmatprep.mubr.bf16.mxu0 0
        %1566 = vmatmul.mubr.bf16.gmra.mxu0 %v1377
        %v1567 = vpop.f32.mrf.mxu0
        %v1568 = vadd.f32 0.0, %v1567
        %v1569 = vpop.f32.mrf.mxu0
        %v1570 = vpop.f32.mrf.mxu0
        %v1571 = vadd.f32 0.0, %v1570
        %v1572 = vpop.f32.mrf.mxu0
        %1573 = vmatprep.mubr.bf16.mxu0 0
        %1574 = vmatmul.mubr.bf16.gmra.mxu0 %v1380
        %v1575 = vpop.f32.mrf.mxu0
        %v1576 = vadd.f32 0.0, %v1575
        %v1577 = vpop.f32.mrf.mxu0
        %v1578 = vpop.f32.mrf.mxu0
        %v1579 = vadd.f32 0.0, %v1578
        %v1580 = vpop.f32.mrf.mxu0
        %1581 = vmatprep.mubr.bf16.mxu0 0
        %1582 = vmatmul.mubr.bf16.gmra.mxu0 %v1383
        %v1583 = vpop.f32.mrf.mxu0
        %v1584 = vadd.f32 0.0, %v1583
        %v1585 = vpop.f32.mrf.mxu0
        %v1586 = vpop.f32.mrf.mxu0
        %v1587 = vadd.f32 0.0, %v1586
        %v1588 = vpop.f32.mrf.mxu0
        %1589 = vmatprep.mubr.bf16.mxu0 0
        %1590 = vmatmul.mubr.bf16.gmra.mxu0 %v1386
        %v1591 = vpop.f32.mrf.mxu0
        %v1592 = vadd.f32 0.0, %v1591
        %v1593 = vpop.f32.mrf.mxu0
        %v1594 = vpop.f32.mrf.mxu0
        %v1595 = vadd.f32 0.0, %v1594
        %v1596 = vpop.f32.mrf.mxu0
        %1597 = vmatprep.mubr.bf16.mxu0 0
        %1598 = vmatmul.mubr.bf16.gmra.mxu0 %v1389
        %v1599 = vpop.f32.mrf.mxu0
        %v1600 = vadd.f32 0.0, %v1599
        %v1601 = vpop.f32.mrf.mxu0
        %v1602 = vpop.f32.mrf.mxu0
        %v1603 = vadd.f32 0.0, %v1602
        %v1604 = vpop.f32.mrf.mxu0
        %1605 = vmatprep.mubr.bf16.mxu0 0
        %1606 = vmatmul.mubr.bf16.gmra.mxu0 %v1392
        %v1607 = vpop.f32.mrf.mxu0
        %v1608 = vadd.f32 0.0, %v1607
        %v1609 = vpop.f32.mrf.mxu0
        %v1610 = vpop.f32.mrf.mxu0
        %v1611 = vadd.f32 0.0, %v1610
        %v1612 = vpop.f32.mrf.mxu0
        %1613 = vmatprep.mubr.bf16.mxu0 0
        %1614 = vmatmul.mubr.bf16.gmra.mxu0 %v1395
        %v1615 = vpop.f32.mrf.mxu0
        %v1616 = vadd.f32 0.0, %v1615
        %v1617 = vpop.f32.mrf.mxu0
        %v1618 = vpop.f32.mrf.mxu0
        %v1619 = vadd.f32 0.0, %v1618
        %v1620 = vpop.f32.mrf.mxu0
        %1621 = vdwg.mxu0
        %v1622 = vadd.f32 %v948, %v1432
        %v1623 = vadd.f32 %v948, %v1435
        %v1624 = vadd.f32 %v948, %v1440
        %v1625 = vadd.f32 %v948, %v1443
        %v1626 = vadd.f32 %v948, %v1448
        %v1627 = vadd.f32 %v948, %v1451
        %v1628 = vadd.f32 %v948, %v1456
        %v1629 = vadd.f32 %v948, %v1459
        %v1630 = vadd.f32 %v948, %v1464
        %v1631 = vadd.f32 %v948, %v1467
        %v1632 = vadd.f32 %v948, %v1472
        %v1633 = vadd.f32 %v948, %v1475
        %v1634 = vadd.f32 %v948, %v1480
        %v1635 = vadd.f32 %v948, %v1483
        %v1636 = vadd.f32 %v948, %v1488
        %v1637 = vadd.f32 %v948, %v1491
        %v1638 = vadd.f32 %v948, %v1496
        %v1639 = vadd.f32 %v948, %v1499
        %v1640 = vadd.f32 %v948, %v1504
        %v1641 = vadd.f32 %v948, %v1507
        %v1642 = vadd.f32 %v948, %v1512
        %v1643 = vadd.f32 %v948, %v1515
        %v1644 = vadd.f32 %v948, %v1520
        %v1645 = vadd.f32 %v948, %v1523
        %v1646 = vadd.f32 %v948, %v1528
        %v1647 = vadd.f32 %v948, %v1531
        %v1648 = vadd.f32 %v948, %v1536
        %v1649 = vadd.f32 %v948, %v1539
        %v1650 = vadd.f32 %v948, %v1544
        %v1651 = vadd.f32 %v948, %v1547
        %v1652 = vadd.f32 %v948, %v1552
        %v1653 = vadd.f32 %v948, %v1555
        %v1654 = vadd.f32 %v948, %v1560
        %v1655 = vadd.f32 %v948, %v1563
        %v1656 = vadd.f32 %v948, %v1568
        %v1657 = vadd.f32 %v948, %v1571
        %v1658 = vadd.f32 %v948, %v1576
        %v1659 = vadd.f32 %v948, %v1579
        %v1660 = vadd.f32 %v948, %v1584
        %v1661 = vadd.f32 %v948, %v1587
        %v1662 = vadd.f32 %v948, %v1592
        %v1663 = vadd.f32 %v948, %v1595
        %v1664 = vadd.f32 %v948, %v1600
        %v1665 = vadd.f32 %v948, %v1603
        %v1666 = vadd.f32 %v948, %v1608
        %v1667 = vadd.f32 %v948, %v1611
        %v1668 = vadd.f32 %v948, %v1616
        %v1669 = vadd.f32 %v948, %v1619
        %s1670 = scalar_lea.vmem %s3, 16
        %v1671 = vld [vmem:[%s1670] sm:$0xf]
        %v1672 = vld [vmem:[%s1670 + $0x4] sm:$0xf]
        %v1673 = vld [vmem:[%s1670 + $0x8] sm:$0xf]
        %v1674 = vld [vmem:[%s1670 + $0xc] sm:$0xf]
        %v1723 = vunpack.c.l.b16 %v949
        %v1724 = vunpack.c.l.b16 %v950
        %v1725 = vunpack.c.l.b16 %v951
        %v1726 = vunpack.c.l.b16 %v952
        %v1727 = vunpack.c.l.b16 %v953
        %v1728 = vunpack.c.l.b16 %v954
        %v1729 = vunpack.c.l.b16 %v955
        %v1730 = vunpack.c.l.b16 %v956
        %v1731 = vunpack.c.l.b16 %v957
        %v1732 = vunpack.c.l.b16 %v958
        %v1733 = vunpack.c.l.b16 %v959
        %v1734 = vunpack.c.l.b16 %v960
        %v1735 = vunpack.c.l.b16 %v961
        %v1736 = vunpack.c.l.b16 %v962
        %v1737 = vunpack.c.l.b16 %v963
        %v1738 = vunpack.c.l.b16 %v964
        %v1739 = vunpack.c.l.b16 %v965
        %v1740 = vunpack.c.l.b16 %v966
        %v1741 = vunpack.c.l.b16 %v967
        %v1742 = vunpack.c.l.b16 %v968
        %v1743 = vunpack.c.l.b16 %v969
        %v1744 = vunpack.c.l.b16 %v970
        %v1745 = vunpack.c.l.b16 %v971
        %v1746 = vunpack.c.l.b16 %v972
        %v1747 = vunpack.c.l.b16 %v973
        %v1748 = vunpack.c.l.b16 %v974
        %v1749 = vunpack.c.l.b16 %v975
        %v1750 = vunpack.c.l.b16 %v976
        %v1751 = vunpack.c.l.b16 %v977
        %v1752 = vunpack.c.l.b16 %v978
        %v1753 = vunpack.c.l.b16 %v979
        %v1754 = vunpack.c.l.b16 %v980
        %v1755 = vunpack.c.l.b16 %v981
        %v1756 = vunpack.c.l.b16 %v982
        %v1757 = vunpack.c.l.b16 %v983
        %v1758 = vunpack.c.l.b16 %v984
        %v1759 = vunpack.c.l.b16 %v985
        %v1760 = vunpack.c.l.b16 %v986
        %v1761 = vunpack.c.l.b16 %v987
        %v1762 = vunpack.c.l.b16 %v988
        %v1763 = vunpack.c.l.b16 %v989
        %v1764 = vunpack.c.l.b16 %v990
        %v1765 = vunpack.c.l.b16 %v991
        %v1766 = vunpack.c.l.b16 %v992
        %v1767 = vunpack.c.l.b16 %v993
        %v1768 = vunpack.c.l.b16 %v994
        %v1769 = vunpack.c.l.b16 %v995
        %v1770 = vunpack.c.l.b16 %v996
        %v1771 = vpack.c.b16 %v1724, %v1723
        %v1772 = vpack.c.b16 %v1726, %v1725
        %v1773 = vpack.c.b16 %v1728, %v1727
        %v1774 = vpack.c.b16 %v1730, %v1729
        %v1775 = vpack.c.b16 %v1732, %v1731
        %v1776 = vpack.c.b16 %v1734, %v1733
        %v1777 = vpack.c.b16 %v1736, %v1735
        %v1778 = vpack.c.b16 %v1738, %v1737
        %v1779 = vpack.c.b16 %v1740, %v1739
        %v1780 = vpack.c.b16 %v1742, %v1741
        %v1781 = vpack.c.b16 %v1744, %v1743
        %v1782 = vpack.c.b16 %v1746, %v1745
        %v1783 = vpack.c.b16 %v1748, %v1747
        %v1784 = vpack.c.b16 %v1750, %v1749
        %v1785 = vpack.c.b16 %v1752, %v1751
        %v1786 = vpack.c.b16 %v1754, %v1753
        %v1787 = vpack.c.b16 %v1756, %v1755
        %v1788 = vpack.c.b16 %v1758, %v1757
        %v1789 = vpack.c.b16 %v1760, %v1759
        %v1790 = vpack.c.b16 %v1762, %v1761
        %v1791 = vpack.c.b16 %v1764, %v1763
        %v1792 = vpack.c.b16 %v1766, %v1765
        %v1793 = vpack.c.b16 %v1768, %v1767
        %v1794 = vpack.c.b16 %v1770, %v1769
        %v1799 = vunpack.c.l.b16 %v1671
        %v1800 = vunpack.c.l.b16 %v1672
        %v1801 = vunpack.c.l.b16 %v1673
        %v1802 = vunpack.c.l.b16 %v1674
        %v1803 = vpack.c.b16 %v1800, %v1799
        %v1804 = vpack.c.b16 %v1802, %v1801
        %v1808 = vsel %vm1324, %v1771, 0
        %v1811 = vsel %vm1324, %v1772, 0
        %v1814 = vsel %vm1324, %v1773, 0
        %v1817 = vsel %vm1324, %v1774, 0
        %v1820 = vsel %vm1324, %v1775, 0
        %v1823 = vsel %vm1324, %v1776, 0
        %v1826 = vsel %vm1324, %v1777, 0
        %v1829 = vsel %vm1324, %v1778, 0
        %v1832 = vsel %vm1324, %v1779, 0
        %v1835 = vsel %vm1324, %v1780, 0
        %v1838 = vsel %vm1324, %v1781, 0
        %v1841 = vsel %vm1324, %v1782, 0
        %v1844 = vsel %vm1324, %v1783, 0
        %v1847 = vsel %vm1324, %v1784, 0
        %v1850 = vsel %vm1324, %v1785, 0
        %v1853 = vsel %vm1324, %v1786, 0
        %v1856 = vsel %vm1324, %v1787, 0
        %v1859 = vsel %vm1324, %v1788, 0
        %v1862 = vsel %vm1324, %v1789, 0
        %v1865 = vsel %vm1324, %v1790, 0
        %v1868 = vsel %vm1324, %v1791, 0
        %v1871 = vsel %vm1324, %v1792, 0
        %v1874 = vsel %vm1324, %v1793, 0
        %v1877 = vsel %vm1324, %v1794, 0
        %1879 = vmatprep.subr.bf16.mxu0 0
        %1880 = vmatpush1.bf16.msra.mxu0 0
        %1881 = vmatprep.subr.bf16.mxu0 0
        %1882 = vmatpush1.bf16.msra.mxu0 0
        %1883 = vmatprep.subr.bf16.mxu0 0
        %1884 = vmatpush1.bf16.msra.mxu0 0
        %1885 = vmatprep.subr.bf16.mxu0 0
        %1886 = vmatpush1.bf16.msra.mxu0 0
        %1887 = vmatprep.subr.bf16.mxu0 0
        %1888 = vmatpush1.bf16.msra.mxu0 0
        %1889 = vmatprep.subr.bf16.mxu0 0
        %1890 = vmatpush1.bf16.msra.mxu0 0
        %1891 = vmatprep.subr.bf16.mxu0 0
        %1892 = vmatpush1.bf16.msra.mxu0 %v1804
        %1893 = vmatprep.subr.bf16.mxu0 0
        %1894 = vmatpush1.bf16.msra.mxu0 %v1803
        %1895 = vmatprep.subr.bf16.mxu0 0
        %1896 = vmatpush2.bf16.msra.mxu0 0
        %1897 = vmatprep.subr.bf16.mxu0 0
        %1898 = vmatpush2.bf16.msra.mxu0 0
        %1899 = vmatprep.subr.bf16.mxu0 0
        %1900 = vmatpush2.bf16.msra.mxu0 0
        %1901 = vmatprep.subr.bf16.mxu0 0
        %1902 = vmatpush2.bf16.msra.mxu0 0
        %1903 = vmatprep.subr.bf16.mxu0 0
        %1904 = vmatpush2.bf16.msra.mxu0 0
        %1905 = vmatprep.subr.bf16.mxu0 0
        %1906 = vmatpush2.bf16.msra.mxu0 0
        %1907 = vmatprep.subr.bf16.mxu0 0
        %1908 = vmatpush2.bf16.msra.mxu0 0
        %1909 = vmatprep.subr.bf16.mxu0 0
        %1910 = vmatpush2.bf16.msra.mxu0 0
        %1911 = vmatprep.mubr.bf16.mxu0 0
        %1912 = vmatmul.mubr.bf16.gmra.mxu0 %v1808
        %v1913 = vpop.f32.mrf.mxu0
        %v1914 = vadd.f32 0.0, %v1913
        %v1915 = vpop.f32.mrf.mxu0
        %v1916 = vpop.f32.mrf.mxu0
        %v1917 = vadd.f32 0.0, %v1916
        %v1918 = vpop.f32.mrf.mxu0
        %1919 = vmatprep.mubr.bf16.mxu0 0
        %1920 = vmatmul.mubr.bf16.gmra.mxu0 %v1811
        %v1921 = vpop.f32.mrf.mxu0
        %v1922 = vadd.f32 0.0, %v1921
        %v1923 = vpop.f32.mrf.mxu0
        %v1924 = vpop.f32.mrf.mxu0
        %v1925 = vadd.f32 0.0, %v1924
        %v1926 = vpop.f32.mrf.mxu0
        %1927 = vmatprep.mubr.bf16.mxu0 0
        %1928 = vmatmul.mubr.bf16.gmra.mxu0 %v1814
        %v1929 = vpop.f32.mrf.mxu0
        %v1930 = vadd.f32 0.0, %v1929
        %v1931 = vpop.f32.mrf.mxu0
        %v1932 = vpop.f32.mrf.mxu0
        %v1933 = vadd.f32 0.0, %v1932
        %v1934 = vpop.f32.mrf.mxu0
        %1935 = vmatprep.mubr.bf16.mxu0 0
        %1936 = vmatmul.mubr.bf16.gmra.mxu0 %v1817
        %v1937 = vpop.f32.mrf.mxu0
        %v1938 = vadd.f32 0.0, %v1937
        %v1939 = vpop.f32.mrf.mxu0
        %v1940 = vpop.f32.mrf.mxu0
        %v1941 = vadd.f32 0.0, %v1940
        %v1942 = vpop.f32.mrf.mxu0
        %1943 = vmatprep.mubr.bf16.mxu0 0
        %1944 = vmatmul.mubr.bf16.gmra.mxu0 %v1820
        %v1945 = vpop.f32.mrf.mxu0
        %v1946 = vadd.f32 0.0, %v1945
        %v1947 = vpop.f32.mrf.mxu0
        %v1948 = vpop.f32.mrf.mxu0
        %v1949 = vadd.f32 0.0, %v1948
        %v1950 = vpop.f32.mrf.mxu0
        %1951 = vmatprep.mubr.bf16.mxu0 0
        %1952 = vmatmul.mubr.bf16.gmra.mxu0 %v1823
        %v1953 = vpop.f32.mrf.mxu0
        %v1954 = vadd.f32 0.0, %v1953
        %v1955 = vpop.f32.mrf.mxu0
        %v1956 = vpop.f32.mrf.mxu0
        %v1957 = vadd.f32 0.0, %v1956
        %v1958 = vpop.f32.mrf.mxu0
        %1959 = vmatprep.mubr.bf16.mxu0 0
        %1960 = vmatmul.mubr.bf16.gmra.mxu0 %v1826
        %v1961 = vpop.f32.mrf.mxu0
        %v1962 = vadd.f32 0.0, %v1961
        %v1963 = vpop.f32.mrf.mxu0
        %v1964 = vpop.f32.mrf.mxu0
        %v1965 = vadd.f32 0.0, %v1964
        %v1966 = vpop.f32.mrf.mxu0
        %1967 = vmatprep.mubr.bf16.mxu0 0
        %1968 = vmatmul.mubr.bf16.gmra.mxu0 %v1829
        %v1969 = vpop.f32.mrf.mxu0
        %v1970 = vadd.f32 0.0, %v1969
        %v1971 = vpop.f32.mrf.mxu0
        %v1972 = vpop.f32.mrf.mxu0
        %v1973 = vadd.f32 0.0, %v1972
        %v1974 = vpop.f32.mrf.mxu0
        %1975 = vmatprep.mubr.bf16.mxu0 0
        %1976 = vmatmul.mubr.bf16.gmra.mxu0 %v1832
        %v1977 = vpop.f32.mrf.mxu0
        %v1978 = vadd.f32 0.0, %v1977
        %v1979 = vpop.f32.mrf.mxu0
        %v1980 = vpop.f32.mrf.mxu0
        %v1981 = vadd.f32 0.0, %v1980
        %v1982 = vpop.f32.mrf.mxu0
        %1983 = vmatprep.mubr.bf16.mxu0 0
        %1984 = vmatmul.mubr.bf16.gmra.mxu0 %v1835
        %v1985 = vpop.f32.mrf.mxu0
        %v1986 = vadd.f32 0.0, %v1985
        %v1987 = vpop.f32.mrf.mxu0
        %v1988 = vpop.f32.mrf.mxu0
        %v1989 = vadd.f32 0.0, %v1988
        %v1990 = vpop.f32.mrf.mxu0
        %1991 = vmatprep.mubr.bf16.mxu0 0
        %1992 = vmatmul.mubr.bf16.gmra.mxu0 %v1838
        %v1993 = vpop.f32.mrf.mxu0
        %v1994 = vadd.f32 0.0, %v1993
        %v1995 = vpop.f32.mrf.mxu0
        %v1996 = vpop.f32.mrf.mxu0
        %v1997 = vadd.f32 0.0, %v1996
        %v1998 = vpop.f32.mrf.mxu0
        %1999 = vmatprep.mubr.bf16.mxu0 0
        %2000 = vmatmul.mubr.bf16.gmra.mxu0 %v1841
        %v2001 = vpop.f32.mrf.mxu0
        %v2002 = vadd.f32 0.0, %v2001
        %v2003 = vpop.f32.mrf.mxu0
        %v2004 = vpop.f32.mrf.mxu0
        %v2005 = vadd.f32 0.0, %v2004
        %v2006 = vpop.f32.mrf.mxu0
        %2007 = vmatprep.mubr.bf16.mxu0 0
        %2008 = vmatmul.mubr.bf16.gmra.mxu0 %v1844
        %v2009 = vpop.f32.mrf.mxu0
        %v2010 = vadd.f32 0.0, %v2009
        %v2011 = vpop.f32.mrf.mxu0
        %v2012 = vpop.f32.mrf.mxu0
        %v2013 = vadd.f32 0.0, %v2012
        %v2014 = vpop.f32.mrf.mxu0
        %2015 = vmatprep.mubr.bf16.mxu0 0
        %2016 = vmatmul.mubr.bf16.gmra.mxu0 %v1847
        %v2017 = vpop.f32.mrf.mxu0
        %v2018 = vadd.f32 0.0, %v2017
        %v2019 = vpop.f32.mrf.mxu0
        %v2020 = vpop.f32.mrf.mxu0
        %v2021 = vadd.f32 0.0, %v2020
        %v2022 = vpop.f32.mrf.mxu0
        %2023 = vmatprep.mubr.bf16.mxu0 0
        %2024 = vmatmul.mubr.bf16.gmra.mxu0 %v1850
        %v2025 = vpop.f32.mrf.mxu0
        %v2026 = vadd.f32 0.0, %v2025
        %v2027 = vpop.f32.mrf.mxu0
        %v2028 = vpop.f32.mrf.mxu0
        %v2029 = vadd.f32 0.0, %v2028
        %v2030 = vpop.f32.mrf.mxu0
        %2031 = vmatprep.mubr.bf16.mxu0 0
        %2032 = vmatmul.mubr.bf16.gmra.mxu0 %v1853
        %v2033 = vpop.f32.mrf.mxu0
        %v2034 = vadd.f32 0.0, %v2033
        %v2035 = vpop.f32.mrf.mxu0
        %v2036 = vpop.f32.mrf.mxu0
        %v2037 = vadd.f32 0.0, %v2036
        %v2038 = vpop.f32.mrf.mxu0
        %2039 = vmatprep.mubr.bf16.mxu0 0
        %2040 = vmatmul.mubr.bf16.gmra.mxu0 %v1856
        %v2041 = vpop.f32.mrf.mxu0
        %v2042 = vadd.f32 0.0, %v2041
        %v2043 = vpop.f32.mrf.mxu0
        %v2044 = vpop.f32.mrf.mxu0
        %v2045 = vadd.f32 0.0, %v2044
        %v2046 = vpop.f32.mrf.mxu0
        %2047 = vmatprep.mubr.bf16.mxu0 0
        %2048 = vmatmul.mubr.bf16.gmra.mxu0 %v1859
        %v2049 = vpop.f32.mrf.mxu0
        %v2050 = vadd.f32 0.0, %v2049
        %v2051 = vpop.f32.mrf.mxu0
        %v2052 = vpop.f32.mrf.mxu0
        %v2053 = vadd.f32 0.0, %v2052
        %v2054 = vpop.f32.mrf.mxu0
        %2055 = vmatprep.mubr.bf16.mxu0 0
        %2056 = vmatmul.mubr.bf16.gmra.mxu0 %v1862
        %v2057 = vpop.f32.mrf.mxu0
        %v2058 = vadd.f32 0.0, %v2057
        %v2059 = vpop.f32.mrf.mxu0
        %v2060 = vpop.f32.mrf.mxu0
        %v2061 = vadd.f32 0.0, %v2060
        %v2062 = vpop.f32.mrf.mxu0
        %2063 = vmatprep.mubr.bf16.mxu0 0
        %2064 = vmatmul.mubr.bf16.gmra.mxu0 %v1865
        %v2065 = vpop.f32.mrf.mxu0
        %v2066 = vadd.f32 0.0, %v2065
        %v2067 = vpop.f32.mrf.mxu0
        %v2068 = vpop.f32.mrf.mxu0
        %v2069 = vadd.f32 0.0, %v2068
        %v2070 = vpop.f32.mrf.mxu0
        %2071 = vmatprep.mubr.bf16.mxu0 0
        %2072 = vmatmul.mubr.bf16.gmra.mxu0 %v1868
        %v2073 = vpop.f32.mrf.mxu0
        %v2074 = vadd.f32 0.0, %v2073
        %v2075 = vpop.f32.mrf.mxu0
        %v2076 = vpop.f32.mrf.mxu0
        %v2077 = vadd.f32 0.0, %v2076
        %v2078 = vpop.f32.mrf.mxu0
        %2079 = vmatprep.mubr.bf16.mxu0 0
        %2080 = vmatmul.mubr.bf16.gmra.mxu0 %v1871
        %v2081 = vpop.f32.mrf.mxu0
        %v2082 = vadd.f32 0.0, %v2081
        %v2083 = vpop.f32.mrf.mxu0
        %v2084 = vpop.f32.mrf.mxu0
        %v2085 = vadd.f32 0.0, %v2084
        %v2086 = vpop.f32.mrf.mxu0
        %2087 = vmatprep.mubr.bf16.mxu0 0
        %2088 = vmatmul.mubr.bf16.gmra.mxu0 %v1874
        %v2089 = vpop.f32.mrf.mxu0
        %v2090 = vadd.f32 0.0, %v2089
        %v2091 = vpop.f32.mrf.mxu0
        %v2092 = vpop.f32.mrf.mxu0
        %v2093 = vadd.f32 0.0, %v2092
        %v2094 = vpop.f32.mrf.mxu0
        %2095 = vmatprep.mubr.bf16.mxu0 0
        %2096 = vmatmul.mubr.bf16.gmra.mxu0 %v1877
        %v2097 = vpop.f32.mrf.mxu0
        %v2098 = vadd.f32 0.0, %v2097
        %v2099 = vpop.f32.mrf.mxu0
        %v2100 = vpop.f32.mrf.mxu0
        %v2101 = vadd.f32 0.0, %v2100
        %v2102 = vpop.f32.mrf.mxu0
        %2103 = vdwg.mxu0
        %v2104 = vadd.f32 %v1622, %v1914
        %v2105 = vadd.f32 %v1623, %v1917
        %v2106 = vadd.f32 %v1624, %v1922
        %v2107 = vadd.f32 %v1625, %v1925
        %v2108 = vadd.f32 %v1626, %v1930
        %v2109 = vadd.f32 %v1627, %v1933
        %v2110 = vadd.f32 %v1628, %v1938
        %v2111 = vadd.f32 %v1629, %v1941
        %v2112 = vadd.f32 %v1630, %v1946
        %v2113 = vadd.f32 %v1631, %v1949
        %v2114 = vadd.f32 %v1632, %v1954
        %v2115 = vadd.f32 %v1633, %v1957
        %v2116 = vadd.f32 %v1634, %v1962
        %v2117 = vadd.f32 %v1635, %v1965
        %v2118 = vadd.f32 %v1636, %v1970
        %v2119 = vadd.f32 %v1637, %v1973
        %v2120 = vadd.f32 %v1638, %v1978
        %v2121 = vadd.f32 %v1639, %v1981
        %v2122 = vadd.f32 %v1640, %v1986
        %v2123 = vadd.f32 %v1641, %v1989
        %v2124 = vadd.f32 %v1642, %v1994
        %v2125 = vadd.f32 %v1643, %v1997
        %v2126 = vadd.f32 %v1644, %v2002
        %v2127 = vadd.f32 %v1645, %v2005
        %v2128 = vadd.f32 %v1646, %v2010
        %v2129 = vadd.f32 %v1647, %v2013
        %v2130 = vadd.f32 %v1648, %v2018
        %v2131 = vadd.f32 %v1649, %v2021
        %v2132 = vadd.f32 %v1650, %v2026
        %v2133 = vadd.f32 %v1651, %v2029
        %v2134 = vadd.f32 %v1652, %v2034
        %v2135 = vadd.f32 %v1653, %v2037
        %v2136 = vadd.f32 %v1654, %v2042
        %v2137 = vadd.f32 %v1655, %v2045
        %v2138 = vadd.f32 %v1656, %v2050
        %v2139 = vadd.f32 %v1657, %v2053
        %v2140 = vadd.f32 %v1658, %v2058
        %v2141 = vadd.f32 %v1659, %v2061
        %v2142 = vadd.f32 %v1660, %v2066
        %v2143 = vadd.f32 %v1661, %v2069
        %v2144 = vadd.f32 %v1662, %v2074
        %v2145 = vadd.f32 %v1663, %v2077
        %v2146 = vadd.f32 %v1664, %v2082
        %v2147 = vadd.f32 %v1665, %v2085
        %v2148 = vadd.f32 %v1666, %v2090
        %v2149 = vadd.f32 %v1667, %v2093
        %v2150 = vadd.f32 %v1668, %v2098
        %v2151 = vadd.f32 %v1669, %v2101
        %v2152 = vrot.slane %v1003, 1
        %v2153 = vrot.slane %v1006, 1
        %v2154 = vrot.slane %v1009, 1
        %v2155 = vrot.slane %v1012, 1
        %v2156 = vrot.slane %v1015, 1
        %v2157 = vrot.slane %v1018, 1
        %v2158 = vrot.slane %v1021, 1
        %v2159 = vrot.slane %v1024, 1
        %v2160 = vrot.slane %v1027, 1
        %v2161 = vrot.slane %v1030, 1
        %v2162 = vrot.slane %v1033, 1
        %v2163 = vrot.slane %v1036, 1
        %v2164 = vrot.slane %v1039, 1
        %v2165 = vrot.slane %v1042, 1
        %v2166 = vrot.slane %v1045, 1
        %v2167 = vrot.slane %v1048, 1
        %v2168 = vrot.slane %v1051, 1
        %v2169 = vrot.slane %v1054, 1
        %v2170 = vrot.slane %v1004, 1
        %v2171 = vrot.slane %v1007, 1
        %v2172 = vrot.slane %v1010, 1
        %v2173 = vrot.slane %v1013, 1
        %v2174 = vrot.slane %v1016, 1
        %v2175 = vrot.slane %v1019, 1
        %v2176 = vrot.slane %v1022, 1
        %v2177 = vrot.slane %v1025, 1
        %v2178 = vrot.slane %v1028, 1
        %v2179 = vrot.slane %v1031, 1
        %v2180 = vrot.slane %v1034, 1
        %v2181 = vrot.slane %v1037, 1
        %v2182 = vrot.slane %v1040, 1
        %v2183 = vrot.slane %v1043, 1
        %v2184 = vrot.slane %v1046, 1
        %v2185 = vrot.slane %v1049, 1
        %v2186 = vrot.slane %v1052, 1
        %v2187 = vrot.slane %v1055, 1
        %v2188 = vrot.slane %v1005, 1
        %v2189 = vrot.slane %v1008, 1
        %v2190 = vrot.slane %v1011, 1
        %v2191 = vrot.slane %v1014, 1
        %v2192 = vrot.slane %v1017, 1
        %v2193 = vrot.slane %v1020, 1
        %v2194 = vrot.slane %v1023, 1
        %v2195 = vrot.slane %v1026, 1
        %v2196 = vrot.slane %v1029, 1
        %v2197 = vrot.slane %v1032, 1
        %v2198 = vrot.slane %v1035, 1
        %v2199 = vrot.slane %v1038, 1
        %v2200 = vrot.slane %v1041, 1
        %v2201 = vrot.slane %v1044, 1
        %v2202 = vrot.slane %v1047, 1
        %v2203 = vrot.slane %v1050, 1
        %v2204 = vrot.slane %v1053, 1
        %v2205 = vrot.slane %v1056, 1
        %vm2206 = vcmp.lt.s32.totalorder %v1112, 7
        %v2207 = vsel %vm2206, %v2170, %v2188
        %v2208 = vsel %vm2206, %v2171, %v2189
        %v2209 = vsel %vm2206, %v2172, %v2190
        %v2210 = vsel %vm2206, %v2173, %v2191
        %v2211 = vsel %vm2206, %v2174, %v2192
        %v2212 = vsel %vm2206, %v2175, %v2193
        %v2213 = vsel %vm2206, %v2176, %v2194
        %v2214 = vsel %vm2206, %v2177, %v2195
        %v2215 = vsel %vm2206, %v2178, %v2196
        %v2216 = vsel %vm2206, %v2179, %v2197
        %v2217 = vsel %vm2206, %v2180, %v2198
        %v2218 = vsel %vm2206, %v2181, %v2199
        %v2219 = vsel %vm2206, %v2182, %v2200
        %v2220 = vsel %vm2206, %v2183, %v2201
        %v2221 = vsel %vm2206, %v2184, %v2202
        %v2222 = vsel %vm2206, %v2185, %v2203
        %v2223 = vsel %vm2206, %v2186, %v2204
        %v2224 = vsel %vm2206, %v2187, %v2205
        %v2225 = vsel %vm2206, %v2152, %v2170
        %v2226 = vsel %vm2206, %v2153, %v2171
        %v2227 = vsel %vm2206, %v2154, %v2172
        %v2228 = vsel %vm2206, %v2155, %v2173
        %v2229 = vsel %vm2206, %v2156, %v2174
        %v2230 = vsel %vm2206, %v2157, %v2175
        %v2231 = vsel %vm2206, %v2158, %v2176
        %v2232 = vsel %vm2206, %v2159, %v2177
        %v2233 = vsel %vm2206, %v2160, %v2178
        %v2234 = vsel %vm2206, %v2161, %v2179
        %v2235 = vsel %vm2206, %v2162, %v2180
        %v2236 = vsel %vm2206, %v2163, %v2181
        %v2237 = vsel %vm2206, %v2164, %v2182
        %v2238 = vsel %vm2206, %v2165, %v2183
        %v2239 = vsel %vm2206, %v2166, %v2184
        %v2240 = vsel %vm2206, %v2167, %v2185
        %v2241 = vsel %vm2206, %v2168, %v2186
        %v2242 = vsel %vm2206, %v2169, %v2187
        %v2243 = vsel %vm2206, %v2188, %v2152
        %v2244 = vsel %vm2206, %v2189, %v2153
        %v2245 = vsel %vm2206, %v2190, %v2154
        %v2246 = vsel %vm2206, %v2191, %v2155
        %v2247 = vsel %vm2206, %v2192, %v2156
        %v2248 = vsel %vm2206, %v2193, %v2157
        %v2249 = vsel %vm2206, %v2194, %v2158
        %v2250 = vsel %vm2206, %v2195, %v2159
        %v2251 = vsel %vm2206, %v2196, %v2160
        %v2252 = vsel %vm2206, %v2197, %v2161
        %v2253 = vsel %vm2206, %v2198, %v2162
        %v2254 = vsel %vm2206, %v2199, %v2163
        %v2255 = vsel %vm2206, %v2200, %v2164
        %v2256 = vsel %vm2206, %v2201, %v2165
        %v2257 = vsel %vm2206, %v2202, %v2166
        %v2258 = vsel %vm2206, %v2203, %v2167
        %v2259 = vsel %vm2206, %v2204, %v2168
        %v2260 = vsel %vm2206, %v2205, %v2169
        %v2261 = vpack.c.bf16 %v2207, %v2225
        %v2262 = vpack.c.bf16 %v2243, %v2243
        %v2263 = vpack.c.bf16 %v2208, %v2226
        %v2264 = vpack.c.bf16 %v2244, %v2244
        %v2265 = vpack.c.bf16 %v2209, %v2227
        %v2266 = vpack.c.bf16 %v2245, %v2245
        %v2267 = vpack.c.bf16 %v2210, %v2228
        %v2268 = vpack.c.bf16 %v2246, %v2246
        %v2269 = vpack.c.bf16 %v2211, %v2229
        %v2270 = vpack.c.bf16 %v2247, %v2247
        %v2271 = vpack.c.bf16 %v2212, %v2230
        %v2272 = vpack.c.bf16 %v2248, %v2248
        %v2273 = vpack.c.bf16 %v2213, %v2231
        %v2274 = vpack.c.bf16 %v2249, %v2249
        %v2275 = vpack.c.bf16 %v2214, %v2232
        %v2276 = vpack.c.bf16 %v2250, %v2250
        %v2277 = vpack.c.bf16 %v2215, %v2233
        %v2278 = vpack.c.bf16 %v2251, %v2251
        %v2279 = vpack.c.bf16 %v2216, %v2234
        %v2280 = vpack.c.bf16 %v2252, %v2252
        %v2281 = vpack.c.bf16 %v2217, %v2235
        %v2282 = vpack.c.bf16 %v2253, %v2253
        %v2283 = vpack.c.bf16 %v2218, %v2236
        %v2284 = vpack.c.bf16 %v2254, %v2254
        %v2285 = vpack.c.bf16 %v2219, %v2237
        %v2286 = vpack.c.bf16 %v2255, %v2255
        %v2287 = vpack.c.bf16 %v2220, %v2238
        %v2288 = vpack.c.bf16 %v2256, %v2256
        %v2289 = vpack.c.bf16 %v2221, %v2239
        %v2290 = vpack.c.bf16 %v2257, %v2257
        %v2291 = vpack.c.bf16 %v2222, %v2240
        %v2292 = vpack.c.bf16 %v2258, %v2258
        %v2293 = vpack.c.bf16 %v2223, %v2241
        %v2294 = vpack.c.bf16 %v2259, %v2259
        %v2295 = vpack.c.bf16 %v2224, %v2242
        %v2296 = vpack.c.bf16 %v2260, %v2260
        %v2329 = vunpack.c.l.b16 %v2261
        %v2330 = vunpack.c.h.b16 %v2261
        %v2331 = vunpack.c.l.b16 %v2262
        %v2332 = vunpack.c.l.b16 %v2263
        %v2333 = vunpack.c.h.b16 %v2263
        %v2334 = vunpack.c.l.b16 %v2264
        %v2335 = vunpack.c.l.b16 %v2265
        %v2336 = vunpack.c.h.b16 %v2265
        %v2337 = vunpack.c.l.b16 %v2266
        %v2338 = vunpack.c.l.b16 %v2267
        %v2339 = vunpack.c.h.b16 %v2267
        %v2340 = vunpack.c.l.b16 %v2268
        %v2341 = vunpack.c.l.b16 %v2269
        %v2342 = vunpack.c.h.b16 %v2269
        %v2343 = vunpack.c.l.b16 %v2270
        %v2344 = vunpack.c.l.b16 %v2271
        %v2345 = vunpack.c.h.b16 %v2271
        %v2346 = vunpack.c.l.b16 %v2272
        %v2347 = vunpack.c.l.b16 %v2273
        %v2348 = vunpack.c.h.b16 %v2273
        %v2349 = vunpack.c.l.b16 %v2274
        %v2350 = vunpack.c.l.b16 %v2275
        %v2351 = vunpack.c.h.b16 %v2275
        %v2352 = vunpack.c.l.b16 %v2276
        %v2353 = vunpack.c.l.b16 %v2277
        %v2354 = vunpack.c.h.b16 %v2277
        %v2355 = vunpack.c.l.b16 %v2278
        %v2356 = vunpack.c.l.b16 %v2279
        %v2357 = vunpack.c.h.b16 %v2279
        %v2358 = vunpack.c.l.b16 %v2280
        %v2359 = vunpack.c.l.b16 %v2281
        %v2360 = vunpack.c.h.b16 %v2281
        %v2361 = vunpack.c.l.b16 %v2282
        %v2362 = vunpack.c.l.b16 %v2283
        %v2363 = vunpack.c.h.b16 %v2283
        %v2364 = vunpack.c.l.b16 %v2284
        %v2365 = vunpack.c.l.b16 %v2285
        %v2366 = vunpack.c.h.b16 %v2285
        %v2367 = vunpack.c.l.b16 %v2286
        %v2368 = vunpack.c.l.b16 %v2287
        %v2369 = vunpack.c.h.b16 %v2287
        %v2370 = vunpack.c.l.b16 %v2288
        %v2371 = vunpack.c.l.b16 %v2289
        %v2372 = vunpack.c.h.b16 %v2289
        %v2373 = vunpack.c.l.b16 %v2290
        %v2374 = vunpack.c.l.b16 %v2291
        %v2375 = vunpack.c.h.b16 %v2291
        %v2376 = vunpack.c.l.b16 %v2292
        %s2377 = scalar_lea.vmem %s3, 32
        %v2378 = vld [vmem:[%s2377] sm:$0xf]
        %v2379 = vld [vmem:[%s2377 + $0x4] sm:$0xf]
        %v2380 = vld [vmem:[%s2377 + $0x8] sm:$0xf]
        %v2381 = vld [vmem:[%s2377 + $0xc] sm:$0xf]
        %v2382 = vpack.c.b16 %v2330, %v2329
        %v2383 = vpack.c.b16 %v2332, %v2331
        %v2384 = vpack.c.b16 %v2334, %v2333
        %v2385 = vpack.c.b16 %v2336, %v2335
        %v2386 = vpack.c.b16 %v2338, %v2337
        %v2387 = vpack.c.b16 %v2340, %v2339
        %v2388 = vpack.c.b16 %v2342, %v2341
        %v2389 = vpack.c.b16 %v2344, %v2343
        %v2390 = vpack.c.b16 %v2346, %v2345
        %v2391 = vpack.c.b16 %v2348, %v2347
        %v2392 = vpack.c.b16 %v2350, %v2349
        %v2393 = vpack.c.b16 %v2352, %v2351
        %v2394 = vpack.c.b16 %v2354, %v2353
        %v2395 = vpack.c.b16 %v2356, %v2355
        %v2396 = vpack.c.b16 %v2358, %v2357
        %v2397 = vpack.c.b16 %v2360, %v2359
        %v2398 = vpack.c.b16 %v2362, %v2361
        %v2399 = vpack.c.b16 %v2364, %v2363
        %v2400 = vpack.c.b16 %v2366, %v2365
        %v2401 = vpack.c.b16 %v2368, %v2367
        %v2402 = vpack.c.b16 %v2370, %v2369
        %v2403 = vpack.c.b16 %v2372, %v2371
        %v2404 = vpack.c.b16 %v2374, %v2373
        %v2405 = vpack.c.b16 %v2376, %v2375
        %v2410 = vunpack.c.l.b16 %v2378
        %v2411 = vunpack.c.l.b16 %v2379
        %v2412 = vunpack.c.l.b16 %v2380
        %v2413 = vunpack.c.l.b16 %v2381
        %v2414 = vpack.c.b16 %v2411, %v2410
        %v2415 = vpack.c.b16 %v2413, %v2412
        %v2419 = vsel %vm1324, %v2382, 0
        %v2422 = vsel %vm1324, %v2383, 0
        %v2425 = vsel %vm1324, %v2384, 0
        %v2428 = vsel %vm1324, %v2385, 0
        %v2431 = vsel %vm1324, %v2386, 0
        %v2434 = vsel %vm1324, %v2387, 0
        %v2437 = vsel %vm1324, %v2388, 0
        %v2440 = vsel %vm1324, %v2389, 0
        %v2443 = vsel %vm1324, %v2390, 0
        %v2446 = vsel %vm1324, %v2391, 0
        %v2449 = vsel %vm1324, %v2392, 0
        %v2452 = vsel %vm1324, %v2393, 0
        %v2455 = vsel %vm1324, %v2394, 0
        %v2458 = vsel %vm1324, %v2395, 0
        %v2461 = vsel %vm1324, %v2396, 0
        %v2464 = vsel %vm1324, %v2397, 0
        %v2467 = vsel %vm1324, %v2398, 0
        %v2470 = vsel %vm1324, %v2399, 0
        %v2473 = vsel %vm1324, %v2400, 0
        %v2476 = vsel %vm1324, %v2401, 0
        %v2479 = vsel %vm1324, %v2402, 0
        %v2482 = vsel %vm1324, %v2403, 0
        %v2485 = vsel %vm1324, %v2404, 0
        %v2488 = vsel %vm1324, %v2405, 0
        %2490 = vmatprep.subr.bf16.mxu0 0
        %2491 = vmatpush1.bf16.msra.mxu0 0
        %2492 = vmatprep.subr.bf16.mxu0 0
        %2493 = vmatpush1.bf16.msra.mxu0 0
        %2494 = vmatprep.subr.bf16.mxu0 0
        %2495 = vmatpush1.bf16.msra.mxu0 0
        %2496 = vmatprep.subr.bf16.mxu0 0
        %2497 = vmatpush1.bf16.msra.mxu0 0
        %2498 = vmatprep.subr.bf16.mxu0 0
        %2499 = vmatpush1.bf16.msra.mxu0 0
        %2500 = vmatprep.subr.bf16.mxu0 0
        %2501 = vmatpush1.bf16.msra.mxu0 0
        %2502 = vmatprep.subr.bf16.mxu0 0
        %2503 = vmatpush1.bf16.msra.mxu0 %v2415
        %2504 = vmatprep.subr.bf16.mxu0 0
        %2505 = vmatpush1.bf16.msra.mxu0 %v2414
        %2506 = vmatprep.subr.bf16.mxu0 0
        %2507 = vmatpush2.bf16.msra.mxu0 0
        %2508 = vmatprep.subr.bf16.mxu0 0
        %2509 = vmatpush2.bf16.msra.mxu0 0
        %2510 = vmatprep.subr.bf16.mxu0 0
        %2511 = vmatpush2.bf16.msra.mxu0 0
        %2512 = vmatprep.subr.bf16.mxu0 0
        %2513 = vmatpush2.bf16.msra.mxu0 0
        %2514 = vmatprep.subr.bf16.mxu0 0
        %2515 = vmatpush2.bf16.msra.mxu0 0
        %2516 = vmatprep.subr.bf16.mxu0 0
        %2517 = vmatpush2.bf16.msra.mxu0 0
        %2518 = vmatprep.subr.bf16.mxu0 0
        %2519 = vmatpush2.bf16.msra.mxu0 0
        %2520 = vmatprep.subr.bf16.mxu0 0
        %2521 = vmatpush2.bf16.msra.mxu0 0
        %2522 = vmatprep.mubr.bf16.mxu0 0
        %2523 = vmatmul.mubr.bf16.gmra.mxu0 %v2419
        %v2524 = vpop.f32.mrf.mxu0
        %v2525 = vadd.f32 0.0, %v2524
        %v2526 = vpop.f32.mrf.mxu0
        %v2527 = vpop.f32.mrf.mxu0
        %v2528 = vadd.f32 0.0, %v2527
        %v2529 = vpop.f32.mrf.mxu0
        %2530 = vmatprep.mubr.bf16.mxu0 0
        %2531 = vmatmul.mubr.bf16.gmra.mxu0 %v2422
        %v2532 = vpop.f32.mrf.mxu0
        %v2533 = vadd.f32 0.0, %v2532
        %v2534 = vpop.f32.mrf.mxu0
        %v2535 = vpop.f32.mrf.mxu0
        %v2536 = vadd.f32 0.0, %v2535
        %v2537 = vpop.f32.mrf.mxu0
        %2538 = vmatprep.mubr.bf16.mxu0 0
        %2539 = vmatmul.mubr.bf16.gmra.mxu0 %v2425
        %v2540 = vpop.f32.mrf.mxu0
        %v2541 = vadd.f32 0.0, %v2540
        %v2542 = vpop.f32.mrf.mxu0
        %v2543 = vpop.f32.mrf.mxu0
        %v2544 = vadd.f32 0.0, %v2543
        %v2545 = vpop.f32.mrf.mxu0
        %2546 = vmatprep.mubr.bf16.mxu0 0
        %2547 = vmatmul.mubr.bf16.gmra.mxu0 %v2428
        %v2548 = vpop.f32.mrf.mxu0
        %v2549 = vadd.f32 0.0, %v2548
        %v2550 = vpop.f32.mrf.mxu0
        %v2551 = vpop.f32.mrf.mxu0
        %v2552 = vadd.f32 0.0, %v2551
        %v2553 = vpop.f32.mrf.mxu0
        %2554 = vmatprep.mubr.bf16.mxu0 0
        %2555 = vmatmul.mubr.bf16.gmra.mxu0 %v2431
        %v2556 = vpop.f32.mrf.mxu0
        %v2557 = vadd.f32 0.0, %v2556
        %v2558 = vpop.f32.mrf.mxu0
        %v2559 = vpop.f32.mrf.mxu0
        %v2560 = vadd.f32 0.0, %v2559
        %v2561 = vpop.f32.mrf.mxu0
        %2562 = vmatprep.mubr.bf16.mxu0 0
        %2563 = vmatmul.mubr.bf16.gmra.mxu0 %v2434
        %v2564 = vpop.f32.mrf.mxu0
        %v2565 = vadd.f32 0.0, %v2564
        %v2566 = vpop.f32.mrf.mxu0
        %v2567 = vpop.f32.mrf.mxu0
        %v2568 = vadd.f32 0.0, %v2567
        %v2569 = vpop.f32.mrf.mxu0
        %2570 = vmatprep.mubr.bf16.mxu0 0
        %2571 = vmatmul.mubr.bf16.gmra.mxu0 %v2437
        %v2572 = vpop.f32.mrf.mxu0
        %v2573 = vadd.f32 0.0, %v2572
        %v2574 = vpop.f32.mrf.mxu0
        %v2575 = vpop.f32.mrf.mxu0
        %v2576 = vadd.f32 0.0, %v2575
        %v2577 = vpop.f32.mrf.mxu0
        %2578 = vmatprep.mubr.bf16.mxu0 0
        %2579 = vmatmul.mubr.bf16.gmra.mxu0 %v2440
        %v2580 = vpop.f32.mrf.mxu0
        %v2581 = vadd.f32 0.0, %v2580
        %v2582 = vpop.f32.mrf.mxu0
        %v2583 = vpop.f32.mrf.mxu0
        %v2584 = vadd.f32 0.0, %v2583
        %v2585 = vpop.f32.mrf.mxu0
        %2586 = vmatprep.mubr.bf16.mxu0 0
        %2587 = vmatmul.mubr.bf16.gmra.mxu0 %v2443
        %v2588 = vpop.f32.mrf.mxu0
        %v2589 = vadd.f32 0.0, %v2588
        %v2590 = vpop.f32.mrf.mxu0
        %v2591 = vpop.f32.mrf.mxu0
        %v2592 = vadd.f32 0.0, %v2591
        %v2593 = vpop.f32.mrf.mxu0
        %2594 = vmatprep.mubr.bf16.mxu0 0
        %2595 = vmatmul.mubr.bf16.gmra.mxu0 %v2446
        %v2596 = vpop.f32.mrf.mxu0
        %v2597 = vadd.f32 0.0, %v2596
        %v2598 = vpop.f32.mrf.mxu0
        %v2599 = vpop.f32.mrf.mxu0
        %v2600 = vadd.f32 0.0, %v2599
        %v2601 = vpop.f32.mrf.mxu0
        %2602 = vmatprep.mubr.bf16.mxu0 0
        %2603 = vmatmul.mubr.bf16.gmra.mxu0 %v2449
        %v2604 = vpop.f32.mrf.mxu0
        %v2605 = vadd.f32 0.0, %v2604
        %v2606 = vpop.f32.mrf.mxu0
        %v2607 = vpop.f32.mrf.mxu0
        %v2608 = vadd.f32 0.0, %v2607
        %v2609 = vpop.f32.mrf.mxu0
        %2610 = vmatprep.mubr.bf16.mxu0 0
        %2611 = vmatmul.mubr.bf16.gmra.mxu0 %v2452
        %v2612 = vpop.f32.mrf.mxu0
        %v2613 = vadd.f32 0.0, %v2612
        %v2614 = vpop.f32.mrf.mxu0
        %v2615 = vpop.f32.mrf.mxu0
        %v2616 = vadd.f32 0.0, %v2615
        %v2617 = vpop.f32.mrf.mxu0
        %2618 = vmatprep.mubr.bf16.mxu0 0
        %2619 = vmatmul.mubr.bf16.gmra.mxu0 %v2455
        %v2620 = vpop.f32.mrf.mxu0
        %v2621 = vadd.f32 0.0, %v2620
        %v2622 = vpop.f32.mrf.mxu0
        %v2623 = vpop.f32.mrf.mxu0
        %v2624 = vadd.f32 0.0, %v2623
        %v2625 = vpop.f32.mrf.mxu0
        %2626 = vmatprep.mubr.bf16.mxu0 0
        %2627 = vmatmul.mubr.bf16.gmra.mxu0 %v2458
        %v2628 = vpop.f32.mrf.mxu0
        %v2629 = vadd.f32 0.0, %v2628
        %v2630 = vpop.f32.mrf.mxu0
        %v2631 = vpop.f32.mrf.mxu0
        %v2632 = vadd.f32 0.0, %v2631
        %v2633 = vpop.f32.mrf.mxu0
        %2634 = vmatprep.mubr.bf16.mxu0 0
        %2635 = vmatmul.mubr.bf16.gmra.mxu0 %v2461
        %v2636 = vpop.f32.mrf.mxu0
        %v2637 = vadd.f32 0.0, %v2636
        %v2638 = vpop.f32.mrf.mxu0
        %v2639 = vpop.f32.mrf.mxu0
        %v2640 = vadd.f32 0.0, %v2639
        %v2641 = vpop.f32.mrf.mxu0
        %2642 = vmatprep.mubr.bf16.mxu0 0
        %2643 = vmatmul.mubr.bf16.gmra.mxu0 %v2464
        %v2644 = vpop.f32.mrf.mxu0
        %v2645 = vadd.f32 0.0, %v2644
        %v2646 = vpop.f32.mrf.mxu0
        %v2647 = vpop.f32.mrf.mxu0
        %v2648 = vadd.f32 0.0, %v2647
        %v2649 = vpop.f32.mrf.mxu0
        %2650 = vmatprep.mubr.bf16.mxu0 0
        %2651 = vmatmul.mubr.bf16.gmra.mxu0 %v2467
        %v2652 = vpop.f32.mrf.mxu0
        %v2653 = vadd.f32 0.0, %v2652
        %v2654 = vpop.f32.mrf.mxu0
        %v2655 = vpop.f32.mrf.mxu0
        %v2656 = vadd.f32 0.0, %v2655
        %v2657 = vpop.f32.mrf.mxu0
        %2658 = vmatprep.mubr.bf16.mxu0 0
        %2659 = vmatmul.mubr.bf16.gmra.mxu0 %v2470
        %v2660 = vpop.f32.mrf.mxu0
        %v2661 = vadd.f32 0.0, %v2660
        %v2662 = vpop.f32.mrf.mxu0
        %v2663 = vpop.f32.mrf.mxu0
        %v2664 = vadd.f32 0.0, %v2663
        %v2665 = vpop.f32.mrf.mxu0
        %2666 = vmatprep.mubr.bf16.mxu0 0
        %2667 = vmatmul.mubr.bf16.gmra.mxu0 %v2473
        %v2668 = vpop.f32.mrf.mxu0
        %v2669 = vadd.f32 0.0, %v2668
        %v2670 = vpop.f32.mrf.mxu0
        %v2671 = vpop.f32.mrf.mxu0
        %v2672 = vadd.f32 0.0, %v2671
        %v2673 = vpop.f32.mrf.mxu0
        %2674 = vmatprep.mubr.bf16.mxu0 0
        %2675 = vmatmul.mubr.bf16.gmra.mxu0 %v2476
        %v2676 = vpop.f32.mrf.mxu0
        %v2677 = vadd.f32 0.0, %v2676
        %v2678 = vpop.f32.mrf.mxu0
        %v2679 = vpop.f32.mrf.mxu0
        %v2680 = vadd.f32 0.0, %v2679
        %v2681 = vpop.f32.mrf.mxu0
        %2682 = vmatprep.mubr.bf16.mxu0 0
        %2683 = vmatmul.mubr.bf16.gmra.mxu0 %v2479
        %v2684 = vpop.f32.mrf.mxu0
        %v2685 = vadd.f32 0.0, %v2684
        %v2686 = vpop.f32.mrf.mxu0
        %v2687 = vpop.f32.mrf.mxu0
        %v2688 = vadd.f32 0.0, %v2687
        %v2689 = vpop.f32.mrf.mxu0
        %2690 = vmatprep.mubr.bf16.mxu0 0
        %2691 = vmatmul.mubr.bf16.gmra.mxu0 %v2482
        %v2692 = vpop.f32.mrf.mxu0
        %v2693 = vadd.f32 0.0, %v2692
        %v2694 = vpop.f32.mrf.mxu0
        %v2695 = vpop.f32.mrf.mxu0
        %v2696 = vadd.f32 0.0, %v2695
        %v2697 = vpop.f32.mrf.mxu0
        %2698 = vmatprep.mubr.bf16.mxu0 0
        %2699 = vmatmul.mubr.bf16.gmra.mxu0 %v2485
        %v2700 = vpop.f32.mrf.mxu0
        %v2701 = vadd.f32 0.0, %v2700
        %v2702 = vpop.f32.mrf.mxu0
        %v2703 = vpop.f32.mrf.mxu0
        %v2704 = vadd.f32 0.0, %v2703
        %v2705 = vpop.f32.mrf.mxu0
        %2706 = vmatprep.mubr.bf16.mxu0 0
        %2707 = vmatmul.mubr.bf16.gmra.mxu0 %v2488
        %v2708 = vpop.f32.mrf.mxu0
        %v2709 = vadd.f32 0.0, %v2708
        %v2710 = vpop.f32.mrf.mxu0
        %v2711 = vpop.f32.mrf.mxu0
        %v2712 = vadd.f32 0.0, %v2711
        %v2713 = vpop.f32.mrf.mxu0
        %2714 = vdwg.mxu0
        %v2715 = vadd.f32 %v2104, %v2525
        %v2716 = vadd.f32 %v2105, %v2528
        %v2717 = vadd.f32 %v2106, %v2533
        %v2718 = vadd.f32 %v2107, %v2536
        %v2719 = vadd.f32 %v2108, %v2541
        %v2720 = vadd.f32 %v2109, %v2544
        %v2721 = vadd.f32 %v2110, %v2549
        %v2722 = vadd.f32 %v2111, %v2552
        %v2723 = vadd.f32 %v2112, %v2557
        %v2724 = vadd.f32 %v2113, %v2560
        %v2725 = vadd.f32 %v2114, %v2565
        %v2726 = vadd.f32 %v2115, %v2568
        %v2727 = vadd.f32 %v2116, %v2573
        %v2728 = vadd.f32 %v2117, %v2576
        %v2729 = vadd.f32 %v2118, %v2581
        %v2730 = vadd.f32 %v2119, %v2584
        %v2731 = vadd.f32 %v2120, %v2589
        %v2732 = vadd.f32 %v2121, %v2592
        %v2733 = vadd.f32 %v2122, %v2597
        %v2734 = vadd.f32 %v2123, %v2600
        %v2735 = vadd.f32 %v2124, %v2605
        %v2736 = vadd.f32 %v2125, %v2608
        %v2737 = vadd.f32 %v2126, %v2613
        %v2738 = vadd.f32 %v2127, %v2616
        %v2739 = vadd.f32 %v2128, %v2621
        %v2740 = vadd.f32 %v2129, %v2624
        %v2741 = vadd.f32 %v2130, %v2629
        %v2742 = vadd.f32 %v2131, %v2632
        %v2743 = vadd.f32 %v2132, %v2637
        %v2744 = vadd.f32 %v2133, %v2640
        %v2745 = vadd.f32 %v2134, %v2645
        %v2746 = vadd.f32 %v2135, %v2648
        %v2747 = vadd.f32 %v2136, %v2653
        %v2748 = vadd.f32 %v2137, %v2656
        %v2749 = vadd.f32 %v2138, %v2661
        %v2750 = vadd.f32 %v2139, %v2664
        %v2751 = vadd.f32 %v2140, %v2669
        %v2752 = vadd.f32 %v2141, %v2672
        %v2753 = vadd.f32 %v2142, %v2677
        %v2754 = vadd.f32 %v2143, %v2680
        %v2755 = vadd.f32 %v2144, %v2685
        %v2756 = vadd.f32 %v2145, %v2688
        %v2757 = vadd.f32 %v2146, %v2693
        %v2758 = vadd.f32 %v2147, %v2696
        %v2759 = vadd.f32 %v2148, %v2701
        %v2760 = vadd.f32 %v2149, %v2704
        %v2761 = vadd.f32 %v2150, %v2709
        %v2762 = vadd.f32 %v2151, %v2712
        %v2765 = vunpack.c.l.b16 %v1200
        %v2766 = vunpack.c.h.b16 %v1200
        %v2767 = vunpack.c.l.b16 %v1201
        %s2768 = scalar_lea.vmem %s3, 48
        %v2769 = vld [vmem:[%s2768] sm:$0xf]
        %v2770 = vld [vmem:[%s2768 + $0x4] sm:$0xf]
        %v2771 = vld [vmem:[%s2768 + $0x8] sm:$0xf]
        %v2772 = vld [vmem:[%s2768 + $0xc] sm:$0xf]
        %v2773 = vpack.c.b16 %v1240, %v1239
        %v2774 = vpack.c.b16 %v1242, %v1241
        %v2775 = vpack.c.b16 %v1244, %v1243
        %v2776 = vpack.c.b16 %v1246, %v1245
        %v2777 = vpack.c.b16 %v1248, %v1247
        %v2778 = vpack.c.b16 %v1250, %v1249
        %v2779 = vpack.c.b16 %v1252, %v1251
        %v2780 = vpack.c.b16 %v1254, %v1253
        %v2781 = vpack.c.b16 %v1256, %v1255
        %v2782 = vpack.c.b16 %v1258, %v1257
        %v2783 = vpack.c.b16 %v1260, %v1259
        %v2784 = vpack.c.b16 %v1262, %v1261
        %v2785 = vpack.c.b16 %v1264, %v1263
        %v2786 = vpack.c.b16 %v1266, %v1265
        %v2787 = vpack.c.b16 %v1268, %v1267
        %v2788 = vpack.c.b16 %v1270, %v1269
        %v2789 = vpack.c.b16 %v1272, %v1271
        %v2790 = vpack.c.b16 %v1274, %v1273
        %v2791 = vpack.c.b16 %v1276, %v1275
        %v2792 = vpack.c.b16 %v1278, %v1277
        %v2793 = vpack.c.b16 %v1280, %v1279
        %v2794 = vpack.c.b16 %v1282, %v1281
        %v2795 = vpack.c.b16 %v2765, %v1283
        %v2796 = vpack.c.b16 %v2767, %v2766
        %v2801 = vunpack.c.l.b16 %v2769
        %v2802 = vunpack.c.l.b16 %v2770
        %v2803 = vunpack.c.l.b16 %v2771
        %v2804 = vunpack.c.l.b16 %v2772
        %v2805 = vpack.c.b16 %v2802, %v2801
        %v2806 = vpack.c.b16 %v2804, %v2803
        %v2810 = vsel %vm1324, %v2773, 0
        %v2813 = vsel %vm1324, %v2774, 0
        %v2816 = vsel %vm1324, %v2775, 0
        %v2819 = vsel %vm1324, %v2776, 0
        %v2822 = vsel %vm1324, %v2777, 0
        %v2825 = vsel %vm1324, %v2778, 0
        %v2828 = vsel %vm1324, %v2779, 0
        %v2831 = vsel %vm1324, %v2780, 0
        %v2834 = vsel %vm1324, %v2781, 0
        %v2837 = vsel %vm1324, %v2782, 0
        %v2840 = vsel %vm1324, %v2783, 0
        %v2843 = vsel %vm1324, %v2784, 0
        %v2846 = vsel %vm1324, %v2785, 0
        %v2849 = vsel %vm1324, %v2786, 0
        %v2852 = vsel %vm1324, %v2787, 0
        %v2855 = vsel %vm1324, %v2788, 0
        %v2858 = vsel %vm1324, %v2789, 0
        %v2861 = vsel %vm1324, %v2790, 0
        %v2864 = vsel %vm1324, %v2791, 0
        %v2867 = vsel %vm1324, %v2792, 0
        %v2870 = vsel %vm1324, %v2793, 0
        %v2873 = vsel %vm1324, %v2794, 0
        %v2876 = vsel %vm1324, %v2795, 0
        %v2879 = vsel %vm1324, %v2796, 0
        %2881 = vmatprep.subr.bf16.mxu0 0
        %2882 = vmatpush1.bf16.msra.mxu0 0
        %2883 = vmatprep.subr.bf16.mxu0 0
        %2884 = vmatpush1.bf16.msra.mxu0 0
        %2885 = vmatprep.subr.bf16.mxu0 0
        %2886 = vmatpush1.bf16.msra.mxu0 0
        %2887 = vmatprep.subr.bf16.mxu0 0
        %2888 = vmatpush1.bf16.msra.mxu0 0
        %2889 = vmatprep.subr.bf16.mxu0 0
        %2890 = vmatpush1.bf16.msra.mxu0 0
        %2891 = vmatprep.subr.bf16.mxu0 0
        %2892 = vmatpush1.bf16.msra.mxu0 0
        %2893 = vmatprep.subr.bf16.mxu0 0
        %2894 = vmatpush1.bf16.msra.mxu0 %v2806
        %2895 = vmatprep.subr.bf16.mxu0 0
        %2896 = vmatpush1.bf16.msra.mxu0 %v2805
        %2897 = vmatprep.subr.bf16.mxu0 0
        %2898 = vmatpush2.bf16.msra.mxu0 0
        %2899 = vmatprep.subr.bf16.mxu0 0
        %2900 = vmatpush2.bf16.msra.mxu0 0
        %2901 = vmatprep.subr.bf16.mxu0 0
        %2902 = vmatpush2.bf16.msra.mxu0 0
        %2903 = vmatprep.subr.bf16.mxu0 0
        %2904 = vmatpush2.bf16.msra.mxu0 0
        %2905 = vmatprep.subr.bf16.mxu0 0
        %2906 = vmatpush2.bf16.msra.mxu0 0
        %2907 = vmatprep.subr.bf16.mxu0 0
        %2908 = vmatpush2.bf16.msra.mxu0 0
        %2909 = vmatprep.subr.bf16.mxu0 0
        %2910 = vmatpush2.bf16.msra.mxu0 0
        %2911 = vmatprep.subr.bf16.mxu0 0
        %2912 = vmatpush2.bf16.msra.mxu0 0
        %2913 = vmatprep.mubr.bf16.mxu0 0
        %2914 = vmatmul.mubr.bf16.gmra.mxu0 %v2810
        %v2915 = vpop.f32.mrf.mxu0
        %v2916 = vadd.f32 0.0, %v2915
        %v2917 = vpop.f32.mrf.mxu0
        %v2918 = vpop.f32.mrf.mxu0
        %v2919 = vadd.f32 0.0, %v2918
        %v2920 = vpop.f32.mrf.mxu0
        %2921 = vmatprep.mubr.bf16.mxu0 0
        %2922 = vmatmul.mubr.bf16.gmra.mxu0 %v2813
        %v2923 = vpop.f32.mrf.mxu0
        %v2924 = vadd.f32 0.0, %v2923
        %v2925 = vpop.f32.mrf.mxu0
        %v2926 = vpop.f32.mrf.mxu0
        %v2927 = vadd.f32 0.0, %v2926
        %v2928 = vpop.f32.mrf.mxu0
        %2929 = vmatprep.mubr.bf16.mxu0 0
        %2930 = vmatmul.mubr.bf16.gmra.mxu0 %v2816
        %v2931 = vpop.f32.mrf.mxu0
        %v2932 = vadd.f32 0.0, %v2931
        %v2933 = vpop.f32.mrf.mxu0
        %v2934 = vpop.f32.mrf.mxu0
        %v2935 = vadd.f32 0.0, %v2934
        %v2936 = vpop.f32.mrf.mxu0
        %2937 = vmatprep.mubr.bf16.mxu0 0
        %2938 = vmatmul.mubr.bf16.gmra.mxu0 %v2819
        %v2939 = vpop.f32.mrf.mxu0
        %v2940 = vadd.f32 0.0, %v2939
        %v2941 = vpop.f32.mrf.mxu0
        %v2942 = vpop.f32.mrf.mxu0
        %v2943 = vadd.f32 0.0, %v2942
        %v2944 = vpop.f32.mrf.mxu0
        %2945 = vmatprep.mubr.bf16.mxu0 0
        %2946 = vmatmul.mubr.bf16.gmra.mxu0 %v2822
        %v2947 = vpop.f32.mrf.mxu0
        %v2948 = vadd.f32 0.0, %v2947
        %v2949 = vpop.f32.mrf.mxu0
        %v2950 = vpop.f32.mrf.mxu0
        %v2951 = vadd.f32 0.0, %v2950
        %v2952 = vpop.f32.mrf.mxu0
        %2953 = vmatprep.mubr.bf16.mxu0 0
        %2954 = vmatmul.mubr.bf16.gmra.mxu0 %v2825
        %v2955 = vpop.f32.mrf.mxu0
        %v2956 = vadd.f32 0.0, %v2955
        %v2957 = vpop.f32.mrf.mxu0
        %v2958 = vpop.f32.mrf.mxu0
        %v2959 = vadd.f32 0.0, %v2958
        %v2960 = vpop.f32.mrf.mxu0
        %2961 = vmatprep.mubr.bf16.mxu0 0
        %2962 = vmatmul.mubr.bf16.gmra.mxu0 %v2828
        %v2963 = vpop.f32.mrf.mxu0
        %v2964 = vadd.f32 0.0, %v2963
        %v2965 = vpop.f32.mrf.mxu0
        %v2966 = vpop.f32.mrf.mxu0
        %v2967 = vadd.f32 0.0, %v2966
        %v2968 = vpop.f32.mrf.mxu0
        %2969 = vmatprep.mubr.bf16.mxu0 0
        %2970 = vmatmul.mubr.bf16.gmra.mxu0 %v2831
        %v2971 = vpop.f32.mrf.mxu0
        %v2972 = vadd.f32 0.0, %v2971
        %v2973 = vpop.f32.mrf.mxu0
        %v2974 = vpop.f32.mrf.mxu0
        %v2975 = vadd.f32 0.0, %v2974
        %v2976 = vpop.f32.mrf.mxu0
        %2977 = vmatprep.mubr.bf16.mxu0 0
        %2978 = vmatmul.mubr.bf16.gmra.mxu0 %v2834
        %v2979 = vpop.f32.mrf.mxu0
        %v2980 = vadd.f32 0.0, %v2979
        %v2981 = vpop.f32.mrf.mxu0
        %v2982 = vpop.f32.mrf.mxu0
        %v2983 = vadd.f32 0.0, %v2982
        %v2984 = vpop.f32.mrf.mxu0
        %2985 = vmatprep.mubr.bf16.mxu0 0
        %2986 = vmatmul.mubr.bf16.gmra.mxu0 %v2837
        %v2987 = vpop.f32.mrf.mxu0
        %v2988 = vadd.f32 0.0, %v2987
        %v2989 = vpop.f32.mrf.mxu0
        %v2990 = vpop.f32.mrf.mxu0
        %v2991 = vadd.f32 0.0, %v2990
        %v2992 = vpop.f32.mrf.mxu0
        %2993 = vmatprep.mubr.bf16.mxu0 0
        %2994 = vmatmul.mubr.bf16.gmra.mxu0 %v2840
        %v2995 = vpop.f32.mrf.mxu0
        %v2996 = vadd.f32 0.0, %v2995
        %v2997 = vpop.f32.mrf.mxu0
        %v2998 = vpop.f32.mrf.mxu0
        %v2999 = vadd.f32 0.0, %v2998
        %v3000 = vpop.f32.mrf.mxu0
        %3001 = vmatprep.mubr.bf16.mxu0 0
        %3002 = vmatmul.mubr.bf16.gmra.mxu0 %v2843
        %v3003 = vpop.f32.mrf.mxu0
        %v3004 = vadd.f32 0.0, %v3003
        %v3005 = vpop.f32.mrf.mxu0
        %v3006 = vpop.f32.mrf.mxu0
        %v3007 = vadd.f32 0.0, %v3006
        %v3008 = vpop.f32.mrf.mxu0
        %3009 = vmatprep.mubr.bf16.mxu0 0
        %3010 = vmatmul.mubr.bf16.gmra.mxu0 %v2846
        %v3011 = vpop.f32.mrf.mxu0
        %v3012 = vadd.f32 0.0, %v3011
        %v3013 = vpop.f32.mrf.mxu0
        %v3014 = vpop.f32.mrf.mxu0
        %v3015 = vadd.f32 0.0, %v3014
        %v3016 = vpop.f32.mrf.mxu0
        %3017 = vmatprep.mubr.bf16.mxu0 0
        %3018 = vmatmul.mubr.bf16.gmra.mxu0 %v2849
        %v3019 = vpop.f32.mrf.mxu0
        %v3020 = vadd.f32 0.0, %v3019
        %v3021 = vpop.f32.mrf.mxu0
        %v3022 = vpop.f32.mrf.mxu0
        %v3023 = vadd.f32 0.0, %v3022
        %v3024 = vpop.f32.mrf.mxu0
        %3025 = vmatprep.mubr.bf16.mxu0 0
        %3026 = vmatmul.mubr.bf16.gmra.mxu0 %v2852
        %v3027 = vpop.f32.mrf.mxu0
        %v3028 = vadd.f32 0.0, %v3027
        %v3029 = vpop.f32.mrf.mxu0
        %v3030 = vpop.f32.mrf.mxu0
        %v3031 = vadd.f32 0.0, %v3030
        %v3032 = vpop.f32.mrf.mxu0
        %3033 = vmatprep.mubr.bf16.mxu0 0
        %3034 = vmatmul.mubr.bf16.gmra.mxu0 %v2855
        %v3035 = vpop.f32.mrf.mxu0
        %v3036 = vadd.f32 0.0, %v3035
        %v3037 = vpop.f32.mrf.mxu0
        %v3038 = vpop.f32.mrf.mxu0
        %v3039 = vadd.f32 0.0, %v3038
        %v3040 = vpop.f32.mrf.mxu0
        %3041 = vmatprep.mubr.bf16.mxu0 0
        %3042 = vmatmul.mubr.bf16.gmra.mxu0 %v2858
        %v3043 = vpop.f32.mrf.mxu0
        %v3044 = vadd.f32 0.0, %v3043
        %v3045 = vpop.f32.mrf.mxu0
        %v3046 = vpop.f32.mrf.mxu0
        %v3047 = vadd.f32 0.0, %v3046
        %v3048 = vpop.f32.mrf.mxu0
        %3049 = vmatprep.mubr.bf16.mxu0 0
        %3050 = vmatmul.mubr.bf16.gmra.mxu0 %v2861
        %v3051 = vpop.f32.mrf.mxu0
        %v3052 = vadd.f32 0.0, %v3051
        %v3053 = vpop.f32.mrf.mxu0
        %v3054 = vpop.f32.mrf.mxu0
        %v3055 = vadd.f32 0.0, %v3054
        %v3056 = vpop.f32.mrf.mxu0
        %3057 = vmatprep.mubr.bf16.mxu0 0
        %3058 = vmatmul.mubr.bf16.gmra.mxu0 %v2864
        %v3059 = vpop.f32.mrf.mxu0
        %v3060 = vadd.f32 0.0, %v3059
        %v3061 = vpop.f32.mrf.mxu0
        %v3062 = vpop.f32.mrf.mxu0
        %v3063 = vadd.f32 0.0, %v3062
        %v3064 = vpop.f32.mrf.mxu0
        %3065 = vmatprep.mubr.bf16.mxu0 0
        %3066 = vmatmul.mubr.bf16.gmra.mxu0 %v2867
        %v3067 = vpop.f32.mrf.mxu0
        %v3068 = vadd.f32 0.0, %v3067
        %v3069 = vpop.f32.mrf.mxu0
        %v3070 = vpop.f32.mrf.mxu0
        %v3071 = vadd.f32 0.0, %v3070
        %v3072 = vpop.f32.mrf.mxu0
        %3073 = vmatprep.mubr.bf16.mxu0 0
        %3074 = vmatmul.mubr.bf16.gmra.mxu0 %v2870
        %v3075 = vpop.f32.mrf.mxu0
        %v3076 = vadd.f32 0.0, %v3075
        %v3077 = vpop.f32.mrf.mxu0
        %v3078 = vpop.f32.mrf.mxu0
        %v3079 = vadd.f32 0.0, %v3078
        %v3080 = vpop.f32.mrf.mxu0
        %3081 = vmatprep.mubr.bf16.mxu0 0
        %3082 = vmatmul.mubr.bf16.gmra.mxu0 %v2873
        %v3083 = vpop.f32.mrf.mxu0
        %v3084 = vadd.f32 0.0, %v3083
        %v3085 = vpop.f32.mrf.mxu0
        %v3086 = vpop.f32.mrf.mxu0
        %v3087 = vadd.f32 0.0, %v3086
        %v3088 = vpop.f32.mrf.mxu0
        %3089 = vmatprep.mubr.bf16.mxu0 0
        %3090 = vmatmul.mubr.bf16.gmra.mxu0 %v2876
        %v3091 = vpop.f32.mrf.mxu0
        %v3092 = vadd.f32 0.0, %v3091
        %v3093 = vpop.f32.mrf.mxu0
        %v3094 = vpop.f32.mrf.mxu0
        %v3095 = vadd.f32 0.0, %v3094
        %v3096 = vpop.f32.mrf.mxu0
        %3097 = vmatprep.mubr.bf16.mxu0 0
        %3098 = vmatmul.mubr.bf16.gmra.mxu0 %v2879
        %v3099 = vpop.f32.mrf.mxu0
        %v3100 = vadd.f32 0.0, %v3099
        %v3101 = vpop.f32.mrf.mxu0
        %v3102 = vpop.f32.mrf.mxu0
        %v3103 = vadd.f32 0.0, %v3102
        %v3104 = vpop.f32.mrf.mxu0
        %3105 = vdwg.mxu0
        %v3106 = vadd.f32 %v2715, %v2916
        %v3107 = vadd.f32 %v2716, %v2919
        %v3108 = vadd.f32 %v2717, %v2924
        %v3109 = vadd.f32 %v2718, %v2927
        %v3110 = vadd.f32 %v2719, %v2932
        %v3111 = vadd.f32 %v2720, %v2935
        %v3112 = vadd.f32 %v2721, %v2940
        %v3113 = vadd.f32 %v2722, %v2943
        %v3114 = vadd.f32 %v2723, %v2948
        %v3115 = vadd.f32 %v2724, %v2951
        %v3116 = vadd.f32 %v2725, %v2956
        %v3117 = vadd.f32 %v2726, %v2959
        %v3118 = vadd.f32 %v2727, %v2964
        %v3119 = vadd.f32 %v2728, %v2967
        %v3120 = vadd.f32 %v2729, %v2972
        %v3121 = vadd.f32 %v2730, %v2975
        %v3122 = vadd.f32 %v2731, %v2980
        %v3123 = vadd.f32 %v2732, %v2983
        %v3124 = vadd.f32 %v2733, %v2988
        %v3125 = vadd.f32 %v2734, %v2991
        %v3126 = vadd.f32 %v2735, %v2996
        %v3127 = vadd.f32 %v2736, %v2999
        %v3128 = vadd.f32 %v2737, %v3004
        %v3129 = vadd.f32 %v2738, %v3007
        %v3130 = vadd.f32 %v2739, %v3012
        %v3131 = vadd.f32 %v2740, %v3015
        %v3132 = vadd.f32 %v2741, %v3020
        %v3133 = vadd.f32 %v2742, %v3023
        %v3134 = vadd.f32 %v2743, %v3028
        %v3135 = vadd.f32 %v2744, %v3031
        %v3136 = vadd.f32 %v2745, %v3036
        %v3137 = vadd.f32 %v2746, %v3039
        %v3138 = vadd.f32 %v2747, %v3044
        %v3139 = vadd.f32 %v2748, %v3047
        %v3140 = vadd.f32 %v2749, %v3052
        %v3141 = vadd.f32 %v2750, %v3055
        %v3142 = vadd.f32 %v2751, %v3060
        %v3143 = vadd.f32 %v2752, %v3063
        %v3144 = vadd.f32 %v2753, %v3068
        %v3145 = vadd.f32 %v2754, %v3071
        %v3146 = vadd.f32 %v2755, %v3076
        %v3147 = vadd.f32 %v2756, %v3079
        %v3148 = vadd.f32 %v2757, %v3084
        %v3149 = vadd.f32 %v2758, %v3087
        %v3150 = vadd.f32 %v2759, %v3092
        %v3151 = vadd.f32 %v2760, %v3095
        %v3152 = vadd.f32 %v2761, %v3100
        %v3153 = vadd.f32 %v2762, %v3103
        %s3154 = scalar_lea.vmem %s3, 64
        %v3155 = vld [vmem:[%s3154] sm:$0xf]
        %v3156 = vld [vmem:[%s3154 + $0x4] sm:$0xf]
        %v3157 = vld [vmem:[%s3154 + $0x8] sm:$0xf]
        %v3158 = vld [vmem:[%s3154 + $0xc] sm:$0xf]
        %v3162 = vunpack.c.l.b16 %v997
        %v3163 = vunpack.c.l.b16 %v998
        %v3164 = vunpack.c.l.b16 %v999
        %v3165 = vpack.c.b16 %v1727, %v1726
        %v3166 = vpack.c.b16 %v1729, %v1728
        %v3167 = vpack.c.b16 %v1731, %v1730
        %v3168 = vpack.c.b16 %v1733, %v1732
        %v3169 = vpack.c.b16 %v1735, %v1734
        %v3170 = vpack.c.b16 %v1737, %v1736
        %v3171 = vpack.c.b16 %v1739, %v1738
        %v3172 = vpack.c.b16 %v1741, %v1740
        %v3173 = vpack.c.b16 %v1743, %v1742
        %v3174 = vpack.c.b16 %v1745, %v1744
        %v3175 = vpack.c.b16 %v1747, %v1746
        %v3176 = vpack.c.b16 %v1749, %v1748
        %v3177 = vpack.c.b16 %v1751, %v1750
        %v3178 = vpack.c.b16 %v1753, %v1752
        %v3179 = vpack.c.b16 %v1755, %v1754
        %v3180 = vpack.c.b16 %v1757, %v1756
        %v3181 = vpack.c.b16 %v1759, %v1758
        %v3182 = vpack.c.b16 %v1761, %v1760
        %v3183 = vpack.c.b16 %v1763, %v1762
        %v3184 = vpack.c.b16 %v1765, %v1764
        %v3185 = vpack.c.b16 %v1767, %v1766
        %v3186 = vpack.c.b16 %v1769, %v1768
        %v3187 = vpack.c.b16 %v3162, %v1770
        %v3188 = vpack.c.b16 %v3164, %v3163
        %v3193 = vunpack.c.l.b16 %v3155
        %v3194 = vunpack.c.l.b16 %v3156
        %v3195 = vunpack.c.l.b16 %v3157
        %v3196 = vunpack.c.l.b16 %v3158
        %v3197 = vpack.c.b16 %v3194, %v3193
        %v3198 = vpack.c.b16 %v3196, %v3195
        %v3202 = vsel %vm1324, %v3165, 0
        %v3205 = vsel %vm1324, %v3166, 0
        %v3208 = vsel %vm1324, %v3167, 0
        %v3211 = vsel %vm1324, %v3168, 0
        %v3214 = vsel %vm1324, %v3169, 0
        %v3217 = vsel %vm1324, %v3170, 0
        %v3220 = vsel %vm1324, %v3171, 0
        %v3223 = vsel %vm1324, %v3172, 0
        %v3226 = vsel %vm1324, %v3173, 0
        %v3229 = vsel %vm1324, %v3174, 0
        %v3232 = vsel %vm1324, %v3175, 0
        %v3235 = vsel %vm1324, %v3176, 0
        %v3238 = vsel %vm1324, %v3177, 0
        %v3241 = vsel %vm1324, %v3178, 0
        %v3244 = vsel %vm1324, %v3179, 0
        %v3247 = vsel %vm1324, %v3180, 0
        %v3250 = vsel %vm1324, %v3181, 0
        %v3253 = vsel %vm1324, %v3182, 0
        %v3256 = vsel %vm1324, %v3183, 0
        %v3259 = vsel %vm1324, %v3184, 0
        %v3262 = vsel %vm1324, %v3185, 0
        %v3265 = vsel %vm1324, %v3186, 0
        %v3268 = vsel %vm1324, %v3187, 0
        %v3271 = vsel %vm1324, %v3188, 0
        %3273 = vmatprep.subr.bf16.mxu0 0
        %3274 = vmatpush1.bf16.msra.mxu0 0
        %3275 = vmatprep.subr.bf16.mxu0 0
        %3276 = vmatpush1.bf16.msra.mxu0 0
        %3277 = vmatprep.subr.bf16.mxu0 0
        %3278 = vmatpush1.bf16.msra.mxu0 0
        %3279 = vmatprep.subr.bf16.mxu0 0
        %3280 = vmatpush1.bf16.msra.mxu0 0
        %3281 = vmatprep.subr.bf16.mxu0 0
        %3282 = vmatpush1.bf16.msra.mxu0 0
        %3283 = vmatprep.subr.bf16.mxu0 0
        %3284 = vmatpush1.bf16.msra.mxu0 0
        %3285 = vmatprep.subr.bf16.mxu0 0
        %3286 = vmatpush1.bf16.msra.mxu0 %v3198
        %3287 = vmatprep.subr.bf16.mxu0 0
        %3288 = vmatpush1.bf16.msra.mxu0 %v3197
        %3289 = vmatprep.subr.bf16.mxu0 0
        %3290 = vmatpush2.bf16.msra.mxu0 0
        %3291 = vmatprep.subr.bf16.mxu0 0
        %3292 = vmatpush2.bf16.msra.mxu0 0
        %3293 = vmatprep.subr.bf16.mxu0 0
        %3294 = vmatpush2.bf16.msra.mxu0 0
        %3295 = vmatprep.subr.bf16.mxu0 0
        %3296 = vmatpush2.bf16.msra.mxu0 0
        %3297 = vmatprep.subr.bf16.mxu0 0
        %3298 = vmatpush2.bf16.msra.mxu0 0
        %3299 = vmatprep.subr.bf16.mxu0 0
        %3300 = vmatpush2.bf16.msra.mxu0 0
        %3301 = vmatprep.subr.bf16.mxu0 0
        %3302 = vmatpush2.bf16.msra.mxu0 0
        %3303 = vmatprep.subr.bf16.mxu0 0
        %3304 = vmatpush2.bf16.msra.mxu0 0
        %3305 = vmatprep.mubr.bf16.mxu0 0
        %3306 = vmatmul.mubr.bf16.gmra.mxu0 %v3202
        %v3307 = vpop.f32.mrf.mxu0
        %v3308 = vadd.f32 0.0, %v3307
        %v3309 = vpop.f32.mrf.mxu0
        %v3310 = vpop.f32.mrf.mxu0
        %v3311 = vadd.f32 0.0, %v3310
        %v3312 = vpop.f32.mrf.mxu0
        %3313 = vmatprep.mubr.bf16.mxu0 0
        %3314 = vmatmul.mubr.bf16.gmra.mxu0 %v3205
        %v3315 = vpop.f32.mrf.mxu0
        %v3316 = vadd.f32 0.0, %v3315
        %v3317 = vpop.f32.mrf.mxu0
        %v3318 = vpop.f32.mrf.mxu0
        %v3319 = vadd.f32 0.0, %v3318
        %v3320 = vpop.f32.mrf.mxu0
        %3321 = vmatprep.mubr.bf16.mxu0 0
        %3322 = vmatmul.mubr.bf16.gmra.mxu0 %v3208
        %v3323 = vpop.f32.mrf.mxu0
        %v3324 = vadd.f32 0.0, %v3323
        %v3325 = vpop.f32.mrf.mxu0
        %v3326 = vpop.f32.mrf.mxu0
        %v3327 = vadd.f32 0.0, %v3326
        %v3328 = vpop.f32.mrf.mxu0
        %3329 = vmatprep.mubr.bf16.mxu0 0
        %3330 = vmatmul.mubr.bf16.gmra.mxu0 %v3211
        %v3331 = vpop.f32.mrf.mxu0
        %v3332 = vadd.f32 0.0, %v3331
        %v3333 = vpop.f32.mrf.mxu0
        %v3334 = vpop.f32.mrf.mxu0
        %v3335 = vadd.f32 0.0, %v3334
        %v3336 = vpop.f32.mrf.mxu0
        %3337 = vmatprep.mubr.bf16.mxu0 0
        %3338 = vmatmul.mubr.bf16.gmra.mxu0 %v3214
        %v3339 = vpop.f32.mrf.mxu0
        %v3340 = vadd.f32 0.0, %v3339
        %v3341 = vpop.f32.mrf.mxu0
        %v3342 = vpop.f32.mrf.mxu0
        %v3343 = vadd.f32 0.0, %v3342
        %v3344 = vpop.f32.mrf.mxu0
        %3345 = vmatprep.mubr.bf16.mxu0 0
        %3346 = vmatmul.mubr.bf16.gmra.mxu0 %v3217
        %v3347 = vpop.f32.mrf.mxu0
        %v3348 = vadd.f32 0.0, %v3347
        %v3349 = vpop.f32.mrf.mxu0
        %v3350 = vpop.f32.mrf.mxu0
        %v3351 = vadd.f32 0.0, %v3350
        %v3352 = vpop.f32.mrf.mxu0
        %3353 = vmatprep.mubr.bf16.mxu0 0
        %3354 = vmatmul.mubr.bf16.gmra.mxu0 %v3220
        %v3355 = vpop.f32.mrf.mxu0
        %v3356 = vadd.f32 0.0, %v3355
        %v3357 = vpop.f32.mrf.mxu0
        %v3358 = vpop.f32.mrf.mxu0
        %v3359 = vadd.f32 0.0, %v3358
        %v3360 = vpop.f32.mrf.mxu0
        %3361 = vmatprep.mubr.bf16.mxu0 0
        %3362 = vmatmul.mubr.bf16.gmra.mxu0 %v3223
        %v3363 = vpop.f32.mrf.mxu0
        %v3364 = vadd.f32 0.0, %v3363
        %v3365 = vpop.f32.mrf.mxu0
        %v3366 = vpop.f32.mrf.mxu0
        %v3367 = vadd.f32 0.0, %v3366
        %v3368 = vpop.f32.mrf.mxu0
        %3369 = vmatprep.mubr.bf16.mxu0 0
        %3370 = vmatmul.mubr.bf16.gmra.mxu0 %v3226
        %v3371 = vpop.f32.mrf.mxu0
        %v3372 = vadd.f32 0.0, %v3371
        %v3373 = vpop.f32.mrf.mxu0
        %v3374 = vpop.f32.mrf.mxu0
        %v3375 = vadd.f32 0.0, %v3374
        %v3376 = vpop.f32.mrf.mxu0
        %3377 = vmatprep.mubr.bf16.mxu0 0
        %3378 = vmatmul.mubr.bf16.gmra.mxu0 %v3229
        %v3379 = vpop.f32.mrf.mxu0
        %v3380 = vadd.f32 0.0, %v3379
        %v3381 = vpop.f32.mrf.mxu0
        %v3382 = vpop.f32.mrf.mxu0
        %v3383 = vadd.f32 0.0, %v3382
        %v3384 = vpop.f32.mrf.mxu0
        %3385 = vmatprep.mubr.bf16.mxu0 0
        %3386 = vmatmul.mubr.bf16.gmra.mxu0 %v3232
        %v3387 = vpop.f32.mrf.mxu0
        %v3388 = vadd.f32 0.0, %v3387
        %v3389 = vpop.f32.mrf.mxu0
        %v3390 = vpop.f32.mrf.mxu0
        %v3391 = vadd.f32 0.0, %v3390
        %v3392 = vpop.f32.mrf.mxu0
        %3393 = vmatprep.mubr.bf16.mxu0 0
        %3394 = vmatmul.mubr.bf16.gmra.mxu0 %v3235
        %v3395 = vpop.f32.mrf.mxu0
        %v3396 = vadd.f32 0.0, %v3395
        %v3397 = vpop.f32.mrf.mxu0
        %v3398 = vpop.f32.mrf.mxu0
        %v3399 = vadd.f32 0.0, %v3398
        %v3400 = vpop.f32.mrf.mxu0
        %3401 = vmatprep.mubr.bf16.mxu0 0
        %3402 = vmatmul.mubr.bf16.gmra.mxu0 %v3238
        %v3403 = vpop.f32.mrf.mxu0
        %v3404 = vadd.f32 0.0, %v3403
        %v3405 = vpop.f32.mrf.mxu0
        %v3406 = vpop.f32.mrf.mxu0
        %v3407 = vadd.f32 0.0, %v3406
        %v3408 = vpop.f32.mrf.mxu0
        %3409 = vmatprep.mubr.bf16.mxu0 0
        %3410 = vmatmul.mubr.bf16.gmra.mxu0 %v3241
        %v3411 = vpop.f32.mrf.mxu0
        %v3412 = vadd.f32 0.0, %v3411
        %v3413 = vpop.f32.mrf.mxu0
        %v3414 = vpop.f32.mrf.mxu0
        %v3415 = vadd.f32 0.0, %v3414
        %v3416 = vpop.f32.mrf.mxu0
        %3417 = vmatprep.mubr.bf16.mxu0 0
        %3418 = vmatmul.mubr.bf16.gmra.mxu0 %v3244
        %v3419 = vpop.f32.mrf.mxu0
        %v3420 = vadd.f32 0.0, %v3419
        %v3421 = vpop.f32.mrf.mxu0
        %v3422 = vpop.f32.mrf.mxu0
        %v3423 = vadd.f32 0.0, %v3422
        %v3424 = vpop.f32.mrf.mxu0
        %3425 = vmatprep.mubr.bf16.mxu0 0
        %3426 = vmatmul.mubr.bf16.gmra.mxu0 %v3247
        %v3427 = vpop.f32.mrf.mxu0
        %v3428 = vadd.f32 0.0, %v3427
        %v3429 = vpop.f32.mrf.mxu0
        %v3430 = vpop.f32.mrf.mxu0
        %v3431 = vadd.f32 0.0, %v3430
        %v3432 = vpop.f32.mrf.mxu0
        %3433 = vmatprep.mubr.bf16.mxu0 0
        %3434 = vmatmul.mubr.bf16.gmra.mxu0 %v3250
        %v3435 = vpop.f32.mrf.mxu0
        %v3436 = vadd.f32 0.0, %v3435
        %v3437 = vpop.f32.mrf.mxu0
        %v3438 = vpop.f32.mrf.mxu0
        %v3439 = vadd.f32 0.0, %v3438
        %v3440 = vpop.f32.mrf.mxu0
        %3441 = vmatprep.mubr.bf16.mxu0 0
        %3442 = vmatmul.mubr.bf16.gmra.mxu0 %v3253
        %v3443 = vpop.f32.mrf.mxu0
        %v3444 = vadd.f32 0.0, %v3443
        %v3445 = vpop.f32.mrf.mxu0
        %v3446 = vpop.f32.mrf.mxu0
        %v3447 = vadd.f32 0.0, %v3446
        %v3448 = vpop.f32.mrf.mxu0
        %3449 = vmatprep.mubr.bf16.mxu0 0
        %3450 = vmatmul.mubr.bf16.gmra.mxu0 %v3256
        %v3451 = vpop.f32.mrf.mxu0
        %v3452 = vadd.f32 0.0, %v3451
        %v3453 = vpop.f32.mrf.mxu0
        %v3454 = vpop.f32.mrf.mxu0
        %v3455 = vadd.f32 0.0, %v3454
        %v3456 = vpop.f32.mrf.mxu0
        %3457 = vmatprep.mubr.bf16.mxu0 0
        %3458 = vmatmul.mubr.bf16.gmra.mxu0 %v3259
        %v3459 = vpop.f32.mrf.mxu0
        %v3460 = vadd.f32 0.0, %v3459
        %v3461 = vpop.f32.mrf.mxu0
        %v3462 = vpop.f32.mrf.mxu0
        %v3463 = vadd.f32 0.0, %v3462
        %v3464 = vpop.f32.mrf.mxu0
        %3465 = vmatprep.mubr.bf16.mxu0 0
        %3466 = vmatmul.mubr.bf16.gmra.mxu0 %v3262
        %v3467 = vpop.f32.mrf.mxu0
        %v3468 = vadd.f32 0.0, %v3467
        %v3469 = vpop.f32.mrf.mxu0
        %v3470 = vpop.f32.mrf.mxu0
        %v3471 = vadd.f32 0.0, %v3470
        %v3472 = vpop.f32.mrf.mxu0
        %3473 = vmatprep.mubr.bf16.mxu0 0
        %3474 = vmatmul.mubr.bf16.gmra.mxu0 %v3265
        %v3475 = vpop.f32.mrf.mxu0
        %v3476 = vadd.f32 0.0, %v3475
        %v3477 = vpop.f32.mrf.mxu0
        %v3478 = vpop.f32.mrf.mxu0
        %v3479 = vadd.f32 0.0, %v3478
        %v3480 = vpop.f32.mrf.mxu0
        %3481 = vmatprep.mubr.bf16.mxu0 0
        %3482 = vmatmul.mubr.bf16.gmra.mxu0 %v3268
        %v3483 = vpop.f32.mrf.mxu0
        %v3484 = vadd.f32 0.0, %v3483
        %v3485 = vpop.f32.mrf.mxu0
        %v3486 = vpop.f32.mrf.mxu0
        %v3487 = vadd.f32 0.0, %v3486
        %v3488 = vpop.f32.mrf.mxu0
        %3489 = vmatprep.mubr.bf16.mxu0 0
        %3490 = vmatmul.mubr.bf16.gmra.mxu0 %v3271
        %v3491 = vpop.f32.mrf.mxu0
        %v3492 = vadd.f32 0.0, %v3491
        %v3493 = vpop.f32.mrf.mxu0
        %v3494 = vpop.f32.mrf.mxu0
        %v3495 = vadd.f32 0.0, %v3494
        %v3496 = vpop.f32.mrf.mxu0
        %3497 = vdwg.mxu0
        %v3498 = vadd.f32 %v3106, %v3308
        %v3499 = vadd.f32 %v3107, %v3311
        %v3500 = vadd.f32 %v3108, %v3316
        %v3501 = vadd.f32 %v3109, %v3319
        %v3502 = vadd.f32 %v3110, %v3324
        %v3503 = vadd.f32 %v3111, %v3327
        %v3504 = vadd.f32 %v3112, %v3332
        %v3505 = vadd.f32 %v3113, %v3335
        %v3506 = vadd.f32 %v3114, %v3340
        %v3507 = vadd.f32 %v3115, %v3343
        %v3508 = vadd.f32 %v3116, %v3348
        %v3509 = vadd.f32 %v3117, %v3351
        %v3510 = vadd.f32 %v3118, %v3356
        %v3511 = vadd.f32 %v3119, %v3359
        %v3512 = vadd.f32 %v3120, %v3364
        %v3513 = vadd.f32 %v3121, %v3367
        %v3514 = vadd.f32 %v3122, %v3372
        %v3515 = vadd.f32 %v3123, %v3375
        %v3516 = vadd.f32 %v3124, %v3380
        %v3517 = vadd.f32 %v3125, %v3383
        %v3518 = vadd.f32 %v3126, %v3388
        %v3519 = vadd.f32 %v3127, %v3391
        %v3520 = vadd.f32 %v3128, %v3396
        %v3521 = vadd.f32 %v3129, %v3399
        %v3522 = vadd.f32 %v3130, %v3404
        %v3523 = vadd.f32 %v3131, %v3407
        %v3524 = vadd.f32 %v3132, %v3412
        %v3525 = vadd.f32 %v3133, %v3415
        %v3526 = vadd.f32 %v3134, %v3420
        %v3527 = vadd.f32 %v3135, %v3423
        %v3528 = vadd.f32 %v3136, %v3428
        %v3529 = vadd.f32 %v3137, %v3431
        %v3530 = vadd.f32 %v3138, %v3436
        %v3531 = vadd.f32 %v3139, %v3439
        %v3532 = vadd.f32 %v3140, %v3444
        %v3533 = vadd.f32 %v3141, %v3447
        %v3534 = vadd.f32 %v3142, %v3452
        %v3535 = vadd.f32 %v3143, %v3455
        %v3536 = vadd.f32 %v3144, %v3460
        %v3537 = vadd.f32 %v3145, %v3463
        %v3538 = vadd.f32 %v3146, %v3468
        %v3539 = vadd.f32 %v3147, %v3471
        %v3540 = vadd.f32 %v3148, %v3476
        %v3541 = vadd.f32 %v3149, %v3479
        %v3542 = vadd.f32 %v3150, %v3484
        %v3543 = vadd.f32 %v3151, %v3487
        %v3544 = vadd.f32 %v3152, %v3492
        %v3545 = vadd.f32 %v3153, %v3495
        %v3548 = vunpack.c.l.b16 %v2293
        %v3549 = vunpack.c.h.b16 %v2293
        %v3550 = vunpack.c.l.b16 %v2294
        %s3551 = scalar_lea.vmem %s3, 80
        %v3552 = vld [vmem:[%s3551] sm:$0xf]
        %v3553 = vld [vmem:[%s3551 + $0x4] sm:$0xf]
        %v3554 = vld [vmem:[%s3551 + $0x8] sm:$0xf]
        %v3555 = vld [vmem:[%s3551 + $0xc] sm:$0xf]
        %v3556 = vpack.c.b16 %v2333, %v2332
        %v3557 = vpack.c.b16 %v2335, %v2334
        %v3558 = vpack.c.b16 %v2337, %v2336
        %v3559 = vpack.c.b16 %v2339, %v2338
        %v3560 = vpack.c.b16 %v2341, %v2340
        %v3561 = vpack.c.b16 %v2343, %v2342
        %v3562 = vpack.c.b16 %v2345, %v2344
        %v3563 = vpack.c.b16 %v2347, %v2346
        %v3564 = vpack.c.b16 %v2349, %v2348
        %v3565 = vpack.c.b16 %v2351, %v2350
        %v3566 = vpack.c.b16 %v2353, %v2352
        %v3567 = vpack.c.b16 %v2355, %v2354
        %v3568 = vpack.c.b16 %v2357, %v2356
        %v3569 = vpack.c.b16 %v2359, %v2358
        %v3570 = vpack.c.b16 %v2361, %v2360
        %v3571 = vpack.c.b16 %v2363, %v2362
        %v3572 = vpack.c.b16 %v2365, %v2364
        %v3573 = vpack.c.b16 %v2367, %v2366
        %v3574 = vpack.c.b16 %v2369, %v2368
        %v3575 = vpack.c.b16 %v2371, %v2370
        %v3576 = vpack.c.b16 %v2373, %v2372
        %v3577 = vpack.c.b16 %v2375, %v2374
        %v3578 = vpack.c.b16 %v3548, %v2376
        %v3579 = vpack.c.b16 %v3550, %v3549
        %v3584 = vunpack.c.l.b16 %v3552
        %v3585 = vunpack.c.l.b16 %v3553
        %v3586 = vunpack.c.l.b16 %v3554
        %v3587 = vunpack.c.l.b16 %v3555
        %v3588 = vpack.c.b16 %v3585, %v3584
        %v3589 = vpack.c.b16 %v3587, %v3586
        %v3593 = vsel %vm1324, %v3556, 0
        %v3596 = vsel %vm1324, %v3557, 0
        %v3599 = vsel %vm1324, %v3558, 0
        %v3602 = vsel %vm1324, %v3559, 0
        %v3605 = vsel %vm1324, %v3560, 0
        %v3608 = vsel %vm1324, %v3561, 0
        %v3611 = vsel %vm1324, %v3562, 0
        %v3614 = vsel %vm1324, %v3563, 0
        %v3617 = vsel %vm1324, %v3564, 0
        %v3620 = vsel %vm1324, %v3565, 0
        %v3623 = vsel %vm1324, %v3566, 0
        %v3626 = vsel %vm1324, %v3567, 0
        %v3629 = vsel %vm1324, %v3568, 0
        %v3632 = vsel %vm1324, %v3569, 0
        %v3635 = vsel %vm1324, %v3570, 0
        %v3638 = vsel %vm1324, %v3571, 0
        %v3641 = vsel %vm1324, %v3572, 0
        %v3644 = vsel %vm1324, %v3573, 0
        %v3647 = vsel %vm1324, %v3574, 0
        %v3650 = vsel %vm1324, %v3575, 0
        %v3653 = vsel %vm1324, %v3576, 0
        %v3656 = vsel %vm1324, %v3577, 0
        %v3659 = vsel %vm1324, %v3578, 0
        %v3662 = vsel %vm1324, %v3579, 0
        %3664 = vmatprep.subr.bf16.mxu0 0
        %3665 = vmatpush1.bf16.msra.mxu0 0
        %3666 = vmatprep.subr.bf16.mxu0 0
        %3667 = vmatpush1.bf16.msra.mxu0 0
        %3668 = vmatprep.subr.bf16.mxu0 0
        %3669 = vmatpush1.bf16.msra.mxu0 0
        %3670 = vmatprep.subr.bf16.mxu0 0
        %3671 = vmatpush1.bf16.msra.mxu0 0
        %3672 = vmatprep.subr.bf16.mxu0 0
        %3673 = vmatpush1.bf16.msra.mxu0 0
        %3674 = vmatprep.subr.bf16.mxu0 0
        %3675 = vmatpush1.bf16.msra.mxu0 0
        %3676 = vmatprep.subr.bf16.mxu0 0
        %3677 = vmatpush1.bf16.msra.mxu0 %v3589
        %3678 = vmatprep.subr.bf16.mxu0 0
        %3679 = vmatpush1.bf16.msra.mxu0 %v3588
        %3680 = vmatprep.subr.bf16.mxu0 0
        %3681 = vmatpush2.bf16.msra.mxu0 0
        %3682 = vmatprep.subr.bf16.mxu0 0
        %3683 = vmatpush2.bf16.msra.mxu0 0
        %3684 = vmatprep.subr.bf16.mxu0 0
        %3685 = vmatpush2.bf16.msra.mxu0 0
        %3686 = vmatprep.subr.bf16.mxu0 0
        %3687 = vmatpush2.bf16.msra.mxu0 0
        %3688 = vmatprep.subr.bf16.mxu0 0
        %3689 = vmatpush2.bf16.msra.mxu0 0
        %3690 = vmatprep.subr.bf16.mxu0 0
        %3691 = vmatpush2.bf16.msra.mxu0 0
        %3692 = vmatprep.subr.bf16.mxu0 0
        %3693 = vmatpush2.bf16.msra.mxu0 0
        %3694 = vmatprep.subr.bf16.mxu0 0
        %3695 = vmatpush2.bf16.msra.mxu0 0
        %3696 = vmatprep.mubr.bf16.mxu0 0
        %3697 = vmatmul.mubr.bf16.gmra.mxu0 %v3593
        %v3698 = vpop.f32.mrf.mxu0
        %v3699 = vadd.f32 0.0, %v3698
        %v3700 = vpop.f32.mrf.mxu0
        %v3701 = vpop.f32.mrf.mxu0
        %v3702 = vadd.f32 0.0, %v3701
        %v3703 = vpop.f32.mrf.mxu0
        %3704 = vmatprep.mubr.bf16.mxu0 0
        %3705 = vmatmul.mubr.bf16.gmra.mxu0 %v3596
        %v3706 = vpop.f32.mrf.mxu0
        %v3707 = vadd.f32 0.0, %v3706
        %v3708 = vpop.f32.mrf.mxu0
        %v3709 = vpop.f32.mrf.mxu0
        %v3710 = vadd.f32 0.0, %v3709
        %v3711 = vpop.f32.mrf.mxu0
        %3712 = vmatprep.mubr.bf16.mxu0 0
        %3713 = vmatmul.mubr.bf16.gmra.mxu0 %v3599
        %v3714 = vpop.f32.mrf.mxu0
        %v3715 = vadd.f32 0.0, %v3714
        %v3716 = vpop.f32.mrf.mxu0
        %v3717 = vpop.f32.mrf.mxu0
        %v3718 = vadd.f32 0.0, %v3717
        %v3719 = vpop.f32.mrf.mxu0
        %3720 = vmatprep.mubr.bf16.mxu0 0
        %3721 = vmatmul.mubr.bf16.gmra.mxu0 %v3602
        %v3722 = vpop.f32.mrf.mxu0
        %v3723 = vadd.f32 0.0, %v3722
        %v3724 = vpop.f32.mrf.mxu0
        %v3725 = vpop.f32.mrf.mxu0
        %v3726 = vadd.f32 0.0, %v3725
        %v3727 = vpop.f32.mrf.mxu0
        %3728 = vmatprep.mubr.bf16.mxu0 0
        %3729 = vmatmul.mubr.bf16.gmra.mxu0 %v3605
        %v3730 = vpop.f32.mrf.mxu0
        %v3731 = vadd.f32 0.0, %v3730
        %v3732 = vpop.f32.mrf.mxu0
        %v3733 = vpop.f32.mrf.mxu0
        %v3734 = vadd.f32 0.0, %v3733
        %v3735 = vpop.f32.mrf.mxu0
        %3736 = vmatprep.mubr.bf16.mxu0 0
        %3737 = vmatmul.mubr.bf16.gmra.mxu0 %v3608
        %v3738 = vpop.f32.mrf.mxu0
        %v3739 = vadd.f32 0.0, %v3738
        %v3740 = vpop.f32.mrf.mxu0
        %v3741 = vpop.f32.mrf.mxu0
        %v3742 = vadd.f32 0.0, %v3741
        %v3743 = vpop.f32.mrf.mxu0
        %3744 = vmatprep.mubr.bf16.mxu0 0
        %3745 = vmatmul.mubr.bf16.gmra.mxu0 %v3611
        %v3746 = vpop.f32.mrf.mxu0
        %v3747 = vadd.f32 0.0, %v3746
        %v3748 = vpop.f32.mrf.mxu0
        %v3749 = vpop.f32.mrf.mxu0
        %v3750 = vadd.f32 0.0, %v3749
        %v3751 = vpop.f32.mrf.mxu0
        %3752 = vmatprep.mubr.bf16.mxu0 0
        %3753 = vmatmul.mubr.bf16.gmra.mxu0 %v3614
        %v3754 = vpop.f32.mrf.mxu0
        %v3755 = vadd.f32 0.0, %v3754
        %v3756 = vpop.f32.mrf.mxu0
        %v3757 = vpop.f32.mrf.mxu0
        %v3758 = vadd.f32 0.0, %v3757
        %v3759 = vpop.f32.mrf.mxu0
        %3760 = vmatprep.mubr.bf16.mxu0 0
        %3761 = vmatmul.mubr.bf16.gmra.mxu0 %v3617
        %v3762 = vpop.f32.mrf.mxu0
        %v3763 = vadd.f32 0.0, %v3762
        %v3764 = vpop.f32.mrf.mxu0
        %v3765 = vpop.f32.mrf.mxu0
        %v3766 = vadd.f32 0.0, %v3765
        %v3767 = vpop.f32.mrf.mxu0
        %3768 = vmatprep.mubr.bf16.mxu0 0
        %3769 = vmatmul.mubr.bf16.gmra.mxu0 %v3620
        %v3770 = vpop.f32.mrf.mxu0
        %v3771 = vadd.f32 0.0, %v3770
        %v3772 = vpop.f32.mrf.mxu0
        %v3773 = vpop.f32.mrf.mxu0
        %v3774 = vadd.f32 0.0, %v3773
        %v3775 = vpop.f32.mrf.mxu0
        %3776 = vmatprep.mubr.bf16.mxu0 0
        %3777 = vmatmul.mubr.bf16.gmra.mxu0 %v3623
        %v3778 = vpop.f32.mrf.mxu0
        %v3779 = vadd.f32 0.0, %v3778
        %v3780 = vpop.f32.mrf.mxu0
        %v3781 = vpop.f32.mrf.mxu0
        %v3782 = vadd.f32 0.0, %v3781
        %v3783 = vpop.f32.mrf.mxu0
        %3784 = vmatprep.mubr.bf16.mxu0 0
        %3785 = vmatmul.mubr.bf16.gmra.mxu0 %v3626
        %v3786 = vpop.f32.mrf.mxu0
        %v3787 = vadd.f32 0.0, %v3786
        %v3788 = vpop.f32.mrf.mxu0
        %v3789 = vpop.f32.mrf.mxu0
        %v3790 = vadd.f32 0.0, %v3789
        %v3791 = vpop.f32.mrf.mxu0
        %3792 = vmatprep.mubr.bf16.mxu0 0
        %3793 = vmatmul.mubr.bf16.gmra.mxu0 %v3629
        %v3794 = vpop.f32.mrf.mxu0
        %v3795 = vadd.f32 0.0, %v3794
        %v3796 = vpop.f32.mrf.mxu0
        %v3797 = vpop.f32.mrf.mxu0
        %v3798 = vadd.f32 0.0, %v3797
        %v3799 = vpop.f32.mrf.mxu0
        %3800 = vmatprep.mubr.bf16.mxu0 0
        %3801 = vmatmul.mubr.bf16.gmra.mxu0 %v3632
        %v3802 = vpop.f32.mrf.mxu0
        %v3803 = vadd.f32 0.0, %v3802
        %v3804 = vpop.f32.mrf.mxu0
        %v3805 = vpop.f32.mrf.mxu0
        %v3806 = vadd.f32 0.0, %v3805
        %v3807 = vpop.f32.mrf.mxu0
        %3808 = vmatprep.mubr.bf16.mxu0 0
        %3809 = vmatmul.mubr.bf16.gmra.mxu0 %v3635
        %v3810 = vpop.f32.mrf.mxu0
        %v3811 = vadd.f32 0.0, %v3810
        %v3812 = vpop.f32.mrf.mxu0
        %v3813 = vpop.f32.mrf.mxu0
        %v3814 = vadd.f32 0.0, %v3813
        %v3815 = vpop.f32.mrf.mxu0
        %3816 = vmatprep.mubr.bf16.mxu0 0
        %3817 = vmatmul.mubr.bf16.gmra.mxu0 %v3638
        %v3818 = vpop.f32.mrf.mxu0
        %v3819 = vadd.f32 0.0, %v3818
        %v3820 = vpop.f32.mrf.mxu0
        %v3821 = vpop.f32.mrf.mxu0
        %v3822 = vadd.f32 0.0, %v3821
        %v3823 = vpop.f32.mrf.mxu0
        %3824 = vmatprep.mubr.bf16.mxu0 0
        %3825 = vmatmul.mubr.bf16.gmra.mxu0 %v3641
        %v3826 = vpop.f32.mrf.mxu0
        %v3827 = vadd.f32 0.0, %v3826
        %v3828 = vpop.f32.mrf.mxu0
        %v3829 = vpop.f32.mrf.mxu0
        %v3830 = vadd.f32 0.0, %v3829
        %v3831 = vpop.f32.mrf.mxu0
        %3832 = vmatprep.mubr.bf16.mxu0 0
        %3833 = vmatmul.mubr.bf16.gmra.mxu0 %v3644
        %v3834 = vpop.f32.mrf.mxu0
        %v3835 = vadd.f32 0.0, %v3834
        %v3836 = vpop.f32.mrf.mxu0
        %v3837 = vpop.f32.mrf.mxu0
        %v3838 = vadd.f32 0.0, %v3837
        %v3839 = vpop.f32.mrf.mxu0
        %3840 = vmatprep.mubr.bf16.mxu0 0
        %3841 = vmatmul.mubr.bf16.gmra.mxu0 %v3647
        %v3842 = vpop.f32.mrf.mxu0
        %v3843 = vadd.f32 0.0, %v3842
        %v3844 = vpop.f32.mrf.mxu0
        %v3845 = vpop.f32.mrf.mxu0
        %v3846 = vadd.f32 0.0, %v3845
        %v3847 = vpop.f32.mrf.mxu0
        %3848 = vmatprep.mubr.bf16.mxu0 0
        %3849 = vmatmul.mubr.bf16.gmra.mxu0 %v3650
        %v3850 = vpop.f32.mrf.mxu0
        %v3851 = vadd.f32 0.0, %v3850
        %v3852 = vpop.f32.mrf.mxu0
        %v3853 = vpop.f32.mrf.mxu0
        %v3854 = vadd.f32 0.0, %v3853
        %v3855 = vpop.f32.mrf.mxu0
        %3856 = vmatprep.mubr.bf16.mxu0 0
        %3857 = vmatmul.mubr.bf16.gmra.mxu0 %v3653
        %v3858 = vpop.f32.mrf.mxu0
        %v3859 = vadd.f32 0.0, %v3858
        %v3860 = vpop.f32.mrf.mxu0
        %v3861 = vpop.f32.mrf.mxu0
        %v3862 = vadd.f32 0.0, %v3861
        %v3863 = vpop.f32.mrf.mxu0
        %3864 = vmatprep.mubr.bf16.mxu0 0
        %3865 = vmatmul.mubr.bf16.gmra.mxu0 %v3656
        %v3866 = vpop.f32.mrf.mxu0
        %v3867 = vadd.f32 0.0, %v3866
        %v3868 = vpop.f32.mrf.mxu0
        %v3869 = vpop.f32.mrf.mxu0
        %v3870 = vadd.f32 0.0, %v3869
        %v3871 = vpop.f32.mrf.mxu0
        %3872 = vmatprep.mubr.bf16.mxu0 0
        %3873 = vmatmul.mubr.bf16.gmra.mxu0 %v3659
        %v3874 = vpop.f32.mrf.mxu0
        %v3875 = vadd.f32 0.0, %v3874
        %v3876 = vpop.f32.mrf.mxu0
        %v3877 = vpop.f32.mrf.mxu0
        %v3878 = vadd.f32 0.0, %v3877
        %v3879 = vpop.f32.mrf.mxu0
        %3880 = vmatprep.mubr.bf16.mxu0 0
        %3881 = vmatmul.mubr.bf16.gmra.mxu0 %v3662
        %v3882 = vpop.f32.mrf.mxu0
        %v3883 = vadd.f32 0.0, %v3882
        %v3884 = vpop.f32.mrf.mxu0
        %v3885 = vpop.f32.mrf.mxu0
        %v3886 = vadd.f32 0.0, %v3885
        %v3887 = vpop.f32.mrf.mxu0
        %3888 = vdwg.mxu0
        %v3889 = vadd.f32 %v3498, %v3699
        %v3890 = vadd.f32 %v3499, %v3702
        %v3891 = vadd.f32 %v3500, %v3707
        %v3892 = vadd.f32 %v3501, %v3710
        %v3893 = vadd.f32 %v3502, %v3715
        %v3894 = vadd.f32 %v3503, %v3718
        %v3895 = vadd.f32 %v3504, %v3723
        %v3896 = vadd.f32 %v3505, %v3726
        %v3897 = vadd.f32 %v3506, %v3731
        %v3898 = vadd.f32 %v3507, %v3734
        %v3899 = vadd.f32 %v3508, %v3739
        %v3900 = vadd.f32 %v3509, %v3742
        %v3901 = vadd.f32 %v3510, %v3747
        %v3902 = vadd.f32 %v3511, %v3750
        %v3903 = vadd.f32 %v3512, %v3755
        %v3904 = vadd.f32 %v3513, %v3758
        %v3905 = vadd.f32 %v3514, %v3763
        %v3906 = vadd.f32 %v3515, %v3766
        %v3907 = vadd.f32 %v3516, %v3771
        %v3908 = vadd.f32 %v3517, %v3774
        %v3909 = vadd.f32 %v3518, %v3779
        %v3910 = vadd.f32 %v3519, %v3782
        %v3911 = vadd.f32 %v3520, %v3787
        %v3912 = vadd.f32 %v3521, %v3790
        %v3913 = vadd.f32 %v3522, %v3795
        %v3914 = vadd.f32 %v3523, %v3798
        %v3915 = vadd.f32 %v3524, %v3803
        %v3916 = vadd.f32 %v3525, %v3806
        %v3917 = vadd.f32 %v3526, %v3811
        %v3918 = vadd.f32 %v3527, %v3814
        %v3919 = vadd.f32 %v3528, %v3819
        %v3920 = vadd.f32 %v3529, %v3822
        %v3921 = vadd.f32 %v3530, %v3827
        %v3922 = vadd.f32 %v3531, %v3830
        %v3923 = vadd.f32 %v3532, %v3835
        %v3924 = vadd.f32 %v3533, %v3838
        %v3925 = vadd.f32 %v3534, %v3843
        %v3926 = vadd.f32 %v3535, %v3846
        %v3927 = vadd.f32 %v3536, %v3851
        %v3928 = vadd.f32 %v3537, %v3854
        %v3929 = vadd.f32 %v3538, %v3859
        %v3930 = vadd.f32 %v3539, %v3862
        %v3931 = vadd.f32 %v3540, %v3867
        %v3932 = vadd.f32 %v3541, %v3870
        %v3933 = vadd.f32 %v3542, %v3875
        %v3934 = vadd.f32 %v3543, %v3878
        %v3935 = vadd.f32 %v3544, %v3883
        %v3936 = vadd.f32 %v3545, %v3886
        %v3939 = vunpack.c.l.b16 %v1202
        %v3940 = vunpack.c.h.b16 %v1202
        %v3941 = vunpack.c.l.b16 %v1203
        %s3942 = scalar_lea.vmem %s3, 96
        %v3943 = vld [vmem:[%s3942] sm:$0xf]
        %v3944 = vld [vmem:[%s3942 + $0x4] sm:$0xf]
        %v3945 = vld [vmem:[%s3942 + $0x8] sm:$0xf]
        %v3946 = vld [vmem:[%s3942 + $0xc] sm:$0xf]
        %v3947 = vpack.c.b16 %v2766, %v2765
        %v3948 = vpack.c.b16 %v3939, %v2767
        %v3949 = vpack.c.b16 %v3941, %v3940
        %v3954 = vunpack.c.l.b16 %v3943
        %v3955 = vunpack.c.l.b16 %v3944
        %v3956 = vunpack.c.l.b16 %v3945
        %v3957 = vunpack.c.l.b16 %v3946
        %v3958 = vpack.c.b16 %v3955, %v3954
        %v3959 = vpack.c.b16 %v3957, %v3956
        %v3963 = vsel %vm1324, %v3947, 0
        %v3966 = vsel %vm1324, %v3948, 0
        %v3969 = vsel %vm1324, %v3949, 0
        %3971 = vmatprep.subr.bf16.mxu0 0
        %3972 = vmatpush1.bf16.msra.mxu0 0
        %3973 = vmatprep.subr.bf16.mxu0 0
        %3974 = vmatpush1.bf16.msra.mxu0 0
        %3975 = vmatprep.subr.bf16.mxu0 0
        %3976 = vmatpush1.bf16.msra.mxu0 0
        %3977 = vmatprep.subr.bf16.mxu0 0
        %3978 = vmatpush1.bf16.msra.mxu0 0
        %3979 = vmatprep.subr.bf16.mxu0 0
        %3980 = vmatpush1.bf16.msra.mxu0 0
        %3981 = vmatprep.subr.bf16.mxu0 0
        %3982 = vmatpush1.bf16.msra.mxu0 0
        %3983 = vmatprep.subr.bf16.mxu0 0
        %3984 = vmatpush1.bf16.msra.mxu0 %v3959
        %3985 = vmatprep.subr.bf16.mxu0 0
        %3986 = vmatpush1.bf16.msra.mxu0 %v3958
        %3987 = vmatprep.subr.bf16.mxu0 0
        %3988 = vmatpush2.bf16.msra.mxu0 0
        %3989 = vmatprep.subr.bf16.mxu0 0
        %3990 = vmatpush2.bf16.msra.mxu0 0
        %3991 = vmatprep.subr.bf16.mxu0 0
        %3992 = vmatpush2.bf16.msra.mxu0 0
        %3993 = vmatprep.subr.bf16.mxu0 0
        %3994 = vmatpush2.bf16.msra.mxu0 0
        %3995 = vmatprep.subr.bf16.mxu0 0
        %3996 = vmatpush2.bf16.msra.mxu0 0
        %3997 = vmatprep.subr.bf16.mxu0 0
        %3998 = vmatpush2.bf16.msra.mxu0 0
        %3999 = vmatprep.subr.bf16.mxu0 0
        %4000 = vmatpush2.bf16.msra.mxu0 0
        %4001 = vmatprep.subr.bf16.mxu0 0
        %4002 = vmatpush2.bf16.msra.mxu0 0
        %4003 = vmatprep.mubr.bf16.mxu0 0
        %4004 = vmatmul.mubr.bf16.gmra.mxu0 %v1335
        %v4005 = vpop.f32.mrf.mxu0
        %v4006 = vadd.f32 0.0, %v4005
        %v4007 = vpop.f32.mrf.mxu0
        %v4008 = vpop.f32.mrf.mxu0
        %v4009 = vadd.f32 0.0, %v4008
        %v4010 = vpop.f32.mrf.mxu0
        %4011 = vmatprep.mubr.bf16.mxu0 0
        %4012 = vmatmul.mubr.bf16.gmra.mxu0 %v1338
        %v4013 = vpop.f32.mrf.mxu0
        %v4014 = vadd.f32 0.0, %v4013
        %v4015 = vpop.f32.mrf.mxu0
        %v4016 = vpop.f32.mrf.mxu0
        %v4017 = vadd.f32 0.0, %v4016
        %v4018 = vpop.f32.mrf.mxu0
        %4019 = vmatprep.mubr.bf16.mxu0 0
        %4020 = vmatmul.mubr.bf16.gmra.mxu0 %v1341
        %v4021 = vpop.f32.mrf.mxu0
        %v4022 = vadd.f32 0.0, %v4021
        %v4023 = vpop.f32.mrf.mxu0
        %v4024 = vpop.f32.mrf.mxu0
        %v4025 = vadd.f32 0.0, %v4024
        %v4026 = vpop.f32.mrf.mxu0
        %4027 = vmatprep.mubr.bf16.mxu0 0
        %4028 = vmatmul.mubr.bf16.gmra.mxu0 %v1344
        %v4029 = vpop.f32.mrf.mxu0
        %v4030 = vadd.f32 0.0, %v4029
        %v4031 = vpop.f32.mrf.mxu0
        %v4032 = vpop.f32.mrf.mxu0
        %v4033 = vadd.f32 0.0, %v4032
        %v4034 = vpop.f32.mrf.mxu0
        %4035 = vmatprep.mubr.bf16.mxu0 0
        %4036 = vmatmul.mubr.bf16.gmra.mxu0 %v1347
        %v4037 = vpop.f32.mrf.mxu0
        %v4038 = vadd.f32 0.0, %v4037
        %v4039 = vpop.f32.mrf.mxu0
        %v4040 = vpop.f32.mrf.mxu0
        %v4041 = vadd.f32 0.0, %v4040
        %v4042 = vpop.f32.mrf.mxu0
        %4043 = vmatprep.mubr.bf16.mxu0 0
        %4044 = vmatmul.mubr.bf16.gmra.mxu0 %v1350
        %v4045 = vpop.f32.mrf.mxu0
        %v4046 = vadd.f32 0.0, %v4045
        %v4047 = vpop.f32.mrf.mxu0
        %v4048 = vpop.f32.mrf.mxu0
        %v4049 = vadd.f32 0.0, %v4048
        %v4050 = vpop.f32.mrf.mxu0
        %4051 = vmatprep.mubr.bf16.mxu0 0
        %4052 = vmatmul.mubr.bf16.gmra.mxu0 %v1353
        %v4053 = vpop.f32.mrf.mxu0
        %v4054 = vadd.f32 0.0, %v4053
        %v4055 = vpop.f32.mrf.mxu0
        %v4056 = vpop.f32.mrf.mxu0
        %v4057 = vadd.f32 0.0, %v4056
        %v4058 = vpop.f32.mrf.mxu0
        %4059 = vmatprep.mubr.bf16.mxu0 0
        %4060 = vmatmul.mubr.bf16.gmra.mxu0 %v1356
        %v4061 = vpop.f32.mrf.mxu0
        %v4062 = vadd.f32 0.0, %v4061
        %v4063 = vpop.f32.mrf.mxu0
        %v4064 = vpop.f32.mrf.mxu0
        %v4065 = vadd.f32 0.0, %v4064
        %v4066 = vpop.f32.mrf.mxu0
        %4067 = vmatprep.mubr.bf16.mxu0 0
        %4068 = vmatmul.mubr.bf16.gmra.mxu0 %v1359
        %v4069 = vpop.f32.mrf.mxu0
        %v4070 = vadd.f32 0.0, %v4069
        %v4071 = vpop.f32.mrf.mxu0
        %v4072 = vpop.f32.mrf.mxu0
        %v4073 = vadd.f32 0.0, %v4072
        %v4074 = vpop.f32.mrf.mxu0
        %4075 = vmatprep.mubr.bf16.mxu0 0
        %4076 = vmatmul.mubr.bf16.gmra.mxu0 %v1362
        %v4077 = vpop.f32.mrf.mxu0
        %v4078 = vadd.f32 0.0, %v4077
        %v4079 = vpop.f32.mrf.mxu0
        %v4080 = vpop.f32.mrf.mxu0
        %v4081 = vadd.f32 0.0, %v4080
        %v4082 = vpop.f32.mrf.mxu0
        %4083 = vmatprep.mubr.bf16.mxu0 0
        %4084 = vmatmul.mubr.bf16.gmra.mxu0 %v1365
        %v4085 = vpop.f32.mrf.mxu0
        %v4086 = vadd.f32 0.0, %v4085
        %v4087 = vpop.f32.mrf.mxu0
        %v4088 = vpop.f32.mrf.mxu0
        %v4089 = vadd.f32 0.0, %v4088
        %v4090 = vpop.f32.mrf.mxu0
        %4091 = vmatprep.mubr.bf16.mxu0 0
        %4092 = vmatmul.mubr.bf16.gmra.mxu0 %v1368
        %v4093 = vpop.f32.mrf.mxu0
        %v4094 = vadd.f32 0.0, %v4093
        %v4095 = vpop.f32.mrf.mxu0
        %v4096 = vpop.f32.mrf.mxu0
        %v4097 = vadd.f32 0.0, %v4096
        %v4098 = vpop.f32.mrf.mxu0
        %4099 = vmatprep.mubr.bf16.mxu0 0
        %4100 = vmatmul.mubr.bf16.gmra.mxu0 %v1371
        %v4101 = vpop.f32.mrf.mxu0
        %v4102 = vadd.f32 0.0, %v4101
        %v4103 = vpop.f32.mrf.mxu0
        %v4104 = vpop.f32.mrf.mxu0
        %v4105 = vadd.f32 0.0, %v4104
        %v4106 = vpop.f32.mrf.mxu0
        %4107 = vmatprep.mubr.bf16.mxu0 0
        %4108 = vmatmul.mubr.bf16.gmra.mxu0 %v1374
        %v4109 = vpop.f32.mrf.mxu0
        %v4110 = vadd.f32 0.0, %v4109
        %v4111 = vpop.f32.mrf.mxu0
        %v4112 = vpop.f32.mrf.mxu0
        %v4113 = vadd.f32 0.0, %v4112
        %v4114 = vpop.f32.mrf.mxu0
        %4115 = vmatprep.mubr.bf16.mxu0 0
        %4116 = vmatmul.mubr.bf16.gmra.mxu0 %v1377
        %v4117 = vpop.f32.mrf.mxu0
        %v4118 = vadd.f32 0.0, %v4117
        %v4119 = vpop.f32.mrf.mxu0
        %v4120 = vpop.f32.mrf.mxu0
        %v4121 = vadd.f32 0.0, %v4120
        %v4122 = vpop.f32.mrf.mxu0
        %4123 = vmatprep.mubr.bf16.mxu0 0
        %4124 = vmatmul.mubr.bf16.gmra.mxu0 %v1380
        %v4125 = vpop.f32.mrf.mxu0
        %v4126 = vadd.f32 0.0, %v4125
        %v4127 = vpop.f32.mrf.mxu0
        %v4128 = vpop.f32.mrf.mxu0
        %v4129 = vadd.f32 0.0, %v4128
        %v4130 = vpop.f32.mrf.mxu0
        %4131 = vmatprep.mubr.bf16.mxu0 0
        %4132 = vmatmul.mubr.bf16.gmra.mxu0 %v1383
        %v4133 = vpop.f32.mrf.mxu0
        %v4134 = vadd.f32 0.0, %v4133
        %v4135 = vpop.f32.mrf.mxu0
        %v4136 = vpop.f32.mrf.mxu0
        %v4137 = vadd.f32 0.0, %v4136
        %v4138 = vpop.f32.mrf.mxu0
        %4139 = vmatprep.mubr.bf16.mxu0 0
        %4140 = vmatmul.mubr.bf16.gmra.mxu0 %v1386
        %v4141 = vpop.f32.mrf.mxu0
        %v4142 = vadd.f32 0.0, %v4141
        %v4143 = vpop.f32.mrf.mxu0
        %v4144 = vpop.f32.mrf.mxu0
        %v4145 = vadd.f32 0.0, %v4144
        %v4146 = vpop.f32.mrf.mxu0
        %4147 = vmatprep.mubr.bf16.mxu0 0
        %4148 = vmatmul.mubr.bf16.gmra.mxu0 %v1389
        %v4149 = vpop.f32.mrf.mxu0
        %v4150 = vadd.f32 0.0, %v4149
        %v4151 = vpop.f32.mrf.mxu0
        %v4152 = vpop.f32.mrf.mxu0
        %v4153 = vadd.f32 0.0, %v4152
        %v4154 = vpop.f32.mrf.mxu0
        %4155 = vmatprep.mubr.bf16.mxu0 0
        %4156 = vmatmul.mubr.bf16.gmra.mxu0 %v1392
        %v4157 = vpop.f32.mrf.mxu0
        %v4158 = vadd.f32 0.0, %v4157
        %v4159 = vpop.f32.mrf.mxu0
        %v4160 = vpop.f32.mrf.mxu0
        %v4161 = vadd.f32 0.0, %v4160
        %v4162 = vpop.f32.mrf.mxu0
        %4163 = vmatprep.mubr.bf16.mxu0 0
        %4164 = vmatmul.mubr.bf16.gmra.mxu0 %v1395
        %v4165 = vpop.f32.mrf.mxu0
        %v4166 = vadd.f32 0.0, %v4165
        %v4167 = vpop.f32.mrf.mxu0
        %v4168 = vpop.f32.mrf.mxu0
        %v4169 = vadd.f32 0.0, %v4168
        %v4170 = vpop.f32.mrf.mxu0
        %4171 = vmatprep.mubr.bf16.mxu0 0
        %4172 = vmatmul.mubr.bf16.gmra.mxu0 %v3963
        %v4173 = vpop.f32.mrf.mxu0
        %v4174 = vadd.f32 0.0, %v4173
        %v4175 = vpop.f32.mrf.mxu0
        %v4176 = vpop.f32.mrf.mxu0
        %v4177 = vadd.f32 0.0, %v4176
        %v4178 = vpop.f32.mrf.mxu0
        %4179 = vmatprep.mubr.bf16.mxu0 0
        %4180 = vmatmul.mubr.bf16.gmra.mxu0 %v3966
        %v4181 = vpop.f32.mrf.mxu0
        %v4182 = vadd.f32 0.0, %v4181
        %v4183 = vpop.f32.mrf.mxu0
        %v4184 = vpop.f32.mrf.mxu0
        %v4185 = vadd.f32 0.0, %v4184
        %v4186 = vpop.f32.mrf.mxu0
        %4187 = vmatprep.mubr.bf16.mxu0 0
        %4188 = vmatmul.mubr.bf16.gmra.mxu0 %v3969
        %v4189 = vpop.f32.mrf.mxu0
        %v4190 = vadd.f32 0.0, %v4189
        %v4191 = vpop.f32.mrf.mxu0
        %v4192 = vpop.f32.mrf.mxu0
        %v4193 = vadd.f32 0.0, %v4192
        %v4194 = vpop.f32.mrf.mxu0
        %4195 = vdwg.mxu0
        %v4196 = vadd.f32 %v3889, %v4006
        %v4197 = vadd.f32 %v3890, %v4009
        %v4198 = vadd.f32 %v3891, %v4014
        %v4199 = vadd.f32 %v3892, %v4017
        %v4200 = vadd.f32 %v3893, %v4022
        %v4201 = vadd.f32 %v3894, %v4025
        %v4202 = vadd.f32 %v3895, %v4030
        %v4203 = vadd.f32 %v3896, %v4033
        %v4204 = vadd.f32 %v3897, %v4038
        %v4205 = vadd.f32 %v3898, %v4041
        %v4206 = vadd.f32 %v3899, %v4046
        %v4207 = vadd.f32 %v3900, %v4049
        %v4208 = vadd.f32 %v3901, %v4054
        %v4209 = vadd.f32 %v3902, %v4057
        %v4210 = vadd.f32 %v3903, %v4062
        %v4211 = vadd.f32 %v3904, %v4065
        %v4212 = vadd.f32 %v3905, %v4070
        %v4213 = vadd.f32 %v3906, %v4073
        %v4214 = vadd.f32 %v3907, %v4078
        %v4215 = vadd.f32 %v3908, %v4081
        %v4216 = vadd.f32 %v3909, %v4086
        %v4217 = vadd.f32 %v3910, %v4089
        %v4218 = vadd.f32 %v3911, %v4094
        %v4219 = vadd.f32 %v3912, %v4097
        %v4220 = vadd.f32 %v3913, %v4102
        %v4221 = vadd.f32 %v3914, %v4105
        %v4222 = vadd.f32 %v3915, %v4110
        %v4223 = vadd.f32 %v3916, %v4113
        %v4224 = vadd.f32 %v3917, %v4118
        %v4225 = vadd.f32 %v3918, %v4121
        %v4226 = vadd.f32 %v3919, %v4126
        %v4227 = vadd.f32 %v3920, %v4129
        %v4228 = vadd.f32 %v3921, %v4134
        %v4229 = vadd.f32 %v3922, %v4137
        %v4230 = vadd.f32 %v3923, %v4142
        %v4231 = vadd.f32 %v3924, %v4145
        %v4232 = vadd.f32 %v3925, %v4150
        %v4233 = vadd.f32 %v3926, %v4153
        %v4234 = vadd.f32 %v3927, %v4158
        %v4235 = vadd.f32 %v3928, %v4161
        %v4236 = vadd.f32 %v3929, %v4166
        %v4237 = vadd.f32 %v3930, %v4169
        %v4238 = vadd.f32 %v3931, %v4174
        %v4239 = vadd.f32 %v3932, %v4177
        %v4240 = vadd.f32 %v3933, %v4182
        %v4241 = vadd.f32 %v3934, %v4185
        %v4242 = vadd.f32 %v3935, %v4190
        %v4243 = vadd.f32 %v3936, %v4193
        %s4244 = scalar_lea.vmem %s3, 112
        %v4245 = vld [vmem:[%s4244] sm:$0xf]
        %v4246 = vld [vmem:[%s4244 + $0x4] sm:$0xf]
        %v4247 = vld [vmem:[%s4244 + $0x8] sm:$0xf]
        %v4248 = vld [vmem:[%s4244 + $0xc] sm:$0xf]
        %v4252 = vunpack.c.l.b16 %v1000
        %v4253 = vunpack.c.l.b16 %v1001
        %v4254 = vunpack.c.l.b16 %v1002
        %v4255 = vpack.c.b16 %v3163, %v3162
        %v4256 = vpack.c.b16 %v4252, %v3164
        %v4257 = vpack.c.b16 %v4254, %v4253
        %v4262 = vunpack.c.l.b16 %v4245
        %v4263 = vunpack.c.l.b16 %v4246
        %v4264 = vunpack.c.l.b16 %v4247
        %v4265 = vunpack.c.l.b16 %v4248
        %v4266 = vpack.c.b16 %v4263, %v4262
        %v4267 = vpack.c.b16 %v4265, %v4264
        %v4271 = vsel %vm1324, %v4255, 0
        %v4274 = vsel %vm1324, %v4256, 0
        %v4277 = vsel %vm1324, %v4257, 0
        %4279 = vmatprep.subr.bf16.mxu0 0
        %4280 = vmatpush1.bf16.msra.mxu0 0
        %4281 = vmatprep.subr.bf16.mxu0 0
        %4282 = vmatpush1.bf16.msra.mxu0 0
        %4283 = vmatprep.subr.bf16.mxu0 0
        %4284 = vmatpush1.bf16.msra.mxu0 0
        %4285 = vmatprep.subr.bf16.mxu0 0
        %4286 = vmatpush1.bf16.msra.mxu0 0
        %4287 = vmatprep.subr.bf16.mxu0 0
        %4288 = vmatpush1.bf16.msra.mxu0 0
        %4289 = vmatprep.subr.bf16.mxu0 0
        %4290 = vmatpush1.bf16.msra.mxu0 0
        %4291 = vmatprep.subr.bf16.mxu0 0
        %4292 = vmatpush1.bf16.msra.mxu0 %v4267
        %4293 = vmatprep.subr.bf16.mxu0 0
        %4294 = vmatpush1.bf16.msra.mxu0 %v4266
        %4295 = vmatprep.subr.bf16.mxu0 0
        %4296 = vmatpush2.bf16.msra.mxu0 0
        %4297 = vmatprep.subr.bf16.mxu0 0
        %4298 = vmatpush2.bf16.msra.mxu0 0
        %4299 = vmatprep.subr.bf16.mxu0 0
        %4300 = vmatpush2.bf16.msra.mxu0 0
        %4301 = vmatprep.subr.bf16.mxu0 0
        %4302 = vmatpush2.bf16.msra.mxu0 0
        %4303 = vmatprep.subr.bf16.mxu0 0
        %4304 = vmatpush2.bf16.msra.mxu0 0
        %4305 = vmatprep.subr.bf16.mxu0 0
        %4306 = vmatpush2.bf16.msra.mxu0 0
        %4307 = vmatprep.subr.bf16.mxu0 0
        %4308 = vmatpush2.bf16.msra.mxu0 0
        %4309 = vmatprep.subr.bf16.mxu0 0
        %4310 = vmatpush2.bf16.msra.mxu0 0
        %4311 = vmatprep.mubr.bf16.mxu0 0
        %4312 = vmatmul.mubr.bf16.gmra.mxu0 %v1817
        %v4313 = vpop.f32.mrf.mxu0
        %v4314 = vadd.f32 0.0, %v4313
        %v4315 = vpop.f32.mrf.mxu0
        %v4316 = vpop.f32.mrf.mxu0
        %v4317 = vadd.f32 0.0, %v4316
        %v4318 = vpop.f32.mrf.mxu0
        %4319 = vmatprep.mubr.bf16.mxu0 0
        %4320 = vmatmul.mubr.bf16.gmra.mxu0 %v1820
        %v4321 = vpop.f32.mrf.mxu0
        %v4322 = vadd.f32 0.0, %v4321
        %v4323 = vpop.f32.mrf.mxu0
        %v4324 = vpop.f32.mrf.mxu0
        %v4325 = vadd.f32 0.0, %v4324
        %v4326 = vpop.f32.mrf.mxu0
        %4327 = vmatprep.mubr.bf16.mxu0 0
        %4328 = vmatmul.mubr.bf16.gmra.mxu0 %v1823
        %v4329 = vpop.f32.mrf.mxu0
        %v4330 = vadd.f32 0.0, %v4329
        %v4331 = vpop.f32.mrf.mxu0
        %v4332 = vpop.f32.mrf.mxu0
        %v4333 = vadd.f32 0.0, %v4332
        %v4334 = vpop.f32.mrf.mxu0
        %4335 = vmatprep.mubr.bf16.mxu0 0
        %4336 = vmatmul.mubr.bf16.gmra.mxu0 %v1826
        %v4337 = vpop.f32.mrf.mxu0
        %v4338 = vadd.f32 0.0, %v4337
        %v4339 = vpop.f32.mrf.mxu0
        %v4340 = vpop.f32.mrf.mxu0
        %v4341 = vadd.f32 0.0, %v4340
        %v4342 = vpop.f32.mrf.mxu0
        %4343 = vmatprep.mubr.bf16.mxu0 0
        %4344 = vmatmul.mubr.bf16.gmra.mxu0 %v1829
        %v4345 = vpop.f32.mrf.mxu0
        %v4346 = vadd.f32 0.0, %v4345
        %v4347 = vpop.f32.mrf.mxu0
        %v4348 = vpop.f32.mrf.mxu0
        %v4349 = vadd.f32 0.0, %v4348
        %v4350 = vpop.f32.mrf.mxu0
        %4351 = vmatprep.mubr.bf16.mxu0 0
        %4352 = vmatmul.mubr.bf16.gmra.mxu0 %v1832
        %v4353 = vpop.f32.mrf.mxu0
        %v4354 = vadd.f32 0.0, %v4353
        %v4355 = vpop.f32.mrf.mxu0
        %v4356 = vpop.f32.mrf.mxu0
        %v4357 = vadd.f32 0.0, %v4356
        %v4358 = vpop.f32.mrf.mxu0
        %4359 = vmatprep.mubr.bf16.mxu0 0
        %4360 = vmatmul.mubr.bf16.gmra.mxu0 %v1835
        %v4361 = vpop.f32.mrf.mxu0
        %v4362 = vadd.f32 0.0, %v4361
        %v4363 = vpop.f32.mrf.mxu0
        %v4364 = vpop.f32.mrf.mxu0
        %v4365 = vadd.f32 0.0, %v4364
        %v4366 = vpop.f32.mrf.mxu0
        %4367 = vmatprep.mubr.bf16.mxu0 0
        %4368 = vmatmul.mubr.bf16.gmra.mxu0 %v1838
        %v4369 = vpop.f32.mrf.mxu0
        %v4370 = vadd.f32 0.0, %v4369
        %v4371 = vpop.f32.mrf.mxu0
        %v4372 = vpop.f32.mrf.mxu0
        %v4373 = vadd.f32 0.0, %v4372
        %v4374 = vpop.f32.mrf.mxu0
        %4375 = vmatprep.mubr.bf16.mxu0 0
        %4376 = vmatmul.mubr.bf16.gmra.mxu0 %v1841
        %v4377 = vpop.f32.mrf.mxu0
        %v4378 = vadd.f32 0.0, %v4377
        %v4379 = vpop.f32.mrf.mxu0
        %v4380 = vpop.f32.mrf.mxu0
        %v4381 = vadd.f32 0.0, %v4380
        %v4382 = vpop.f32.mrf.mxu0
        %4383 = vmatprep.mubr.bf16.mxu0 0
        %4384 = vmatmul.mubr.bf16.gmra.mxu0 %v1844
        %v4385 = vpop.f32.mrf.mxu0
        %v4386 = vadd.f32 0.0, %v4385
        %v4387 = vpop.f32.mrf.mxu0
        %v4388 = vpop.f32.mrf.mxu0
        %v4389 = vadd.f32 0.0, %v4388
        %v4390 = vpop.f32.mrf.mxu0
        %4391 = vmatprep.mubr.bf16.mxu0 0
        %4392 = vmatmul.mubr.bf16.gmra.mxu0 %v1847
        %v4393 = vpop.f32.mrf.mxu0
        %v4394 = vadd.f32 0.0, %v4393
        %v4395 = vpop.f32.mrf.mxu0
        %v4396 = vpop.f32.mrf.mxu0
        %v4397 = vadd.f32 0.0, %v4396
        %v4398 = vpop.f32.mrf.mxu0
        %4399 = vmatprep.mubr.bf16.mxu0 0
        %4400 = vmatmul.mubr.bf16.gmra.mxu0 %v1850
        %v4401 = vpop.f32.mrf.mxu0
        %v4402 = vadd.f32 0.0, %v4401
        %v4403 = vpop.f32.mrf.mxu0
        %v4404 = vpop.f32.mrf.mxu0
        %v4405 = vadd.f32 0.0, %v4404
        %v4406 = vpop.f32.mrf.mxu0
        %4407 = vmatprep.mubr.bf16.mxu0 0
        %4408 = vmatmul.mubr.bf16.gmra.mxu0 %v1853
        %v4409 = vpop.f32.mrf.mxu0
        %v4410 = vadd.f32 0.0, %v4409
        %v4411 = vpop.f32.mrf.mxu0
        %v4412 = vpop.f32.mrf.mxu0
        %v4413 = vadd.f32 0.0, %v4412
        %v4414 = vpop.f32.mrf.mxu0
        %4415 = vmatprep.mubr.bf16.mxu0 0
        %4416 = vmatmul.mubr.bf16.gmra.mxu0 %v1856
        %v4417 = vpop.f32.mrf.mxu0
        %v4418 = vadd.f32 0.0, %v4417
        %v4419 = vpop.f32.mrf.mxu0
        %v4420 = vpop.f32.mrf.mxu0
        %v4421 = vadd.f32 0.0, %v4420
        %v4422 = vpop.f32.mrf.mxu0
        %4423 = vmatprep.mubr.bf16.mxu0 0
        %4424 = vmatmul.mubr.bf16.gmra.mxu0 %v1859
        %v4425 = vpop.f32.mrf.mxu0
        %v4426 = vadd.f32 0.0, %v4425
        %v4427 = vpop.f32.mrf.mxu0
        %v4428 = vpop.f32.mrf.mxu0
        %v4429 = vadd.f32 0.0, %v4428
        %v4430 = vpop.f32.mrf.mxu0
        %4431 = vmatprep.mubr.bf16.mxu0 0
        %4432 = vmatmul.mubr.bf16.gmra.mxu0 %v1862
        %v4433 = vpop.f32.mrf.mxu0
        %v4434 = vadd.f32 0.0, %v4433
        %v4435 = vpop.f32.mrf.mxu0
        %v4436 = vpop.f32.mrf.mxu0
        %v4437 = vadd.f32 0.0, %v4436
        %v4438 = vpop.f32.mrf.mxu0
        %4439 = vmatprep.mubr.bf16.mxu0 0
        %4440 = vmatmul.mubr.bf16.gmra.mxu0 %v1865
        %v4441 = vpop.f32.mrf.mxu0
        %v4442 = vadd.f32 0.0, %v4441
        %v4443 = vpop.f32.mrf.mxu0
        %v4444 = vpop.f32.mrf.mxu0
        %v4445 = vadd.f32 0.0, %v4444
        %v4446 = vpop.f32.mrf.mxu0
        %4447 = vmatprep.mubr.bf16.mxu0 0
        %4448 = vmatmul.mubr.bf16.gmra.mxu0 %v1868
        %v4449 = vpop.f32.mrf.mxu0
        %v4450 = vadd.f32 0.0, %v4449
        %v4451 = vpop.f32.mrf.mxu0
        %v4452 = vpop.f32.mrf.mxu0
        %v4453 = vadd.f32 0.0, %v4452
        %v4454 = vpop.f32.mrf.mxu0
        %4455 = vmatprep.mubr.bf16.mxu0 0
        %4456 = vmatmul.mubr.bf16.gmra.mxu0 %v1871
        %v4457 = vpop.f32.mrf.mxu0
        %v4458 = vadd.f32 0.0, %v4457
        %v4459 = vpop.f32.mrf.mxu0
        %v4460 = vpop.f32.mrf.mxu0
        %v4461 = vadd.f32 0.0, %v4460
        %v4462 = vpop.f32.mrf.mxu0
        %4463 = vmatprep.mubr.bf16.mxu0 0
        %4464 = vmatmul.mubr.bf16.gmra.mxu0 %v1874
        %v4465 = vpop.f32.mrf.mxu0
        %v4466 = vadd.f32 0.0, %v4465
        %v4467 = vpop.f32.mrf.mxu0
        %v4468 = vpop.f32.mrf.mxu0
        %v4469 = vadd.f32 0.0, %v4468
        %v4470 = vpop.f32.mrf.mxu0
        %4471 = vmatprep.mubr.bf16.mxu0 0
        %4472 = vmatmul.mubr.bf16.gmra.mxu0 %v1877
        %v4473 = vpop.f32.mrf.mxu0
        %v4474 = vadd.f32 0.0, %v4473
        %v4475 = vpop.f32.mrf.mxu0
        %v4476 = vpop.f32.mrf.mxu0
        %v4477 = vadd.f32 0.0, %v4476
        %v4478 = vpop.f32.mrf.mxu0
        %4479 = vmatprep.mubr.bf16.mxu0 0
        %4480 = vmatmul.mubr.bf16.gmra.mxu0 %v4271
        %v4481 = vpop.f32.mrf.mxu0
        %v4482 = vadd.f32 0.0, %v4481
        %v4483 = vpop.f32.mrf.mxu0
        %v4484 = vpop.f32.mrf.mxu0
        %v4485 = vadd.f32 0.0, %v4484
        %v4486 = vpop.f32.mrf.mxu0
        %4487 = vmatprep.mubr.bf16.mxu0 0
        %4488 = vmatmul.mubr.bf16.gmra.mxu0 %v4274
        %v4489 = vpop.f32.mrf.mxu0
        %v4490 = vadd.f32 0.0, %v4489
        %v4491 = vpop.f32.mrf.mxu0
        %v4492 = vpop.f32.mrf.mxu0
        %v4493 = vadd.f32 0.0, %v4492
        %v4494 = vpop.f32.mrf.mxu0
        %4495 = vmatprep.mubr.bf16.mxu0 0
        %4496 = vmatmul.mubr.bf16.gmra.mxu0 %v4277
        %v4497 = vpop.f32.mrf.mxu0
        %v4498 = vadd.f32 0.0, %v4497
        %v4499 = vpop.f32.mrf.mxu0
        %v4500 = vpop.f32.mrf.mxu0
        %v4501 = vadd.f32 0.0, %v4500
        %v4502 = vpop.f32.mrf.mxu0
        %4503 = vdwg.mxu0
        %v4504 = vadd.f32 %v4196, %v4314
        %v4505 = vadd.f32 %v4197, %v4317
        %v4506 = vadd.f32 %v4198, %v4322
        %v4507 = vadd.f32 %v4199, %v4325
        %v4508 = vadd.f32 %v4200, %v4330
        %v4509 = vadd.f32 %v4201, %v4333
        %v4510 = vadd.f32 %v4202, %v4338
        %v4511 = vadd.f32 %v4203, %v4341
        %v4512 = vadd.f32 %v4204, %v4346
        %v4513 = vadd.f32 %v4205, %v4349
        %v4514 = vadd.f32 %v4206, %v4354
        %v4515 = vadd.f32 %v4207, %v4357
        %v4516 = vadd.f32 %v4208, %v4362
        %v4517 = vadd.f32 %v4209, %v4365
        %v4518 = vadd.f32 %v4210, %v4370
        %v4519 = vadd.f32 %v4211, %v4373
        %v4520 = vadd.f32 %v4212, %v4378
        %v4521 = vadd.f32 %v4213, %v4381
        %v4522 = vadd.f32 %v4214, %v4386
        %v4523 = vadd.f32 %v4215, %v4389
        %v4524 = vadd.f32 %v4216, %v4394
        %v4525 = vadd.f32 %v4217, %v4397
        %v4526 = vadd.f32 %v4218, %v4402
        %v4527 = vadd.f32 %v4219, %v4405
        %v4528 = vadd.f32 %v4220, %v4410
        %v4529 = vadd.f32 %v4221, %v4413
        %v4530 = vadd.f32 %v4222, %v4418
        %v4531 = vadd.f32 %v4223, %v4421
        %v4532 = vadd.f32 %v4224, %v4426
        %v4533 = vadd.f32 %v4225, %v4429
        %v4534 = vadd.f32 %v4226, %v4434
        %v4535 = vadd.f32 %v4227, %v4437
        %v4536 = vadd.f32 %v4228, %v4442
        %v4537 = vadd.f32 %v4229, %v4445
        %v4538 = vadd.f32 %v4230, %v4450
        %v4539 = vadd.f32 %v4231, %v4453
        %v4540 = vadd.f32 %v4232, %v4458
        %v4541 = vadd.f32 %v4233, %v4461
        %v4542 = vadd.f32 %v4234, %v4466
        %v4543 = vadd.f32 %v4235, %v4469
        %v4544 = vadd.f32 %v4236, %v4474
        %v4545 = vadd.f32 %v4237, %v4477
        %v4546 = vadd.f32 %v4238, %v4482
        %v4547 = vadd.f32 %v4239, %v4485
        %v4548 = vadd.f32 %v4240, %v4490
        %v4549 = vadd.f32 %v4241, %v4493
        %v4550 = vadd.f32 %v4242, %v4498
        %v4551 = vadd.f32 %v4243, %v4501
        %v4554 = vunpack.c.l.b16 %v2295
        %v4555 = vunpack.c.h.b16 %v2295
        %v4556 = vunpack.c.l.b16 %v2296
        %s4557 = scalar_lea.vmem %s3, 128
        %v4558 = vld [vmem:[%s4557] sm:$0xf]
        %v4559 = vld [vmem:[%s4557 + $0x4] sm:$0xf]
        %v4560 = vld [vmem:[%s4557 + $0x8] sm:$0xf]
        %v4561 = vld [vmem:[%s4557 + $0xc] sm:$0xf]
        %v4562 = vpack.c.b16 %v3549, %v3548
        %v4563 = vpack.c.b16 %v4554, %v3550
        %v4564 = vpack.c.b16 %v4556, %v4555
        %v4569 = vunpack.c.l.b16 %v4558
        %v4570 = vunpack.c.l.b16 %v4559
        %v4571 = vunpack.c.l.b16 %v4560
        %v4572 = vunpack.c.l.b16 %v4561
        %v4573 = vpack.c.b16 %v4570, %v4569
        %v4574 = vpack.c.b16 %v4572, %v4571
        %v4578 = vsel %vm1324, %v4562, 0
        %v4581 = vsel %vm1324, %v4563, 0
        %v4584 = vsel %vm1324, %v4564, 0
        %4586 = vmatprep.subr.bf16.mxu0 0
        %4587 = vmatpush1.bf16.msra.mxu0 0
        %4588 = vmatprep.subr.bf16.mxu0 0
        %4589 = vmatpush1.bf16.msra.mxu0 0
        %4590 = vmatprep.subr.bf16.mxu0 0
        %4591 = vmatpush1.bf16.msra.mxu0 0
        %4592 = vmatprep.subr.bf16.mxu0 0
        %4593 = vmatpush1.bf16.msra.mxu0 0
        %4594 = vmatprep.subr.bf16.mxu0 0
        %4595 = vmatpush1.bf16.msra.mxu0 0
        %4596 = vmatprep.subr.bf16.mxu0 0
        %4597 = vmatpush1.bf16.msra.mxu0 0
        %4598 = vmatprep.subr.bf16.mxu0 0
        %4599 = vmatpush1.bf16.msra.mxu0 %v4574
        %4600 = vmatprep.subr.bf16.mxu0 0
        %4601 = vmatpush1.bf16.msra.mxu0 %v4573
        %4602 = vmatprep.subr.bf16.mxu0 0
        %4603 = vmatpush2.bf16.msra.mxu0 0
        %4604 = vmatprep.subr.bf16.mxu0 0
        %4605 = vmatpush2.bf16.msra.mxu0 0
        %4606 = vmatprep.subr.bf16.mxu0 0
        %4607 = vmatpush2.bf16.msra.mxu0 0
        %4608 = vmatprep.subr.bf16.mxu0 0
        %4609 = vmatpush2.bf16.msra.mxu0 0
        %4610 = vmatprep.subr.bf16.mxu0 0
        %4611 = vmatpush2.bf16.msra.mxu0 0
        %4612 = vmatprep.subr.bf16.mxu0 0
        %4613 = vmatpush2.bf16.msra.mxu0 0
        %4614 = vmatprep.subr.bf16.mxu0 0
        %4615 = vmatpush2.bf16.msra.mxu0 0
        %4616 = vmatprep.subr.bf16.mxu0 0
        %4617 = vmatpush2.bf16.msra.mxu0 0
        %4618 = vmatprep.mubr.bf16.mxu0 0
        %4619 = vmatmul.mubr.bf16.gmra.mxu0 %v2428
        %v4620 = vpop.f32.mrf.mxu0
        %v4621 = vadd.f32 0.0, %v4620
        %v4622 = vpop.f32.mrf.mxu0
        %v4623 = vpop.f32.mrf.mxu0
        %v4624 = vadd.f32 0.0, %v4623
        %v4625 = vpop.f32.mrf.mxu0
        %4626 = vmatprep.mubr.bf16.mxu0 0
        %4627 = vmatmul.mubr.bf16.gmra.mxu0 %v2431
        %v4628 = vpop.f32.mrf.mxu0
        %v4629 = vadd.f32 0.0, %v4628
        %v4630 = vpop.f32.mrf.mxu0
        %v4631 = vpop.f32.mrf.mxu0
        %v4632 = vadd.f32 0.0, %v4631
        %v4633 = vpop.f32.mrf.mxu0
        %4634 = vmatprep.mubr.bf16.mxu0 0
        %4635 = vmatmul.mubr.bf16.gmra.mxu0 %v2434
        %v4636 = vpop.f32.mrf.mxu0
        %v4637 = vadd.f32 0.0, %v4636
        %v4638 = vpop.f32.mrf.mxu0
        %v4639 = vpop.f32.mrf.mxu0
        %v4640 = vadd.f32 0.0, %v4639
        %v4641 = vpop.f32.mrf.mxu0
        %4642 = vmatprep.mubr.bf16.mxu0 0
        %4643 = vmatmul.mubr.bf16.gmra.mxu0 %v2437
        %v4644 = vpop.f32.mrf.mxu0
        %v4645 = vadd.f32 0.0, %v4644
        %v4646 = vpop.f32.mrf.mxu0
        %v4647 = vpop.f32.mrf.mxu0
        %v4648 = vadd.f32 0.0, %v4647
        %v4649 = vpop.f32.mrf.mxu0
        %4650 = vmatprep.mubr.bf16.mxu0 0
        %4651 = vmatmul.mubr.bf16.gmra.mxu0 %v2440
        %v4652 = vpop.f32.mrf.mxu0
        %v4653 = vadd.f32 0.0, %v4652
        %v4654 = vpop.f32.mrf.mxu0
        %v4655 = vpop.f32.mrf.mxu0
        %v4656 = vadd.f32 0.0, %v4655
        %v4657 = vpop.f32.mrf.mxu0
        %4658 = vmatprep.mubr.bf16.mxu0 0
        %4659 = vmatmul.mubr.bf16.gmra.mxu0 %v2443
        %v4660 = vpop.f32.mrf.mxu0
        %v4661 = vadd.f32 0.0, %v4660
        %v4662 = vpop.f32.mrf.mxu0
        %v4663 = vpop.f32.mrf.mxu0
        %v4664 = vadd.f32 0.0, %v4663
        %v4665 = vpop.f32.mrf.mxu0
        %4666 = vmatprep.mubr.bf16.mxu0 0
        %4667 = vmatmul.mubr.bf16.gmra.mxu0 %v2446
        %v4668 = vpop.f32.mrf.mxu0
        %v4669 = vadd.f32 0.0, %v4668
        %v4670 = vpop.f32.mrf.mxu0
        %v4671 = vpop.f32.mrf.mxu0
        %v4672 = vadd.f32 0.0, %v4671
        %v4673 = vpop.f32.mrf.mxu0
        %4674 = vmatprep.mubr.bf16.mxu0 0
        %4675 = vmatmul.mubr.bf16.gmra.mxu0 %v2449
        %v4676 = vpop.f32.mrf.mxu0
        %v4677 = vadd.f32 0.0, %v4676
        %v4678 = vpop.f32.mrf.mxu0
        %v4679 = vpop.f32.mrf.mxu0
        %v4680 = vadd.f32 0.0, %v4679
        %v4681 = vpop.f32.mrf.mxu0
        %4682 = vmatprep.mubr.bf16.mxu0 0
        %4683 = vmatmul.mubr.bf16.gmra.mxu0 %v2452
        %v4684 = vpop.f32.mrf.mxu0
        %v4685 = vadd.f32 0.0, %v4684
        %v4686 = vpop.f32.mrf.mxu0
        %v4687 = vpop.f32.mrf.mxu0
        %v4688 = vadd.f32 0.0, %v4687
        %v4689 = vpop.f32.mrf.mxu0
        %4690 = vmatprep.mubr.bf16.mxu0 0
        %4691 = vmatmul.mubr.bf16.gmra.mxu0 %v2455
        %v4692 = vpop.f32.mrf.mxu0
        %v4693 = vadd.f32 0.0, %v4692
        %v4694 = vpop.f32.mrf.mxu0
        %v4695 = vpop.f32.mrf.mxu0
        %v4696 = vadd.f32 0.0, %v4695
        %v4697 = vpop.f32.mrf.mxu0
        %4698 = vmatprep.mubr.bf16.mxu0 0
        %4699 = vmatmul.mubr.bf16.gmra.mxu0 %v2458
        %v4700 = vpop.f32.mrf.mxu0
        %v4701 = vadd.f32 0.0, %v4700
        %v4702 = vpop.f32.mrf.mxu0
        %v4703 = vpop.f32.mrf.mxu0
        %v4704 = vadd.f32 0.0, %v4703
        %v4705 = vpop.f32.mrf.mxu0
        %4706 = vmatprep.mubr.bf16.mxu0 0
        %4707 = vmatmul.mubr.bf16.gmra.mxu0 %v2461
        %v4708 = vpop.f32.mrf.mxu0
        %v4709 = vadd.f32 0.0, %v4708
        %v4710 = vpop.f32.mrf.mxu0
        %v4711 = vpop.f32.mrf.mxu0
        %v4712 = vadd.f32 0.0, %v4711
        %v4713 = vpop.f32.mrf.mxu0
        %4714 = vmatprep.mubr.bf16.mxu0 0
        %4715 = vmatmul.mubr.bf16.gmra.mxu0 %v2464
        %v4716 = vpop.f32.mrf.mxu0
        %v4717 = vadd.f32 0.0, %v4716
        %v4718 = vpop.f32.mrf.mxu0
        %v4719 = vpop.f32.mrf.mxu0
        %v4720 = vadd.f32 0.0, %v4719
        %v4721 = vpop.f32.mrf.mxu0
        %4722 = vmatprep.mubr.bf16.mxu0 0
        %4723 = vmatmul.mubr.bf16.gmra.mxu0 %v2467
        %v4724 = vpop.f32.mrf.mxu0
        %v4725 = vadd.f32 0.0, %v4724
        %v4726 = vpop.f32.mrf.mxu0
        %v4727 = vpop.f32.mrf.mxu0
        %v4728 = vadd.f32 0.0, %v4727
        %v4729 = vpop.f32.mrf.mxu0
        %4730 = vmatprep.mubr.bf16.mxu0 0
        %4731 = vmatmul.mubr.bf16.gmra.mxu0 %v2470
        %v4732 = vpop.f32.mrf.mxu0
        %v4733 = vadd.f32 0.0, %v4732
        %v4734 = vpop.f32.mrf.mxu0
        %v4735 = vpop.f32.mrf.mxu0
        %v4736 = vadd.f32 0.0, %v4735
        %v4737 = vpop.f32.mrf.mxu0
        %4738 = vmatprep.mubr.bf16.mxu0 0
        %4739 = vmatmul.mubr.bf16.gmra.mxu0 %v2473
        %v4740 = vpop.f32.mrf.mxu0
        %v4741 = vadd.f32 0.0, %v4740
        %v4742 = vpop.f32.mrf.mxu0
        %v4743 = vpop.f32.mrf.mxu0
        %v4744 = vadd.f32 0.0, %v4743
        %v4745 = vpop.f32.mrf.mxu0
        %4746 = vmatprep.mubr.bf16.mxu0 0
        %4747 = vmatmul.mubr.bf16.gmra.mxu0 %v2476
        %v4748 = vpop.f32.mrf.mxu0
        %v4749 = vadd.f32 0.0, %v4748
        %v4750 = vpop.f32.mrf.mxu0
        %v4751 = vpop.f32.mrf.mxu0
        %v4752 = vadd.f32 0.0, %v4751
        %v4753 = vpop.f32.mrf.mxu0
        %4754 = vmatprep.mubr.bf16.mxu0 0
        %4755 = vmatmul.mubr.bf16.gmra.mxu0 %v2479
        %v4756 = vpop.f32.mrf.mxu0
        %v4757 = vadd.f32 0.0, %v4756
        %v4758 = vpop.f32.mrf.mxu0
        %v4759 = vpop.f32.mrf.mxu0
        %v4760 = vadd.f32 0.0, %v4759
        %v4761 = vpop.f32.mrf.mxu0
        %4762 = vmatprep.mubr.bf16.mxu0 0
        %4763 = vmatmul.mubr.bf16.gmra.mxu0 %v2482
        %v4764 = vpop.f32.mrf.mxu0
        %v4765 = vadd.f32 0.0, %v4764
        %v4766 = vpop.f32.mrf.mxu0
        %v4767 = vpop.f32.mrf.mxu0
        %v4768 = vadd.f32 0.0, %v4767
        %v4769 = vpop.f32.mrf.mxu0
        %4770 = vmatprep.mubr.bf16.mxu0 0
        %4771 = vmatmul.mubr.bf16.gmra.mxu0 %v2485
        %v4772 = vpop.f32.mrf.mxu0
        %v4773 = vadd.f32 0.0, %v4772
        %v4774 = vpop.f32.mrf.mxu0
        %v4775 = vpop.f32.mrf.mxu0
        %v4776 = vadd.f32 0.0, %v4775
        %v4777 = vpop.f32.mrf.mxu0
        %4778 = vmatprep.mubr.bf16.mxu0 0
        %4779 = vmatmul.mubr.bf16.gmra.mxu0 %v2488
        %v4780 = vpop.f32.mrf.mxu0
        %v4781 = vadd.f32 0.0, %v4780
        %v4782 = vpop.f32.mrf.mxu0
        %v4783 = vpop.f32.mrf.mxu0
        %v4784 = vadd.f32 0.0, %v4783
        %v4785 = vpop.f32.mrf.mxu0
        %4786 = vmatprep.mubr.bf16.mxu0 0
        %4787 = vmatmul.mubr.bf16.gmra.mxu0 %v4578
        %v4788 = vpop.f32.mrf.mxu0
        %v4789 = vadd.f32 0.0, %v4788
        %v4790 = vpop.f32.mrf.mxu0
        %v4791 = vpop.f32.mrf.mxu0
        %v4792 = vadd.f32 0.0, %v4791
        %v4793 = vpop.f32.mrf.mxu0
        %4794 = vmatprep.mubr.bf16.mxu0 0
        %4795 = vmatmul.mubr.bf16.gmra.mxu0 %v4581
        %v4796 = vpop.f32.mrf.mxu0
        %v4797 = vadd.f32 0.0, %v4796
        %v4798 = vpop.f32.mrf.mxu0
        %v4799 = vpop.f32.mrf.mxu0
        %v4800 = vadd.f32 0.0, %v4799
        %v4801 = vpop.f32.mrf.mxu0
        %4802 = vmatprep.mubr.bf16.mxu0 0
        %4803 = vmatmul.mubr.bf16.gmra.mxu0 %v4584
        %v4804 = vpop.f32.mrf.mxu0
        %v4805 = vadd.f32 0.0, %v4804
        %v4806 = vpop.f32.mrf.mxu0
        %v4807 = vpop.f32.mrf.mxu0
        %v4808 = vadd.f32 0.0, %v4807
        %v4809 = vpop.f32.mrf.mxu0
        %4810 = vdwg.mxu0
        %v4811 = vadd.f32 %v4504, %v4621
        %v4812 = vadd.f32 %v4505, %v4624
        %v4813 = vadd.f32 %v4506, %v4629
        %v4814 = vadd.f32 %v4507, %v4632
        %v4815 = vadd.f32 %v4508, %v4637
        %v4816 = vadd.f32 %v4509, %v4640
        %v4817 = vadd.f32 %v4510, %v4645
        %v4818 = vadd.f32 %v4511, %v4648
        %v4819 = vadd.f32 %v4512, %v4653
        %v4820 = vadd.f32 %v4513, %v4656
        %v4821 = vadd.f32 %v4514, %v4661
        %v4822 = vadd.f32 %v4515, %v4664
        %v4823 = vadd.f32 %v4516, %v4669
        %v4824 = vadd.f32 %v4517, %v4672
        %v4825 = vadd.f32 %v4518, %v4677
        %v4826 = vadd.f32 %v4519, %v4680
        %v4827 = vadd.f32 %v4520, %v4685
        %v4828 = vadd.f32 %v4521, %v4688
        %v4829 = vadd.f32 %v4522, %v4693
        %v4830 = vadd.f32 %v4523, %v4696
        %v4831 = vadd.f32 %v4524, %v4701
        %v4832 = vadd.f32 %v4525, %v4704
        %v4833 = vadd.f32 %v4526, %v4709
        %v4834 = vadd.f32 %v4527, %v4712
        %v4835 = vadd.f32 %v4528, %v4717
        %v4836 = vadd.f32 %v4529, %v4720
        %v4837 = vadd.f32 %v4530, %v4725
        %v4838 = vadd.f32 %v4531, %v4728
        %v4839 = vadd.f32 %v4532, %v4733
        %v4840 = vadd.f32 %v4533, %v4736
        %v4841 = vadd.f32 %v4534, %v4741
        %v4842 = vadd.f32 %v4535, %v4744
        %v4843 = vadd.f32 %v4536, %v4749
        %v4844 = vadd.f32 %v4537, %v4752
        %v4845 = vadd.f32 %v4538, %v4757
        %v4846 = vadd.f32 %v4539, %v4760
        %v4847 = vadd.f32 %v4540, %v4765
        %v4848 = vadd.f32 %v4541, %v4768
        %v4849 = vadd.f32 %v4542, %v4773
        %v4850 = vadd.f32 %v4543, %v4776
        %v4851 = vadd.f32 %v4544, %v4781
        %v4852 = vadd.f32 %v4545, %v4784
        %v4853 = vadd.f32 %v4546, %v4789
        %v4854 = vadd.f32 %v4547, %v4792
        %v4855 = vadd.f32 %v4548, %v4797
        %v4856 = vadd.f32 %v4549, %v4800
        %v4857 = vadd.f32 %v4550, %v4805
        %v4858 = vadd.f32 %v4551, %v4808
        %v4859 = vmax.f32 %v4811, 0.0
        %v4860 = vmax.f32 %v4812, 0.0
        %v4861 = vmax.f32 %v4813, 0.0
        %v4862 = vmax.f32 %v4814, 0.0
        %v4863 = vmax.f32 %v4815, 0.0
        %v4864 = vmax.f32 %v4816, 0.0
        %v4865 = vmax.f32 %v4817, 0.0
        %v4866 = vmax.f32 %v4818, 0.0
        %v4867 = vmax.f32 %v4819, 0.0
        %v4868 = vmax.f32 %v4820, 0.0
        %v4869 = vmax.f32 %v4821, 0.0
        %v4870 = vmax.f32 %v4822, 0.0
        %v4871 = vmax.f32 %v4823, 0.0
        %v4872 = vmax.f32 %v4824, 0.0
        %v4873 = vmax.f32 %v4825, 0.0
        %v4874 = vmax.f32 %v4826, 0.0
        %v4875 = vmax.f32 %v4827, 0.0
        %v4876 = vmax.f32 %v4828, 0.0
        %v4877 = vmax.f32 %v4829, 0.0
        %v4878 = vmax.f32 %v4830, 0.0
        %v4879 = vmax.f32 %v4831, 0.0
        %v4880 = vmax.f32 %v4832, 0.0
        %v4881 = vmax.f32 %v4833, 0.0
        %v4882 = vmax.f32 %v4834, 0.0
        %v4883 = vmax.f32 %v4835, 0.0
        %v4884 = vmax.f32 %v4836, 0.0
        %v4885 = vmax.f32 %v4837, 0.0
        %v4886 = vmax.f32 %v4838, 0.0
        %v4887 = vmax.f32 %v4839, 0.0
        %v4888 = vmax.f32 %v4840, 0.0
        %v4889 = vmax.f32 %v4841, 0.0
        %v4890 = vmax.f32 %v4842, 0.0
        %v4891 = vmax.f32 %v4843, 0.0
        %v4892 = vmax.f32 %v4844, 0.0
        %v4893 = vmax.f32 %v4845, 0.0
        %v4894 = vmax.f32 %v4846, 0.0
        %v4895 = vmax.f32 %v4847, 0.0
        %v4896 = vmax.f32 %v4848, 0.0
        %v4897 = vmax.f32 %v4849, 0.0
        %v4898 = vmax.f32 %v4850, 0.0
        %v4899 = vmax.f32 %v4851, 0.0
        %v4900 = vmax.f32 %v4852, 0.0
        %v4901 = vmax.f32 %v4853, 0.0
        %v4902 = vmax.f32 %v4854, 0.0
        %v4903 = vmax.f32 %v4855, 0.0
        %v4904 = vmax.f32 %v4856, 0.0
        %v4905 = vmax.f32 %v4857, 0.0
        %v4906 = vmax.f32 %v4858, 0.0
        %v4907 = vpack.c.bf16 %v4860, %v4859
        %v4908 = vpack.c.bf16 %v4862, %v4861
        %v4909 = vpack.c.bf16 %v4864, %v4863
        %v4910 = vpack.c.bf16 %v4866, %v4865
        %v4911 = vpack.c.bf16 %v4868, %v4867
        %v4912 = vpack.c.bf16 %v4870, %v4869
        %v4913 = vpack.c.bf16 %v4872, %v4871
        %v4914 = vpack.c.bf16 %v4874, %v4873
        %v4915 = vpack.c.bf16 %v4876, %v4875
        %v4916 = vpack.c.bf16 %v4878, %v4877
        %v4917 = vpack.c.bf16 %v4880, %v4879
        %v4918 = vpack.c.bf16 %v4882, %v4881
        %v4919 = vpack.c.bf16 %v4884, %v4883
        %v4920 = vpack.c.bf16 %v4886, %v4885
        %v4921 = vpack.c.bf16 %v4888, %v4887
        %v4922 = vpack.c.bf16 %v4890, %v4889
        %v4923 = vpack.c.bf16 %v4892, %v4891
        %v4924 = vpack.c.bf16 %v4894, %v4893
        %v4925 = vpack.c.bf16 %v4896, %v4895
        %v4926 = vpack.c.bf16 %v4898, %v4897
        %v4927 = vpack.c.bf16 %v4900, %v4899
        %v4928 = vpack.c.bf16 %v4902, %v4901
        %v4929 = vpack.c.bf16 %v4904, %v4903
        %v4930 = vpack.c.bf16 %v4906, %v4905
        %v4955 = vunpack.c.l.b16 %v4907
        %v4956 = vunpack.c.h.b16 %v4907
        %v4957 = vunpack.c.h.b16 %v4908
        %v4958 = vunpack.c.l.b16 %v4909
        %v4959 = vunpack.c.l.b16 %v4910
        %v4960 = vunpack.c.h.b16 %v4910
        %v4961 = vunpack.c.h.b16 %v4911
        %v4962 = vunpack.c.l.b16 %v4912
        %v4963 = vunpack.c.l.b16 %v4913
        %v4964 = vunpack.c.h.b16 %v4913
        %v4965 = vunpack.c.h.b16 %v4914
        %v4966 = vunpack.c.l.b16 %v4915
        %v4967 = vunpack.c.l.b16 %v4916
        %v4968 = vunpack.c.h.b16 %v4916
        %v4969 = vunpack.c.h.b16 %v4917
        %v4970 = vunpack.c.l.b16 %v4918
        %v4971 = vunpack.c.l.b16 %v4919
        %v4972 = vunpack.c.h.b16 %v4919
        %v4973 = vunpack.c.h.b16 %v4920
        %v4974 = vunpack.c.l.b16 %v4921
        %v4975 = vunpack.c.l.b16 %v4922
        %v4976 = vunpack.c.h.b16 %v4922
        %v4977 = vunpack.c.h.b16 %v4923
        %v4978 = vunpack.c.l.b16 %v4924
        %v4979 = vunpack.c.l.b16 %v4925
        %v4980 = vunpack.c.h.b16 %v4925
        %v4981 = vunpack.c.h.b16 %v4926
        %v4982 = vunpack.c.l.b16 %v4927
        %v4983 = vunpack.c.l.b16 %v4928
        %v4984 = vunpack.c.h.b16 %v4928
        %v4985 = vunpack.c.h.b16 %v4929
        %v4986 = vunpack.c.l.b16 %v4930
        %v4987 = vld [vmem:[%s5] sm:$0xf]
        %v4988 = vld [vmem:[%s5 + $0x4] sm:$0xf]
        %v4989 = vld [vmem:[%s5 + $0x8] sm:$0xf]
        %v4990 = vld [vmem:[%s5 + $0xc] sm:$0xf]
        %v4991 = vld [vmem:[%s6] sm:$0x1]
        %v4993 = vlaneseq
        %v4994 = vshrl.u32 %v4993, 7
        %v4995 = vsub.s32 0, %v4994
        %v4996 = vrot.slane %v4991, %v4995
        %v4998 = vpack.c.b16 %v4956, %v4955
        %v4999 = vpack.c.b16 %v4958, %v4957
        %v5000 = vpack.c.b16 %v4960, %v4959
        %v5001 = vpack.c.b16 %v4962, %v4961
        %v5002 = vpack.c.b16 %v4964, %v4963
        %v5003 = vpack.c.b16 %v4966, %v4965
        %v5004 = vpack.c.b16 %v4968, %v4967
        %v5005 = vpack.c.b16 %v4970, %v4969
        %v5006 = vpack.c.b16 %v4972, %v4971
        %v5007 = vpack.c.b16 %v4974, %v4973
        %v5008 = vpack.c.b16 %v4976, %v4975
        %v5009 = vpack.c.b16 %v4978, %v4977
        %v5010 = vpack.c.b16 %v4980, %v4979
        %v5011 = vpack.c.b16 %v4982, %v4981
        %v5012 = vpack.c.b16 %v4984, %v4983
        %v5013 = vpack.c.b16 %v4986, %v4985
        %v5018 = vunpack.c.l.b16 %v4987
        %v5019 = vunpack.c.l.b16 %v4988
        %v5020 = vunpack.c.l.b16 %v4989
        %v5021 = vunpack.c.l.b16 %v4990
        %v5022 = vpack.c.b16 %v5019, %v5018
        %v5023 = vpack.c.b16 %v5021, %v5020
        %v5027 = vsel %vm1324, %v4998, 0
        %v5030 = vsel %vm1324, %v4999, 0
        %v5033 = vsel %vm1324, %v5000, 0
        %v5036 = vsel %vm1324, %v5001, 0
        %v5039 = vsel %vm1324, %v5002, 0
        %v5042 = vsel %vm1324, %v5003, 0
        %v5045 = vsel %vm1324, %v5004, 0
        %v5048 = vsel %vm1324, %v5005, 0
        %v5051 = vsel %vm1324, %v5006, 0
        %v5054 = vsel %vm1324, %v5007, 0
        %v5057 = vsel %vm1324, %v5008, 0
        %v5060 = vsel %vm1324, %v5009, 0
        %v5063 = vsel %vm1324, %v5010, 0
        %v5066 = vsel %vm1324, %v5011, 0
        %v5069 = vsel %vm1324, %v5012, 0
        %v5072 = vsel %vm1324, %v5013, 0
        %5074 = vmatprep.subr.bf16.mxu0 0
        %5075 = vmatpush1.bf16.msra.mxu0 0
        %5076 = vmatprep.subr.bf16.mxu0 0
        %5077 = vmatpush1.bf16.msra.mxu0 0
        %5078 = vmatprep.subr.bf16.mxu0 0
        %5079 = vmatpush1.bf16.msra.mxu0 0
        %5080 = vmatprep.subr.bf16.mxu0 0
        %5081 = vmatpush1.bf16.msra.mxu0 0
        %5082 = vmatprep.subr.bf16.mxu0 0
        %5083 = vmatpush1.bf16.msra.mxu0 0
        %5084 = vmatprep.subr.bf16.mxu0 0
        %5085 = vmatpush1.bf16.msra.mxu0 0
        %5086 = vmatprep.subr.bf16.mxu0 0
        %5087 = vmatpush1.bf16.msra.mxu0 %v5023
        %5088 = vmatprep.subr.bf16.mxu0 0
        %5089 = vmatpush1.bf16.msra.mxu0 %v5022
        %5090 = vmatprep.subr.bf16.mxu0 0
        %5091 = vmatpush2.bf16.msra.mxu0 0
        %5092 = vmatprep.subr.bf16.mxu0 0
        %5093 = vmatpush2.bf16.msra.mxu0 0
        %5094 = vmatprep.subr.bf16.mxu0 0
        %5095 = vmatpush2.bf16.msra.mxu0 0
        %5096 = vmatprep.subr.bf16.mxu0 0
        %5097 = vmatpush2.bf16.msra.mxu0 0
        %5098 = vmatprep.subr.bf16.mxu0 0
        %5099 = vmatpush2.bf16.msra.mxu0 0
        %5100 = vmatprep.subr.bf16.mxu0 0
        %5101 = vmatpush2.bf16.msra.mxu0 0
        %5102 = vmatprep.subr.bf16.mxu0 0
        %5103 = vmatpush2.bf16.msra.mxu0 0
        %5104 = vmatprep.subr.bf16.mxu0 0
        %5105 = vmatpush2.bf16.msra.mxu0 0
        %5106 = vmatprep.mubr.bf16.mxu0 0
        %5107 = vmatmul.mubr.bf16.gmra.mxu0 %v5027
        %v5108 = vpop.f32.mrf.mxu0
        %v5109 = vadd.f32 %v4996, %v5108
        %v5110 = vpop.f32.mrf.mxu0
        %v5111 = vpop.f32.mrf.mxu0
        %v5112 = vadd.f32 %v4996, %v5111
        %v5113 = vpop.f32.mrf.mxu0
        %5114 = vmatprep.mubr.bf16.mxu0 0
        %5115 = vmatmul.mubr.bf16.gmra.mxu0 %v5030
        %v5116 = vpop.f32.mrf.mxu0
        %v5117 = vadd.f32 %v4996, %v5116
        %v5118 = vpop.f32.mrf.mxu0
        %v5119 = vpop.f32.mrf.mxu0
        %v5120 = vadd.f32 %v4996, %v5119
        %v5121 = vpop.f32.mrf.mxu0
        %5122 = vmatprep.mubr.bf16.mxu0 0
        %5123 = vmatmul.mubr.bf16.gmra.mxu0 %v5033
        %v5124 = vpop.f32.mrf.mxu0
        %v5125 = vadd.f32 %v4996, %v5124
        %v5126 = vpop.f32.mrf.mxu0
        %v5127 = vpop.f32.mrf.mxu0
        %v5128 = vadd.f32 %v4996, %v5127
        %v5129 = vpop.f32.mrf.mxu0
        %5130 = vmatprep.mubr.bf16.mxu0 0
        %5131 = vmatmul.mubr.bf16.gmra.mxu0 %v5036
        %v5132 = vpop.f32.mrf.mxu0
        %v5133 = vadd.f32 %v4996, %v5132
        %v5134 = vpop.f32.mrf.mxu0
        %v5135 = vpop.f32.mrf.mxu0
        %v5136 = vadd.f32 %v4996, %v5135
        %v5137 = vpop.f32.mrf.mxu0
        %5138 = vmatprep.mubr.bf16.mxu0 0
        %5139 = vmatmul.mubr.bf16.gmra.mxu0 %v5039
        %v5140 = vpop.f32.mrf.mxu0
        %v5141 = vadd.f32 %v4996, %v5140
        %v5142 = vpop.f32.mrf.mxu0
        %v5143 = vpop.f32.mrf.mxu0
        %v5144 = vadd.f32 %v4996, %v5143
        %v5145 = vpop.f32.mrf.mxu0
        %5146 = vmatprep.mubr.bf16.mxu0 0
        %5147 = vmatmul.mubr.bf16.gmra.mxu0 %v5042
        %v5148 = vpop.f32.mrf.mxu0
        %v5149 = vadd.f32 %v4996, %v5148
        %v5150 = vpop.f32.mrf.mxu0
        %v5151 = vpop.f32.mrf.mxu0
        %v5152 = vadd.f32 %v4996, %v5151
        %v5153 = vpop.f32.mrf.mxu0
        %5154 = vmatprep.mubr.bf16.mxu0 0
        %5155 = vmatmul.mubr.bf16.gmra.mxu0 %v5045
        %v5156 = vpop.f32.mrf.mxu0
        %v5157 = vadd.f32 %v4996, %v5156
        %v5158 = vpop.f32.mrf.mxu0
        %v5159 = vpop.f32.mrf.mxu0
        %v5160 = vadd.f32 %v4996, %v5159
        %v5161 = vpop.f32.mrf.mxu0
        %5162 = vmatprep.mubr.bf16.mxu0 0
        %5163 = vmatmul.mubr.bf16.gmra.mxu0 %v5048
        %v5164 = vpop.f32.mrf.mxu0
        %v5165 = vadd.f32 %v4996, %v5164
        %v5166 = vpop.f32.mrf.mxu0
        %v5167 = vpop.f32.mrf.mxu0
        %v5168 = vadd.f32 %v4996, %v5167
        %v5169 = vpop.f32.mrf.mxu0
        %5170 = vmatprep.mubr.bf16.mxu0 0
        %5171 = vmatmul.mubr.bf16.gmra.mxu0 %v5051
        %v5172 = vpop.f32.mrf.mxu0
        %v5173 = vadd.f32 %v4996, %v5172
        %v5174 = vpop.f32.mrf.mxu0
        %v5175 = vpop.f32.mrf.mxu0
        %v5176 = vadd.f32 %v4996, %v5175
        %v5177 = vpop.f32.mrf.mxu0
        %5178 = vmatprep.mubr.bf16.mxu0 0
        %5179 = vmatmul.mubr.bf16.gmra.mxu0 %v5054
        %v5180 = vpop.f32.mrf.mxu0
        %v5181 = vadd.f32 %v4996, %v5180
        %v5182 = vpop.f32.mrf.mxu0
        %v5183 = vpop.f32.mrf.mxu0
        %v5184 = vadd.f32 %v4996, %v5183
        %v5185 = vpop.f32.mrf.mxu0
        %5186 = vmatprep.mubr.bf16.mxu0 0
        %5187 = vmatmul.mubr.bf16.gmra.mxu0 %v5057
        %v5188 = vpop.f32.mrf.mxu0
        %v5189 = vadd.f32 %v4996, %v5188
        %v5190 = vpop.f32.mrf.mxu0
        %v5191 = vpop.f32.mrf.mxu0
        %v5192 = vadd.f32 %v4996, %v5191
        %v5193 = vpop.f32.mrf.mxu0
        %5194 = vmatprep.mubr.bf16.mxu0 0
        %5195 = vmatmul.mubr.bf16.gmra.mxu0 %v5060
        %v5196 = vpop.f32.mrf.mxu0
        %v5197 = vadd.f32 %v4996, %v5196
        %v5198 = vpop.f32.mrf.mxu0
        %v5199 = vpop.f32.mrf.mxu0
        %v5200 = vadd.f32 %v4996, %v5199
        %v5201 = vpop.f32.mrf.mxu0
        %5202 = vmatprep.mubr.bf16.mxu0 0
        %5203 = vmatmul.mubr.bf16.gmra.mxu0 %v5063
        %v5204 = vpop.f32.mrf.mxu0
        %v5205 = vadd.f32 %v4996, %v5204
        %v5206 = vpop.f32.mrf.mxu0
        %v5207 = vpop.f32.mrf.mxu0
        %v5208 = vadd.f32 %v4996, %v5207
        %v5209 = vpop.f32.mrf.mxu0
        %5210 = vmatprep.mubr.bf16.mxu0 0
        %5211 = vmatmul.mubr.bf16.gmra.mxu0 %v5066
        %v5212 = vpop.f32.mrf.mxu0
        %v5213 = vadd.f32 %v4996, %v5212
        %v5214 = vpop.f32.mrf.mxu0
        %v5215 = vpop.f32.mrf.mxu0
        %v5216 = vadd.f32 %v4996, %v5215
        %v5217 = vpop.f32.mrf.mxu0
        %5218 = vmatprep.mubr.bf16.mxu0 0
        %5219 = vmatmul.mubr.bf16.gmra.mxu0 %v5069
        %v5220 = vpop.f32.mrf.mxu0
        %v5221 = vadd.f32 %v4996, %v5220
        %v5222 = vpop.f32.mrf.mxu0
        %v5223 = vpop.f32.mrf.mxu0
        %v5224 = vadd.f32 %v4996, %v5223
        %v5225 = vpop.f32.mrf.mxu0
        %5226 = vmatprep.mubr.bf16.mxu0 0
        %5227 = vmatmul.mubr.bf16.gmra.mxu0 %v5072
        %v5228 = vpop.f32.mrf.mxu0
        %v5229 = vadd.f32 %v4996, %v5228
        %v5230 = vpop.f32.mrf.mxu0
        %v5231 = vpop.f32.mrf.mxu0
        %v5232 = vadd.f32 %v4996, %v5231
        %v5233 = vpop.f32.mrf.mxu0
        %5234 = vdwg.mxu0
        %v5235 = vld [vmem:[%s7] sm:$0xf]
        %v5236 = vld [vmem:[%s7 + $0x4] sm:$0xf]
        %v5237 = vld [vmem:[%s7 + $0x8] sm:$0xf]
        %v5238 = vld [vmem:[%s7 + $0xc] sm:$0xf]
        %v5239 = vld [vmem:[%s7 + $0x10] sm:$0xf]
        %v5240 = vld [vmem:[%s7 + $0x14] sm:$0xf]
        %v5241 = vld [vmem:[%s7 + $0x18] sm:$0xf]
        %v5242 = vld [vmem:[%s7 + $0x1c] sm:$0xf]
        %v5243 = vld [vmem:[%s8] sm:$0x1]
        %v5245 = vlaneseq
        %v5246 = vshrl.u32 %v5245, 7
        %v5247 = vsub.s32 0, %v5246
        %v5248 = vrot.slane %v5243, %v5247
        %v5258 = vunpack.c.l.b16 %v5235
        %v5259 = vunpack.c.l.b16 %v5236
        %v5260 = vunpack.c.l.b16 %v5237
        %v5261 = vunpack.c.l.b16 %v5238
        %v5262 = vunpack.c.l.b16 %v5239
        %v5263 = vunpack.c.l.b16 %v5240
        %v5264 = vunpack.c.l.b16 %v5241
        %v5265 = vunpack.c.l.b16 %v5242
        %v5266 = vpack.c.b16 %v5259, %v5258
        %v5267 = vpack.c.b16 %v5261, %v5260
        %v5268 = vpack.c.b16 %v5263, %v5262
        %v5269 = vpack.c.b16 %v5265, %v5264
        %5274 = vmatprep.subr.bf16.mxu0 0
        %5275 = vmatpush1.bf16.msra.mxu0 0
        %5276 = vmatprep.subr.bf16.mxu0 0
        %5277 = vmatpush1.bf16.msra.mxu0 0
        %5278 = vmatprep.subr.bf16.mxu0 0
        %5279 = vmatpush1.bf16.msra.mxu0 0
        %5280 = vmatprep.subr.bf16.mxu0 0
        %5281 = vmatpush1.bf16.msra.mxu0 0
        %5282 = vmatprep.subr.bf16.mxu0 0
        %5283 = vmatpush1.bf16.msra.mxu0 %v5269
        %5284 = vmatprep.subr.bf16.mxu0 0
        %5285 = vmatpush1.bf16.msra.mxu0 %v5268
        %5286 = vmatprep.subr.bf16.mxu0 0
        %5287 = vmatpush1.bf16.msra.mxu0 %v5267
        %5288 = vmatprep.subr.bf16.mxu0 0
        %5289 = vmatpush1.bf16.msra.mxu0 %v5266
        %5290 = vmatprep.subr.bf16.mxu0 0
        %5291 = vmatpush2.bf16.msra.mxu0 0
        %5292 = vmatprep.subr.bf16.mxu0 0
        %5293 = vmatpush2.bf16.msra.mxu0 0
        %5294 = vmatprep.subr.bf16.mxu0 0
        %5295 = vmatpush2.bf16.msra.mxu0 0
        %5296 = vmatprep.subr.bf16.mxu0 0
        %5297 = vmatpush2.bf16.msra.mxu0 0
        %5298 = vmatprep.subr.bf16.mxu0 0
        %5299 = vmatpush2.bf16.msra.mxu0 0
        %5300 = vmatprep.subr.bf16.mxu0 0
        %5301 = vmatpush2.bf16.msra.mxu0 0
        %5302 = vmatprep.subr.bf16.mxu0 0
        %5303 = vmatpush2.bf16.msra.mxu0 0
        %5304 = vmatprep.subr.bf16.mxu0 0
        %5305 = vmatpush2.bf16.msra.mxu0 0
        %5306 = vmatprep.mubr.bf16.mxu0 0
        %5307 = vmatmul.mubr.bf16.gmra.mxu0 %v485
        %v5308 = vpop.f32.mrf.mxu0
        %v5309 = vadd.f32 %v5248, %v5308
        %v5310 = vpop.f32.mrf.mxu0
        %v5311 = vpop.f32.mrf.mxu0
        %v5312 = vadd.f32 %v5248, %v5311
        %v5313 = vpop.f32.mrf.mxu0
        %5314 = vmatprep.mubr.bf16.mxu0 0
        %5315 = vmatmul.mubr.bf16.gmra.mxu0 %v488
        %v5316 = vpop.f32.mrf.mxu0
        %v5317 = vadd.f32 %v5248, %v5316
        %v5318 = vpop.f32.mrf.mxu0
        %v5319 = vpop.f32.mrf.mxu0
        %v5320 = vadd.f32 %v5248, %v5319
        %v5321 = vpop.f32.mrf.mxu0
        %5322 = vmatprep.mubr.bf16.mxu0 0
        %5323 = vmatmul.mubr.bf16.gmra.mxu0 %v491
        %v5324 = vpop.f32.mrf.mxu0
        %v5325 = vadd.f32 %v5248, %v5324
        %v5326 = vpop.f32.mrf.mxu0
        %v5327 = vpop.f32.mrf.mxu0
        %v5328 = vadd.f32 %v5248, %v5327
        %v5329 = vpop.f32.mrf.mxu0
        %5330 = vmatprep.mubr.bf16.mxu0 0
        %5331 = vmatmul.mubr.bf16.gmra.mxu0 %v494
        %v5332 = vpop.f32.mrf.mxu0
        %v5333 = vadd.f32 %v5248, %v5332
        %v5334 = vpop.f32.mrf.mxu0
        %v5335 = vpop.f32.mrf.mxu0
        %v5336 = vadd.f32 %v5248, %v5335
        %v5337 = vpop.f32.mrf.mxu0
        %5338 = vmatprep.mubr.bf16.mxu0 0
        %5339 = vmatmul.mubr.bf16.gmra.mxu0 %v497
        %v5340 = vpop.f32.mrf.mxu0
        %v5341 = vadd.f32 %v5248, %v5340
        %v5342 = vpop.f32.mrf.mxu0
        %v5343 = vpop.f32.mrf.mxu0
        %v5344 = vadd.f32 %v5248, %v5343
        %v5345 = vpop.f32.mrf.mxu0
        %5346 = vmatprep.mubr.bf16.mxu0 0
        %5347 = vmatmul.mubr.bf16.gmra.mxu0 %v500
        %v5348 = vpop.f32.mrf.mxu0
        %v5349 = vadd.f32 %v5248, %v5348
        %v5350 = vpop.f32.mrf.mxu0
        %v5351 = vpop.f32.mrf.mxu0
        %v5352 = vadd.f32 %v5248, %v5351
        %v5353 = vpop.f32.mrf.mxu0
        %5354 = vmatprep.mubr.bf16.mxu0 0
        %5355 = vmatmul.mubr.bf16.gmra.mxu0 %v503
        %v5356 = vpop.f32.mrf.mxu0
        %v5357 = vadd.f32 %v5248, %v5356
        %v5358 = vpop.f32.mrf.mxu0
        %v5359 = vpop.f32.mrf.mxu0
        %v5360 = vadd.f32 %v5248, %v5359
        %v5361 = vpop.f32.mrf.mxu0
        %5362 = vmatprep.mubr.bf16.mxu0 0
        %5363 = vmatmul.mubr.bf16.gmra.mxu0 %v506
        %v5364 = vpop.f32.mrf.mxu0
        %v5365 = vadd.f32 %v5248, %v5364
        %v5366 = vpop.f32.mrf.mxu0
        %v5367 = vpop.f32.mrf.mxu0
        %v5368 = vadd.f32 %v5248, %v5367
        %v5369 = vpop.f32.mrf.mxu0
        %5370 = vmatprep.mubr.bf16.mxu0 0
        %5371 = vmatmul.mubr.bf16.gmra.mxu0 %v509
        %v5372 = vpop.f32.mrf.mxu0
        %v5373 = vadd.f32 %v5248, %v5372
        %v5374 = vpop.f32.mrf.mxu0
        %v5375 = vpop.f32.mrf.mxu0
        %v5376 = vadd.f32 %v5248, %v5375
        %v5377 = vpop.f32.mrf.mxu0
        %5378 = vmatprep.mubr.bf16.mxu0 0
        %5379 = vmatmul.mubr.bf16.gmra.mxu0 %v512
        %v5380 = vpop.f32.mrf.mxu0
        %v5381 = vadd.f32 %v5248, %v5380
        %v5382 = vpop.f32.mrf.mxu0
        %v5383 = vpop.f32.mrf.mxu0
        %v5384 = vadd.f32 %v5248, %v5383
        %v5385 = vpop.f32.mrf.mxu0
        %5386 = vmatprep.mubr.bf16.mxu0 0
        %5387 = vmatmul.mubr.bf16.gmra.mxu0 %v515
        %v5388 = vpop.f32.mrf.mxu0
        %v5389 = vadd.f32 %v5248, %v5388
        %v5390 = vpop.f32.mrf.mxu0
        %v5391 = vpop.f32.mrf.mxu0
        %v5392 = vadd.f32 %v5248, %v5391
        %v5393 = vpop.f32.mrf.mxu0
        %5394 = vmatprep.mubr.bf16.mxu0 0
        %5395 = vmatmul.mubr.bf16.gmra.mxu0 %v518
        %v5396 = vpop.f32.mrf.mxu0
        %v5397 = vadd.f32 %v5248, %v5396
        %v5398 = vpop.f32.mrf.mxu0
        %v5399 = vpop.f32.mrf.mxu0
        %v5400 = vadd.f32 %v5248, %v5399
        %v5401 = vpop.f32.mrf.mxu0
        %5402 = vmatprep.mubr.bf16.mxu0 0
        %5403 = vmatmul.mubr.bf16.gmra.mxu0 %v521
        %v5404 = vpop.f32.mrf.mxu0
        %v5405 = vadd.f32 %v5248, %v5404
        %v5406 = vpop.f32.mrf.mxu0
        %v5407 = vpop.f32.mrf.mxu0
        %v5408 = vadd.f32 %v5248, %v5407
        %v5409 = vpop.f32.mrf.mxu0
        %5410 = vmatprep.mubr.bf16.mxu0 0
        %5411 = vmatmul.mubr.bf16.gmra.mxu0 %v524
        %v5412 = vpop.f32.mrf.mxu0
        %v5413 = vadd.f32 %v5248, %v5412
        %v5414 = vpop.f32.mrf.mxu0
        %v5415 = vpop.f32.mrf.mxu0
        %v5416 = vadd.f32 %v5248, %v5415
        %v5417 = vpop.f32.mrf.mxu0
        %5418 = vmatprep.mubr.bf16.mxu0 0
        %5419 = vmatmul.mubr.bf16.gmra.mxu0 %v527
        %v5420 = vpop.f32.mrf.mxu0
        %v5421 = vadd.f32 %v5248, %v5420
        %v5422 = vpop.f32.mrf.mxu0
        %v5423 = vpop.f32.mrf.mxu0
        %v5424 = vadd.f32 %v5248, %v5423
        %v5425 = vpop.f32.mrf.mxu0
        %5426 = vmatprep.mubr.bf16.mxu0 0
        %5427 = vmatmul.mubr.bf16.gmra.mxu0 %v530
        %v5428 = vpop.f32.mrf.mxu0
        %v5429 = vadd.f32 %v5248, %v5428
        %v5430 = vpop.f32.mrf.mxu0
        %v5431 = vpop.f32.mrf.mxu0
        %v5432 = vadd.f32 %v5248, %v5431
        %v5433 = vpop.f32.mrf.mxu0
        %5434 = vdwg.mxu0
        %v5435 = vadd.f32 %v5109, %v5309
        %v5436 = vadd.f32 %v5112, %v5312
        %v5437 = vadd.f32 %v5117, %v5317
        %v5438 = vadd.f32 %v5120, %v5320
        %v5439 = vadd.f32 %v5125, %v5325
        %v5440 = vadd.f32 %v5128, %v5328
        %v5441 = vadd.f32 %v5133, %v5333
        %v5442 = vadd.f32 %v5136, %v5336
        %v5443 = vadd.f32 %v5141, %v5341
        %v5444 = vadd.f32 %v5144, %v5344
        %v5445 = vadd.f32 %v5149, %v5349
        %v5446 = vadd.f32 %v5152, %v5352
        %v5447 = vadd.f32 %v5157, %v5357
        %v5448 = vadd.f32 %v5160, %v5360
        %v5449 = vadd.f32 %v5165, %v5365
        %v5450 = vadd.f32 %v5168, %v5368
        %v5451 = vadd.f32 %v5173, %v5373
        %v5452 = vadd.f32 %v5176, %v5376
        %v5453 = vadd.f32 %v5181, %v5381
        %v5454 = vadd.f32 %v5184, %v5384
        %v5455 = vadd.f32 %v5189, %v5389
        %v5456 = vadd.f32 %v5192, %v5392
        %v5457 = vadd.f32 %v5197, %v5397
        %v5458 = vadd.f32 %v5200, %v5400
        %v5459 = vadd.f32 %v5205, %v5405
        %v5460 = vadd.f32 %v5208, %v5408
        %v5461 = vadd.f32 %v5213, %v5413
        %v5462 = vadd.f32 %v5216, %v5416
        %v5463 = vadd.f32 %v5221, %v5421
        %v5464 = vadd.f32 %v5224, %v5424
        %v5465 = vadd.f32 %v5229, %v5429
        %v5466 = vadd.f32 %v5232, %v5432
        %v5467 = vmax.f32 %v5435, 0.0
        %v5468 = vmax.f32 %v5436, 0.0
        %v5469 = vmax.f32 %v5437, 0.0
        %v5470 = vmax.f32 %v5438, 0.0
        %v5471 = vmax.f32 %v5439, 0.0
        %v5472 = vmax.f32 %v5440, 0.0
        %v5473 = vmax.f32 %v5441, 0.0
        %v5474 = vmax.f32 %v5442, 0.0
        %v5475 = vmax.f32 %v5443, 0.0
        %v5476 = vmax.f32 %v5444, 0.0
        %v5477 = vmax.f32 %v5445, 0.0
        %v5478 = vmax.f32 %v5446, 0.0
        %v5479 = vmax.f32 %v5447, 0.0
        %v5480 = vmax.f32 %v5448, 0.0
        %v5481 = vmax.f32 %v5449, 0.0
        %v5482 = vmax.f32 %v5450, 0.0
        %v5483 = vmax.f32 %v5451, 0.0
        %v5484 = vmax.f32 %v5452, 0.0
        %v5485 = vmax.f32 %v5453, 0.0
        %v5486 = vmax.f32 %v5454, 0.0
        %v5487 = vmax.f32 %v5455, 0.0
        %v5488 = vmax.f32 %v5456, 0.0
        %v5489 = vmax.f32 %v5457, 0.0
        %v5490 = vmax.f32 %v5458, 0.0
        %v5491 = vmax.f32 %v5459, 0.0
        %v5492 = vmax.f32 %v5460, 0.0
        %v5493 = vmax.f32 %v5461, 0.0
        %v5494 = vmax.f32 %v5462, 0.0
        %v5495 = vmax.f32 %v5463, 0.0
        %v5496 = vmax.f32 %v5464, 0.0
        %v5497 = vmax.f32 %v5465, 0.0
        %v5498 = vmax.f32 %v5466, 0.0
        %5499 = vst [vmem:[%s325] sm:$0xff] %v5467
        %5500 = vst [vmem:[%s325 + $0x8] sm:$0xff] %v5468
        %5501 = vst [vmem:[%s325 + $0x10] sm:$0xff] %v5469
        %5502 = vst [vmem:[%s325 + $0x18] sm:$0xff] %v5470
        %5503 = vst [vmem:[%s325 + $0x20] sm:$0xff] %v5471
        %5504 = vst [vmem:[%s325 + $0x28] sm:$0xff] %v5472
        %5505 = vst [vmem:[%s325 + $0x30] sm:$0xff] %v5473
        %5506 = vst [vmem:[%s325 + $0x38] sm:$0xff] %v5474
        %5507 = vst [vmem:[%s325 + $0x40] sm:$0xff] %v5475
        %5508 = vst [vmem:[%s325 + $0x48] sm:$0xff] %v5476
        %5509 = vst [vmem:[%s325 + $0x50] sm:$0xff] %v5477
        %5510 = vst [vmem:[%s325 + $0x58] sm:$0xff] %v5478
        %5511 = vst [vmem:[%s325 + $0x60] sm:$0xff] %v5479
        %5512 = vst [vmem:[%s325 + $0x68] sm:$0xff] %v5480
        %5513 = vst [vmem:[%s325 + $0x70] sm:$0xff] %v5481
        %5514 = vst [vmem:[%s325 + $0x78] sm:$0xff] %v5482
        %5515 = vst [vmem:[%s325 + $0x80] sm:$0xff] %v5483
        %5516 = vst [vmem:[%s325 + $0x88] sm:$0xff] %v5484
        %5517 = vst [vmem:[%s325 + $0x90] sm:$0xff] %v5485
        %5518 = vst [vmem:[%s325 + $0x98] sm:$0xff] %v5486
        %5519 = vst [vmem:[%s325 + $0xa0] sm:$0xff] %v5487
        %5520 = vst [vmem:[%s325 + $0xa8] sm:$0xff] %v5488
        %5521 = vst [vmem:[%s325 + $0xb0] sm:$0xff] %v5489
        %5522 = vst [vmem:[%s325 + $0xb8] sm:$0xff] %v5490
        %5523 = vst [vmem:[%s325 + $0xc0] sm:$0xff] %v5491
        %5524 = vst [vmem:[%s325 + $0xc8] sm:$0xff] %v5492
        %5525 = vst [vmem:[%s325 + $0xd0] sm:$0xff] %v5493
        %5526 = vst [vmem:[%s325 + $0xd8] sm:$0xff] %v5494
        %5527 = vst [vmem:[%s325 + $0xe0] sm:$0xff] %v5495
        %5528 = vst [vmem:[%s325 + $0xe8] sm:$0xff] %v5496
        %5529 = vst [vmem:[%s325 + $0xf0] sm:$0xff] %v5497
        %5530 = vst [vmem:[%s325 + $0xf8] sm:$0xff] %v5498
        %s5531 = sand.u32 %s225, 1
        %s5532 = scalar_lea.sflag [#allocation4], %s5531
        %s5533 = sand.u32 %s225, 1
        %s5534 = smul.addr %s5533, 256
        %s5535 = scalar_lea.vmem [#allocation3], %s5534
        // Predicated region
        $region57: #{bottleneck_forward.1} parent=55 // pred_check
          %p5536 = pneg %p235
        $region58: #{bottleneck_forward.1} parent=55 // pred_check_branch
          %5538 = sbr.rel (%p5536) target = $region60
        $region59: #{bottleneck_forward.1} parent=55 // pred_region
          %s5540 = ssub.s32 4096, 4096
          %5541 = vsyncadd %s5532, %s5540
          %s5542 = smul.addr %s23, 32
          %s5543 = smul.addr %s5542, 128
          %s5544 = scalar_lea.hbm %s9, %s5543
          %s5545 = sshll.u32 %s5535, 4
          %s5546 = int_to_ptr.vmem [resolvable:$true] %s5545
          %5551 = dma.vmem_to_hbm [thread:$0]  %s5546, 4096, %s5544, %s5532, 128, 128, 8
        $region60: #{bottleneck_forward.1} parent=55 // pred_fallthru
          _
      $region56: #{bottleneck_forward.1} parent=5 // pred_fallthru
        _
      %p5552 = scmp.le.s32.totalorder 2, %s18
      // Predicated region
      $region61: #{bottleneck_forward.1} parent=5 // pred_check
        %p5553 = pneg %p5552
      $region62: #{bottleneck_forward.1} parent=5 // pred_check_branch
        %5555 = sbr.rel (%p5553) target = $region64
      $region63: #{bottleneck_forward.1} parent=5 // pred_region
        %s5556 = ssub.s32 %s18, 2
        // Predicated region
        $region65: #{bottleneck_forward.1} parent=63 // pred_check
          %p5557 = pneg %p241
        $region66: #{bottleneck_forward.1} parent=63 // pred_check_branch
          %5559 = sbr.rel (%p5557) target = $region68
        $region67: #{bottleneck_forward.1} parent=63 // pred_region
          %s5560 = sand.u32 %s226, 1
          %s5561 = scalar_lea.sflag [#allocation4], %s5560
          %s5562 = sand.u32 %s226, 1
          %s5563 = smul.addr %s5562, 256
          %s5564 = scalar_lea.vmem [#allocation3], %s5563
          %5565 = dma.done %s5561, 4096
        $region68: #{bottleneck_forward.1} parent=63 // pred_fallthru
          _
      $region64: #{bottleneck_forward.1} parent=5 // pred_fallthru
        _
    $region6: #{bottleneck_forward.1} parent=1 // loop_footer
      %s22 = sadd.s32 1, %s18
    $region7: #{bottleneck_forward.1} parent=1 // loop_footer_branch
      %17 = sbr.rel target = $region3
    $region8: #{bottleneck_forward.1} parent=1 // loop_exit
      _
    %5566 = vsyncpa [#allocation4], 1
    %s5567 = scalar_lea.sflag [#allocation4], 1
    %5568 = vsyncpa %s5567, 1

</llo_original>
